<compile_context>
chip_gen: v7x
topology: tpu7x:2x2x1
jax: 0.10.0
libtpu: 0.0.40
codegen_flags: <defaults>
</compile_context>

<pallas_src>
import jax
import jax.numpy as jnp
from jax.experimental import pallas as pl
from jax.experimental.pallas import tpu as pltpu

EPS = 1e-5
LANE = 128
VMEM_LIMIT = 32 * 1024 * 1024   # < physical VMEM on every generation incl. v7x (64 MiB)


def _round_up(n, m):
    return ((n + m - 1) // m) * m


# ------------------------------ kernels -------------------------------------

def _stats1_kernel(x_ref, w1_ref, sum_ref, sq_ref):
    """Per-core partial sum / sumsq of h1 = x @ W1 over the batch tiles."""
    @pl.when(pl.program_id(1) == 0)
    def _():
        sum_ref[...] = jnp.zeros_like(sum_ref)
        sq_ref[...] = jnp.zeros_like(sq_ref)

    h = jnp.dot(x_ref[...], w1_ref[...], preferred_element_type=jnp.float32)
    # Padded batch rows of x are zero => their h rows are exactly zero: no mask needed.
    sum_ref[0:1, :] += jnp.sum(h, axis=0, keepdims=True)
    sq_ref[0:1, :] += jnp.sum(h * h, axis=0, keepdims=True)


def _make_stats2_kernel(tile_b, batch, nb_half):
    """Per-core partial sum / sumsq of h2 = relu(bn1(x@W1)) @ W2."""
    def kernel(x_ref, w1_ref, s1_ref, t1_ref, w2_ref, sum_ref, sq_ref):
        c = pl.program_id(0)
        b = pl.program_id(1)
        gidx = c * nb_half + b

        @pl.when(b == 0)
        def _():
            sum_ref[...] = jnp.zeros_like(sum_ref)
            sq_ref[...] = jnp.zeros_like(sq_ref)

        h1 = jnp.dot(x_ref[...], w1_ref[...], preferred_element_type=jnp.float32)
        a1 = jnp.maximum(h1 * s1_ref[...] + t1_ref[...], 0.0).astype(jnp.bfloat16)
        h2 = jnp.dot(a1, w2_ref[...], preferred_element_type=jnp.float32)

        def accumulate(h):
            sum_ref[0:1, :] += jnp.sum(h, axis=0, keepdims=True)
            sq_ref[0:1, :] += jnp.sum(h * h, axis=0, keepdims=True)

        # relu(t1) @ W2 != 0 on padded rows, so a mask IS needed -- but only on tiles
        # that actually contain padding rows (normally just the last one).
        needs_mask = (gidx + 1) * tile_b > batch

        @pl.when(needs_mask)
        def _():
            rows = jax.lax.broadcasted_iota(jnp.int32, h2.shape, 0) + gidx * tile_b
            accumulate(jnp.where(rows < batch, h2, 0.0))

        @pl.when(jnp.logical_not(needs_mask))
        def _():
            accumulate(h2)

    return kernel


def _fwd_kernel(x_ref, w1_ref, s1_ref, t1_ref, w2_ref, s2_ref, t2_ref,
                w3_ref, b3_ref, o_ref):
    """Fused forward for one batch tile: each BN+ReLU is a single scale/shift pass."""
    h1 = jnp.dot(x_ref[...], w1_ref[...], preferred_element_type=jnp.float32)
    a1 = jnp.maximum(h1 * s1_ref[...] + t1_ref[...], 0.0).astype(jnp.bfloat16)
    h2 = jnp.dot(a1, w2_ref[...], preferred_element_type=jnp.float32)
    a2 = jnp.maximum(h2 * s2_ref[...] + t2_ref[...], 0.0).astype(jnp.bfloat16)
    o_ref[...] = (jnp.dot(a2, w3_ref[...], preferred_element_type=jnp.float32)
                  + b3_ref[...]).astype(o_ref.dtype)


# ------------------------------ wrapper --------------------------------------

def _finalize_bn(s, sq, gamma, beta, n):
    mu = s / n
    # NOTE: E[x^2]-E[x]^2 in f32; can lose precision if |mean| >> std (clamped >= 0).
    var = jnp.maximum(sq / n - mu * mu, 0.0)     # biased variance (PyTorch training BN)
    scale = gamma * jax.lax.rsqrt(var + EPS)
    shift = beta - mu * scale
    return scale, shift


def feedforward_net(x, params, *, tile_b=512):
    """x: (B, input_dim) float32. params: dict from init_params."""
    B, d_in = x.shape
    H1 = params["w1"].shape[1]
    H2 = params["w2"].shape[1]
    out_dim = params["w3"].shape[1]

    d_pad = _round_up(d_in, LANE)
    n_pad = _round_up(out_dim, LANE)
    tile_b = min(tile_b, _round_up(B, 8))
    b_pad = _round_up(B, 2 * tile_b)     # even tile count -> two-way stats split
    nb = b_pad // tile_b                 # even, >= 2
    nb_half = nb // 2

    # Cast MXU operands to bf16 once at the boundary; pad to lane-dense shapes.
    xp = jnp.pad(x.astype(jnp.bfloat16), ((0, b_pad - B), (0, d_pad - d_in)))
    w1 = jnp.pad(params["w1"], ((0, d_pad - d_in), (0, 0))).astype(jnp.bfloat16)
    w2 = params["w2"].astype(jnp.bfloat16)
    w3 = jnp.pad(params["w3"], ((0, 0), (0, n_pad - out_dim))).astype(jnp.bfloat16)
    b3 = jnp.pad(params["b3"], ((0, 0), (0, n_pad - out_dim))).astype(jnp.float32)
    # b1/b2 intentionally unused — bias right before training-mode BN is cancelled.

    x_stats_spec = pl.BlockSpec((tile_b, d_pad), lambda c, b: (c * nb_half + b, 0))
    x_fwd_spec = pl.BlockSpec((tile_b, d_pad), lambda b: (b, 0))

    def const2(shape):   # VMEM-resident block on the 2-D stats grid
        return pl.BlockSpec(shape, lambda c, b: (0, 0))

    def const1(shape):   # VMEM-resident block on the 1-D forward grid
        return pl.BlockSpec(shape, lambda b: (0, 0))

    def stats_out(h):
        # (2 cores) x (8 sublane rows) of partial sums; combined in the wrapper.
        spec = pl.BlockSpec((8, h), lambda c, b: (c, 0))
        shape = jax.ShapeDtypeStruct((16, h), jnp.float32)
        return (spec, spec), (shape, shape)

    stats_params = pltpu.CompilerParams(
        dimension_semantics=("parallel", "arbitrary"),
        vmem_limit_bytes=VMEM_LIMIT)

    # -- pass 1: full-batch stats of layer-1 pre-activations ---------------------
    out_specs1, out_shape1 = stats_out(H1)
    flops1 = 2 * b_pad * d_pad * H1 + 4 * b_pad * H1
    bytes1 = b_pad * d_pad * 2 + d_pad * H1 * 2 + 2 * 16 * H1 * 4
    sum1, sq1 = pl.pallas_call(
        _stats1_kernel,
        grid=(2, nb_half),
        in_specs=[x_stats_spec, const2((d_pad, H1))],
        out_specs=out_specs1,
        out_shape=out_shape1,
        compiler_params=stats_params,
        cost_estimate=pl.CostEstimate(flops=flops1, transcendentals=0,
                                      bytes_accessed=bytes1),
    )(xp, w1)
    s1, t1 = _finalize_bn(jnp.sum(sum1, axis=0, keepdims=True),
                          jnp.sum(sq1, axis=0, keepdims=True),
                          params["g1"], params["be1"], B)

    # -- pass 2: full-batch stats of layer-2 pre-activations ---------------------
    out_specs2, out_shape2 = stats_out(H2)
    flops2 = 2 * b_pad * (d_pad * H1 + H1 * H2) + 4 * b_pad * (H1 + H2)
    bytes2 = (b_pad * d_pad * 2 + d_pad * H1 * 2 + H1 * H2 * 2
              + 4 * H1 * 4 + 2 * 16 * H2 * 4)
    sum2, sq2 = pl.pallas_call(
        _make_stats2_kernel(tile_b, B, nb_half),
        grid=(2, nb_half),
        in_specs=[x_stats_spec, const2((d_pad, H1)), const2((1, H1)),
                  const2((1, H1)), const2((H1, H2))],
        out_specs=out_specs2,
        out_shape=out_shape2,
        compiler_params=stats_params,
        cost_estimate=pl.CostEstimate(flops=flops2, transcendentals=0,
                                      bytes_accessed=bytes2),
    )(xp, w1, s1, t1, w2)
    s2, t2 = _finalize_bn(jnp.sum(sum2, axis=0, keepdims=True),
                          jnp.sum(sq2, axis=0, keepdims=True),
                          params["g2"], params["be2"], B)

    # -- pass 3: fused forward, batch tiles independent (megacore-parallel) ------
    flops3 = 2 * b_pad * (d_pad * H1 + H1 * H2 + H2 * n_pad)
    bytes3 = (b_pad * d_pad * 2 + d_pad * H1 * 2 + H1 * H2 * 2 + H2 * n_pad * 2
              + b_pad * n_pad * 4)
    out = pl.pallas_call(
        _fwd_kernel,
        grid=(nb,),
        in_specs=[x_fwd_spec, const1((d_pad, H1)), const1((1, H1)), const1((1, H1)),
                  const1((H1, H2)), const1((1, H2)), const1((1, H2)),
                  const1((H2, n_pad)), const1((1, n_pad))],
        out_specs=pl.BlockSpec((tile_b, n_pad), lambda b: (b, 0)),
        out_shape=jax.ShapeDtypeStruct((b_pad, n_pad), jnp.float32),
        compiler_params=pltpu.CompilerParams(
            dimension_semantics=("parallel",), vmem_limit_bytes=VMEM_LIMIT),
        cost_estimate=pl.CostEstimate(flops=flops3, transcendentals=0,
                                      bytes_accessed=bytes3),
    )(xp, w1, s1, t1, w2, s2, t2, w3, b3)

    return out[:B, :out_dim]


# ------------------------------ params / reference ---------------------------

def init_params(key, input_dim, output_dim):
    """Deterministic init. Linear weights ~ N(0, 1/sqrt(fan_in)); BN gamma=1, beta=0.
    Weights stored as (in, out); row vectors stored as (1, N)."""
    ks = jax.random.split(key, 6)

    def lin(kw, kb, fan_in, fan_out):
        w = jax.random.normal(kw, (fan_in, fan_out), jnp.float32) / jnp.sqrt(float(fan_in))
        b = jax.random.normal(kb, (1, fan_out), jnp.float32) * 0.01
        return w, b

    w1, b1 = lin(ks[0], ks[1], input_dim, 512)
    w2, b2 = lin(ks[2], ks[3], 512, 256)
    w3, b3 = lin(ks[4], ks[5], 256, output_dim)
    return dict(
        w1=w1, b1=b1, g1=jnp.ones((1, 512), jnp.float32), be1=jnp.zeros((1, 512), jnp.float32),
        w2=w2, b2=b2, g2=jnp.ones((1, 256), jnp.float32), be2=jnp.zeros((1, 256), jnp.float32),
        w3=w3, b3=b3,
    )


def _reference(x, p, compute_dtype=jnp.float32):
    """Pure-JAX reference of the PyTorch forward (training-mode BN, biases included).
    compute_dtype controls the matmul-input precision (f32 or bf16)."""
    cd = compute_dtype

    def bn_relu(h, g, b):
        mu = jnp.mean(h, axis=0, keepdims=True)
        var = jnp.mean((h - mu) ** 2, axis=0, keepdims=True)
        return jnp.maximum(g * (h - mu) * jax.lax.rsqrt(var + EPS) + b, 0.0)

    h = jnp.dot(x.astype(cd), p["w1"].astype(cd),
                preferred_element_type=jnp.float32) + p["b1"]
    h = bn_relu(h, p["g1"], p["be1"])
    h = jnp.dot(h.astype(cd), p["w2"].astype(cd),
                preferred_element_type=jnp.float32) + p["b2"]
    h = bn_relu(h, p["g2"], p["be2"])
    return jnp.dot(h.astype(cd), p["w3"].astype(cd),
                   preferred_element_type=jnp.float32) + p["b3"]


if __name__ == "__main__":
    def check(batch, input_dim, output_dim, kx, kp):
        x = jax.random.normal(kx, (batch, input_dim), jnp.float32)
        params = init_params(kp, input_dim, output_dim)
        out = jax.block_until_ready(jax.jit(feedforward_net)(x, params))
        assert out.shape == (batch, output_dim)
        ref_bf16 = _reference(x, params, jnp.bfloat16)  # same mixed-precision math
        ref_f32 = _reference(x, params, jnp.float32)    # exact PyTorch-semantics forward
        assert jnp.allclose(out, ref_bf16, atol=5e-3, rtol=5e-3), "mismatch vs bf16 reference"
        assert jnp.allclose(out, ref_f32, atol=1e-1, rtol=1e-1), "mismatch vs f32 reference"

    k1, k2, k3, k4 = jax.random.split(jax.random.PRNGKey(0), 4)
    check(8, 32, 10, k1, k2)    # tiny batch: second stats tile is all padding (masked)
    check(13, 24, 7, k3, k4)    # odd sizes: boundary tile exercises the pad-row mask
    print("KERNEL_OK")
</pallas_src>

<mosaic_0001>
module attributes {stable_mosaic.version = 11 : i64} {
  func.func @_stats1_kernel(%arg0: i32, %arg1: i32, %arg2: memref<8x128xbf16, #tpu.memory_space<vmem>>, %arg3: memref<128x512xbf16, #tpu.memory_space<vmem>>, %arg4: memref<8x512xf32, #tpu.memory_space<vmem>>, %arg5: memref<8x512xf32, #tpu.memory_space<vmem>>) attributes {dimension_semantics = [#tpu.dimension_semantics<parallel>, #tpu.dimension_semantics<arbitrary>], iteration_bounds = array<i64: 2, 1>, scalar_prefetch = 0 : i64, scratch_operands = 0 : i64, tpu.core_type = #tpu.core_type<tc>, window_params = [{transform_indices = @transform_0, window_bounds = array<i64: 8, 128>}, {pipeline_mode = #tpu.pipeline_mode<synchronous>, transform_indices = @transform_1, window_bounds = array<i64: 128, 512>}, {transform_indices = @transform_2, window_bounds = array<i64: 8, 512>}, {transform_indices = @transform_3, window_bounds = array<i64: 8, 512>}]} {
    %c0_i32 = arith.constant 0 : i32
    %0 = arith.cmpi eq, %arg1, %c0_i32 : i32
    %1 = arith.extui %0 : i1 to i32
    %c0_i32_0 = arith.constant 0 : i32
    %2 = arith.cmpi ne, %1, %c0_i32_0 : i32
    scf.if %2 {
      %cst_14 = arith.constant 0.000000e+00 : f32
      %17 = vector.broadcast %cst_14 : f32 to vector<8x512xf32>
      %c0_15 = arith.constant 0 : index
      %c0_16 = arith.constant 0 : index
      %18 = vector.load %arg4[%c0_15, %c0_16] : memref<8x512xf32, #tpu.memory_space<vmem>>, vector<8x512xf32>
      tpu.vector_store %arg4[%c0_15, %c0_16], %17 {strides = array<i32>} : memref<8x512xf32, #tpu.memory_space<vmem>>, vector<8x512xf32>,
      %cst_17 = arith.constant 0.000000e+00 : f32
      %19 = vector.broadcast %cst_17 : f32 to vector<8x512xf32>
      %c0_18 = arith.constant 0 : index
      %c0_19 = arith.constant 0 : index
      %20 = vector.load %arg5[%c0_18, %c0_19] : memref<8x512xf32, #tpu.memory_space<vmem>>, vector<8x512xf32>
      tpu.vector_store %arg5[%c0_18, %c0_19], %19 {strides = array<i32>} : memref<8x512xf32, #tpu.memory_space<vmem>>, vector<8x512xf32>,
    } else {
    }
    %c0 = arith.constant 0 : index
    %c0_1 = arith.constant 0 : index
    %3 = vector.load %arg2[%c0, %c0_1] : memref<8x128xbf16, #tpu.memory_space<vmem>>, vector<8x128xbf16>
    %c0_2 = arith.constant 0 : index
    %c0_3 = arith.constant 0 : index
    %4 = vector.load %arg3[%c0_2, %c0_3] : memref<128x512xbf16, #tpu.memory_space<vmem>>, vector<128x512xbf16>
    %cst = arith.constant dense<0.000000e+00> : vector<8x512xf32>
    %5 = tpu.matmul %3, %4, %cst {dimension_numbers = #tpu.dot_dimension_numbers<[1], [0], [0], [1], [0, 0, 1, 1], [], []>} : vector<8x128xbf16>, vector<128x512xbf16>, vector<8x512xf32> -> vector<8x512xf32>
    %c0_4 = arith.constant 0 : index
    %c0_5 = arith.constant 0 : index
    %6 = vector.load %arg4[%c0_4, %c0_5] : memref<8x512xf32, #tpu.memory_space<vmem>>, vector<1x512xf32>
    %cst_6 = arith.constant dense<0.000000e+00> : vector<512xf32>
    %7 = vector.multi_reduction <add>, %5, %cst_6 [0] : vector<8x512xf32> to vector<512xf32>
    %8 = vector.shape_cast %7 : vector<512xf32> to vector<1x512xf32>
    %9 = arith.addf %6, %8 : vector<1x512xf32>
    %c0_7 = arith.constant 0 : index
    %c0_8 = arith.constant 0 : index
    %10 = vector.load %arg4[%c0_7, %c0_8] : memref<8x512xf32, #tpu.memory_space<vmem>>, vector<1x512xf32>
    tpu.vector_store %arg4[%c0_7, %c0_8], %9 {strides = array<i32>} : memref<8x512xf32, #tpu.memory_space<vmem>>, vector<1x512xf32>,
    %c0_9 = arith.constant 0 : index
    %c0_10 = arith.constant 0 : index
    %11 = vector.load %arg5[%c0_9, %c0_10] : memref<8x512xf32, #tpu.memory_space<vmem>>, vector<1x512xf32>
    %12 = arith.mulf %5, %5 : vector<8x512xf32>
    %cst_11 = arith.constant dense<0.000000e+00> : vector<512xf32>
    %13 = vector.multi_reduction <add>, %12, %cst_11 [0] : vector<8x512xf32> to vector<512xf32>
    %14 = vector.shape_cast %13 : vector<512xf32> to vector<1x512xf32>
    %15 = arith.addf %11, %14 : vector<1x512xf32>
    %c0_12 = arith.constant 0 : index
    %c0_13 = arith.constant 0 : index
    %16 = vector.load %arg5[%c0_12, %c0_13] : memref<8x512xf32, #tpu.memory_space<vmem>>, vector<1x512xf32>
    tpu.vector_store %arg5[%c0_12, %c0_13], %15 {strides = array<i32>} : memref<8x512xf32, #tpu.memory_space<vmem>>, vector<1x512xf32>,
    return
  }
  func.func @transform_0(%arg0: i32, %arg1: i32) -> (i32, i32) {
    %c1_i32 = arith.constant 1 : i32
    %0 = arith.muli %arg0, %c1_i32 : i32
    %1 = arith.addi %0, %arg1 : i32
    %c0_i32 = arith.constant 0 : i32
    %c0_i32_0 = arith.constant 0 : i32
    return %1, %c0_i32 : i32, i32
  }
  func.func @transform_1(%arg0: i32, %arg1: i32) -> (i32, i32) {
    %c0_i32 = arith.constant 0 : i32
    %c0_i32_0 = arith.constant 0 : i32
    %c0_i32_1 = arith.constant 0 : i32
    return %c0_i32, %c0_i32_0 : i32, i32
  }
  func.func @transform_2(%arg0: i32, %arg1: i32) -> (i32, i32) {
    %c0_i32 = arith.constant 0 : i32
    %c0_i32_0 = arith.constant 0 : i32
    return %arg0, %c0_i32 : i32, i32
  }
  func.func @transform_3(%arg0: i32, %arg1: i32) -> (i32, i32) {
    %c0_i32 = arith.constant 0 : i32
    %c0_i32_0 = arith.constant 0 : i32
    return %arg0, %c0_i32 : i32, i32
  }
}

module attributes {stable_mosaic.version = 11 : i64} {
  func.func @kernel(%arg0: i32, %arg1: i32, %arg2: memref<8x128xbf16, #tpu.memory_space<vmem>>, %arg3: memref<128x512xbf16, #tpu.memory_space<vmem>>, %arg4: memref<1x512xf32, #tpu.memory_space<vmem>>, %arg5: memref<1x512xf32, #tpu.memory_space<vmem>>, %arg6: memref<512x256xbf16, #tpu.memory_space<vmem>>, %arg7: memref<8x256xf32, #tpu.memory_space<vmem>>, %arg8: memref<8x256xf32, #tpu.memory_space<vmem>>) attributes {dimension_semantics = [#tpu.dimension_semantics<parallel>, #tpu.dimension_semantics<arbitrary>], iteration_bounds = array<i64: 2, 1>, scalar_prefetch = 0 : i64, scratch_operands = 0 : i64, tpu.core_type = #tpu.core_type<tc>, window_params = [{transform_indices = @transform_0, window_bounds = array<i64: 8, 128>}, {pipeline_mode = #tpu.pipeline_mode<synchronous>, transform_indices = @transform_1, window_bounds = array<i64: 128, 512>}, {pipeline_mode = #tpu.pipeline_mode<synchronous>, transform_indices = @transform_2, window_bounds = array<i64: 1, 512>}, {pipeline_mode = #tpu.pipeline_mode<synchronous>, transform_indices = @transform_3, window_bounds = array<i64: 1, 512>}, {pipeline_mode = #tpu.pipeline_mode<synchronous>, transform_indices = @transform_4, window_bounds = array<i64: 512, 256>}, {transform_indices = @transform_5, window_bounds = array<i64: 8, 256>}, {transform_indices = @transform_6, window_bounds = array<i64: 8, 256>}]} {
    %c1_i32 = arith.constant 1 : i32
    %0 = arith.muli %arg0, %c1_i32 : i32
    %1 = arith.addi %0, %arg1 : i32
    %c0_i32 = arith.constant 0 : i32
    %2 = arith.cmpi eq, %arg1, %c0_i32 : i32
    %3 = arith.extui %2 : i1 to i32
    %c0_i32_0 = arith.constant 0 : i32
    %4 = arith.cmpi ne, %3, %c0_i32_0 : i32
    scf.if %4 {
      %cst_16 = arith.constant 0.000000e+00 : f32
      %27 = vector.broadcast %cst_16 : f32 to vector<8x256xf32>
      %c0_17 = arith.constant 0 : index
      %c0_18 = arith.constant 0 : index
      %28 = vector.load %arg7[%c0_17, %c0_18] : memref<8x256xf32, #tpu.memory_space<vmem>>, vector<8x256xf32>
      tpu.vector_store %arg7[%c0_17, %c0_18], %27 {strides = array<i32>} : memref<8x256xf32, #tpu.memory_space<vmem>>, vector<8x256xf32>,
      %cst_19 = arith.constant 0.000000e+00 : f32
      %29 = vector.broadcast %cst_19 : f32 to vector<8x256xf32>
      %c0_20 = arith.constant 0 : index
      %c0_21 = arith.constant 0 : index
      %30 = vector.load %arg8[%c0_20, %c0_21] : memref<8x256xf32, #tpu.memory_space<vmem>>, vector<8x256xf32>
      tpu.vector_store %arg8[%c0_20, %c0_21], %29 {strides = array<i32>} : memref<8x256xf32, #tpu.memory_space<vmem>>, vector<8x256xf32>,
    } else {
    }
    %c0 = arith.constant 0 : index
    %c0_1 = arith.constant 0 : index
    %5 = vector.load %arg2[%c0, %c0_1] : memref<8x128xbf16, #tpu.memory_space<vmem>>, vector<8x128xbf16>
    %c0_2 = arith.constant 0 : index
    %c0_3 = arith.constant 0 : index
    %6 = vector.load %arg3[%c0_2, %c0_3] : memref<128x512xbf16, #tpu.memory_space<vmem>>, vector<128x512xbf16>
    %cst = arith.constant dense<0.000000e+00> : vector<8x512xf32>
    %7 = tpu.matmul %5, %6, %cst {dimension_numbers = #tpu.dot_dimension_numbers<[1], [0], [0], [1], [0, 0, 1, 1], [], []>} : vector<8x128xbf16>, vector<128x512xbf16>, vector<8x512xf32> -> vector<8x512xf32>
    %c0_4 = arith.constant 0 : index
    %c0_5 = arith.constant 0 : index
    %8 = vector.load %arg4[%c0_4, %c0_5] : memref<1x512xf32, #tpu.memory_space<vmem>>, vector<1x512xf32>
    %9 = vector.broadcast %8 : vector<1x512xf32> to vector<8x512xf32>
    %10 = arith.mulf %7, %9 : vector<8x512xf32>
    %c0_6 = arith.constant 0 : index
    %c0_7 = arith.constant 0 : index
    %11 = vector.load %arg5[%c0_6, %c0_7] : memref<1x512xf32, #tpu.memory_space<vmem>>, vector<1x512xf32>
    %12 = vector.broadcast %11 : vector<1x512xf32> to vector<8x512xf32>
    %13 = arith.addf %10, %12 : vector<8x512xf32>
    %cst_8 = arith.constant 0.000000e+00 : f32
    %14 = vector.broadcast %cst_8 : f32 to vector<8x512xf32>
    %15 = arith.maximumf %13, %14 : vector<8x512xf32>
    %16 = arith.truncf %15 : vector<8x512xf32> to vector<8x512xbf16>
    %c0_9 = arith.constant 0 : index
    %c0_10 = arith.constant 0 : index
    %17 = vector.load %arg6[%c0_9, %c0_10] : memref<512x256xbf16, #tpu.memory_space<vmem>>, vector<512x256xbf16>
    %cst_11 = arith.constant dense<0.000000e+00> : vector<8x256xf32>
    %18 = tpu.matmul %16, %17, %cst_11 {dimension_numbers = #tpu.dot_dimension_numbers<[1], [0], [0], [1], [0, 0, 1, 1], [], []>} : vector<8x512xbf16>, vector<512x256xbf16>, vector<8x256xf32> -> vector<8x256xf32>
    %c1_i32_12 = arith.constant 1 : i32
    %19 = arith.addi %1, %c1_i32_12 : i32
    %c8_i32 = arith.constant 8 : i32
    %20 = arith.muli %19, %c8_i32 : i32
    %c8_i32_13 = arith.constant 8 : i32
    %21 = arith.cmpi sgt, %20, %c8_i32_13 : i32
    %22 = arith.extui %21 : i1 to i32
    %c0_i32_14 = arith.constant 0 : i32
    %23 = arith.cmpi ne, %22, %c0_i32_14 : i32
    scf.if %23 {
      %27 = tpu.iota {dimensions = array<i32: 0>} : vector<8x256xi32>
      %c8_i32_16 = arith.constant 8 : i32
      %28 = arith.muli %1, %c8_i32_16 : i32
      %29 = vector.broadcast %28 : i32 to vector<8x256xi32>
      %30 = arith.addi %27, %29 : vector<8x256xi32>
      %c8_i32_17 = arith.constant 8 : i32
      %31 = vector.broadcast %c8_i32_17 : i32 to vector<8x256xi32>
      %32 = arith.cmpi slt, %30, %31 : vector<8x256xi32>
      %cst_18 = arith.constant 0.000000e+00 : f32
      %33 = vector.broadcast %cst_18 : f32 to vector<8x256xf32>
      %34 = arith.select %32, %18, %33 : vector<8x256xi1>, vector<8x256xf32>
      %c0_19 = arith.constant 0 : index
      %c0_20 = arith.constant 0 : index
      %35 = vector.load %arg7[%c0_19, %c0_20] : memref<8x256xf32, #tpu.memory_space<vmem>>, vector<1x256xf32>
      %cst_21 = arith.constant dense<0.000000e+00> : vector<256xf32>
      %36 = vector.multi_reduction <add>, %34, %cst_21 [0] : vector<8x256xf32> to vector<256xf32>
      %37 = vector.shape_cast %36 : vector<256xf32> to vector<1x256xf32>
      %38 = arith.addf %35, %37 : vector<1x256xf32>
      %c0_22 = arith.constant 0 : index
      %c0_23 = arith.constant 0 : index
      %39 = vector.load %arg7[%c0_22, %c0_23] : memref<8x256xf32, #tpu.memory_space<vmem>>, vector<1x256xf32>
      tpu.vector_store %arg7[%c0_22, %c0_23], %38 {strides = array<i32>} : memref<8x256xf32, #tpu.memory_space<vmem>>, vector<1x256xf32>,
      %c0_24 = arith.constant 0 : index
      %c0_25 = arith.constant 0 : index
      %40 = vector.load %arg8[%c0_24, %c0_25] : memref<8x256xf32, #tpu.memory_space<vmem>>, vector<1x256xf32>
      %41 = arith.mulf %34, %34 : vector<8x256xf32>
      %cst_26 = arith.constant dense<0.000000e+00> : vector<256xf32>
      %42 = vector.multi_reduction <add>, %41, %cst_26 [0] : vector<8x256xf32> to vector<256xf32>
      %43 = vector.shape_cast %42 : vector<256xf32> to vector<1x256xf32>
      %44 = arith.addf %40, %43 : vector<1x256xf32>
      %c0_27 = arith.constant 0 : index
      %c0_28 = arith.constant 0 : index
      %45 = vector.load %arg8[%c0_27, %c0_28] : memref<8x256xf32, #tpu.memory_space<vmem>>, vector<1x256xf32>
      tpu.vector_store %arg8[%c0_27, %c0_28], %44 {strides = array<i32>} : memref<8x256xf32, #tpu.memory_space<vmem>>, vector<1x256xf32>,
    } else {
    }
    %true = arith.constant true
    %24 = arith.xori %21, %true : i1
    %25 = arith.extui %24 : i1 to i32
    %c0_i32_15 = arith.constant 0 : i32
    %26 = arith.cmpi ne, %25, %c0_i32_15 : i32
    scf.if %26 {
      %c0_16 = arith.constant 0 : index
      %c0_17 = arith.constant 0 : index
      %27 = vector.load %arg7[%c0_16, %c0_17] : memref<8x256xf32, #tpu.memory_space<vmem>>, vector<1x256xf32>
      %cst_18 = arith.constant dense<0.000000e+00> : vector<256xf32>
      %28 = vector.multi_reduction <add>, %18, %cst_18 [0] : vector<8x256xf32> to vector<256xf32>
      %29 = vector.shape_cast %28 : vector<256xf32> to vector<1x256xf32>
      %30 = arith.addf %27, %29 : vector<1x256xf32>
      %c0_19 = arith.constant 0 : index
      %c0_20 = arith.constant 0 : index
      %31 = vector.load %arg7[%c0_19, %c0_20] : memref<8x256xf32, #tpu.memory_space<vmem>>, vector<1x256xf32>
      tpu.vector_store %arg7[%c0_19, %c0_20], %30 {strides = array<i32>} : memref<8x256xf32, #tpu.memory_space<vmem>>, vector<1x256xf32>,
      %c0_21 = arith.constant 0 : index
      %c0_22 = arith.constant 0 : index
      %32 = vector.load %arg8[%c0_21, %c0_22] : memref<8x256xf32, #tpu.memory_space<vmem>>, vector<1x256xf32>
      %33 = arith.mulf %18, %18 : vector<8x256xf32>
      %cst_23 = arith.constant dense<0.000000e+00> : vector<256xf32>
      %34 = vector.multi_reduction <add>, %33, %cst_23 [0] : vector<8x256xf32> to vector<256xf32>
      %35 = vector.shape_cast %34 : vector<256xf32> to vector<1x256xf32>
      %36 = arith.addf %32, %35 : vector<1x256xf32>
      %c0_24 = arith.constant 0 : index
      %c0_25 = arith.constant 0 : index
      %37 = vector.load %arg8[%c0_24, %c0_25] : memref<8x256xf32, #tpu.memory_space<vmem>>, vector<1x256xf32>
      tpu.vector_store %arg8[%c0_24, %c0_25], %36 {strides = array<i32>} : memref<8x256xf32, #tpu.memory_space<vmem>>, vector<1x256xf32>,
    } else {
    }
    return
  }
  func.func @transform_0(%arg0: i32, %arg1: i32) -> (i32, i32) {
    %c1_i32 = arith.constant 1 : i32
    %0 = arith.muli %arg0, %c1_i32 : i32
    %1 = arith.addi %0, %arg1 : i32
    %c0_i32 = arith.constant 0 : i32
    %c0_i32_0 = arith.constant 0 : i32
    return %1, %c0_i32 : i32, i32
  }
  func.func @transform_1(%arg0: i32, %arg1: i32) -> (i32, i32) {
    %c0_i32 = arith.constant 0 : i32
    %c0_i32_0 = arith.constant 0 : i32
    %c0_i32_1 = arith.constant 0 : i32
    return %c0_i32, %c0_i32_0 : i32, i32
  }
  func.func @transform_2(%arg0: i32, %arg1: i32) -> (i32, i32) {
    %c0_i32 = arith.constant 0 : i32
    %c0_i32_0 = arith.constant 0 : i32
    %c0_i32_1 = arith.constant 0 : i32
    return %c0_i32, %c0_i32_0 : i32, i32
  }
  func.func @transform_3(%arg0: i32, %arg1: i32) -> (i32, i32) {
    %c0_i32 = arith.constant 0 : i32
    %c0_i32_0 = arith.constant 0 : i32
    %c0_i32_1 = arith.constant 0 : i32
    return %c0_i32, %c0_i32_0 : i32, i32
  }
  func.func @transform_4(%arg0: i32, %arg1: i32) -> (i32, i32) {
    %c0_i32 = arith.constant 0 : i32
    %c0_i32_0 = arith.constant 0 : i32
    %c0_i32_1 = arith.constant 0 : i32
    return %c0_i32, %c0_i32_0 : i32, i32
  }
  func.func @transform_5(%arg0: i32, %arg1: i32) -> (i32, i32) {
    %c0_i32 = arith.constant 0 : i32
    %c0_i32_0 = arith.constant 0 : i32
    return %arg0, %c0_i32 : i32, i32
  }
  func.func @transform_6(%arg0: i32, %arg1: i32) -> (i32, i32) {
    %c0_i32 = arith.constant 0 : i32
    %c0_i32_0 = arith.constant 0 : i32
    return %arg0, %c0_i32 : i32, i32
  }
}

module attributes {stable_mosaic.version = 11 : i64} {
  func.func @_fwd_kernel(%arg0: i32, %arg1: memref<8x128xbf16, #tpu.memory_space<vmem>>, %arg2: memref<128x512xbf16, #tpu.memory_space<vmem>>, %arg3: memref<1x512xf32, #tpu.memory_space<vmem>>, %arg4: memref<1x512xf32, #tpu.memory_space<vmem>>, %arg5: memref<512x256xbf16, #tpu.memory_space<vmem>>, %arg6: memref<1x256xf32, #tpu.memory_space<vmem>>, %arg7: memref<1x256xf32, #tpu.memory_space<vmem>>, %arg8: memref<256x128xbf16, #tpu.memory_space<vmem>>, %arg9: memref<1x128xf32, #tpu.memory_space<vmem>>, %arg10: memref<8x128xf32, #tpu.memory_space<vmem>>) attributes {dimension_semantics = [#tpu.dimension_semantics<parallel>], iteration_bounds = array<i64: 2>, scalar_prefetch = 0 : i64, scratch_operands = 0 : i64, tpu.core_type = #tpu.core_type<tc>, window_params = [{transform_indices = @transform_0, window_bounds = array<i64: 8, 128>}, {pipeline_mode = #tpu.pipeline_mode<synchronous>, transform_indices = @transform_1, window_bounds = array<i64: 128, 512>}, {pipeline_mode = #tpu.pipeline_mode<synchronous>, transform_indices = @transform_2, window_bounds = array<i64: 1, 512>}, {pipeline_mode = #tpu.pipeline_mode<synchronous>, transform_indices = @transform_3, window_bounds = array<i64: 1, 512>}, {pipeline_mode = #tpu.pipeline_mode<synchronous>, transform_indices = @transform_4, window_bounds = array<i64: 512, 256>}, {pipeline_mode = #tpu.pipeline_mode<synchronous>, transform_indices = @transform_5, window_bounds = array<i64: 1, 256>}, {pipeline_mode = #tpu.pipeline_mode<synchronous>, transform_indices = @transform_6, window_bounds = array<i64: 1, 256>}, {pipeline_mode = #tpu.pipeline_mode<synchronous>, transform_indices = @transform_7, window_bounds = array<i64: 256, 128>}, {pipeline_mode = #tpu.pipeline_mode<synchronous>, transform_indices = @transform_8, window_bounds = array<i64: 1, 128>}, {transform_indices = @transform_9, window_bounds = array<i64: 8, 128>}]} {
    %c0 = arith.constant 0 : index
    %c0_0 = arith.constant 0 : index
    %0 = vector.load %arg1[%c0, %c0_0] : memref<8x128xbf16, #tpu.memory_space<vmem>>, vector<8x128xbf16>
    %c0_1 = arith.constant 0 : index
    %c0_2 = arith.constant 0 : index
    %1 = vector.load %arg2[%c0_1, %c0_2] : memref<128x512xbf16, #tpu.memory_space<vmem>>, vector<128x512xbf16>
    %cst = arith.constant dense<0.000000e+00> : vector<8x512xf32>
    %2 = tpu.matmul %0, %1, %cst {dimension_numbers = #tpu.dot_dimension_numbers<[1], [0], [0], [1], [0, 0, 1, 1], [], []>} : vector<8x128xbf16>, vector<128x512xbf16>, vector<8x512xf32> -> vector<8x512xf32>
    %c0_3 = arith.constant 0 : index
    %c0_4 = arith.constant 0 : index
    %3 = vector.load %arg3[%c0_3, %c0_4] : memref<1x512xf32, #tpu.memory_space<vmem>>, vector<1x512xf32>
    %4 = vector.broadcast %3 : vector<1x512xf32> to vector<8x512xf32>
    %5 = arith.mulf %2, %4 : vector<8x512xf32>
    %c0_5 = arith.constant 0 : index
    %c0_6 = arith.constant 0 : index
    %6 = vector.load %arg4[%c0_5, %c0_6] : memref<1x512xf32, #tpu.memory_space<vmem>>, vector<1x512xf32>
    %7 = vector.broadcast %6 : vector<1x512xf32> to vector<8x512xf32>
    %8 = arith.addf %5, %7 : vector<8x512xf32>
    %cst_7 = arith.constant 0.000000e+00 : f32
    %9 = vector.broadcast %cst_7 : f32 to vector<8x512xf32>
    %10 = arith.maximumf %8, %9 : vector<8x512xf32>
    %11 = arith.truncf %10 : vector<8x512xf32> to vector<8x512xbf16>
    %c0_8 = arith.constant 0 : index
    %c0_9 = arith.constant 0 : index
    %12 = vector.load %arg5[%c0_8, %c0_9] : memref<512x256xbf16, #tpu.memory_space<vmem>>, vector<512x256xbf16>
    %cst_10 = arith.constant dense<0.000000e+00> : vector<8x256xf32>
    %13 = tpu.matmul %11, %12, %cst_10 {dimension_numbers = #tpu.dot_dimension_numbers<[1], [0], [0], [1], [0, 0, 1, 1], [], []>} : vector<8x512xbf16>, vector<512x256xbf16>, vector<8x256xf32> -> vector<8x256xf32>
    %c0_11 = arith.constant 0 : index
    %c0_12 = arith.constant 0 : index
    %14 = vector.load %arg6[%c0_11, %c0_12] : memref<1x256xf32, #tpu.memory_space<vmem>>, vector<1x256xf32>
    %15 = vector.broadcast %14 : vector<1x256xf32> to vector<8x256xf32>
    %16 = arith.mulf %13, %15 : vector<8x256xf32>
    %c0_13 = arith.constant 0 : index
    %c0_14 = arith.constant 0 : index
    %17 = vector.load %arg7[%c0_13, %c0_14] : memref<1x256xf32, #tpu.memory_space<vmem>>, vector<1x256xf32>
    %18 = vector.broadcast %17 : vector<1x256xf32> to vector<8x256xf32>
    %19 = arith.addf %16, %18 : vector<8x256xf32>
    %cst_15 = arith.constant 0.000000e+00 : f32
    %20 = vector.broadcast %cst_15 : f32 to vector<8x256xf32>
    %21 = arith.maximumf %19, %20 : vector<8x256xf32>
    %22 = arith.truncf %21 : vector<8x256xf32> to vector<8x256xbf16>
    %c0_16 = arith.constant 0 : index
    %c0_17 = arith.constant 0 : index
    %23 = vector.load %arg8[%c0_16, %c0_17] : memref<256x128xbf16, #tpu.memory_space<vmem>>, vector<256x128xbf16>
    %cst_18 = arith.constant dense<0.000000e+00> : vector<8x128xf32>
    %24 = tpu.matmul %22, %23, %cst_18 {dimension_numbers = #tpu.dot_dimension_numbers<[1], [0], [0], [1], [0, 0, 1, 1], [], []>} : vector<8x256xbf16>, vector<256x128xbf16>, vector<8x128xf32> -> vector<8x128xf32>
    %c0_19 = arith.constant 0 : index
    %c0_20 = arith.constant 0 : index
    %25 = vector.load %arg9[%c0_19, %c0_20] : memref<1x128xf32, #tpu.memory_space<vmem>>, vector<1x128xf32>
    %26 = vector.broadcast %25 : vector<1x128xf32> to vector<8x128xf32>
    %27 = arith.addf %24, %26 : vector<8x128xf32>
    %c0_21 = arith.constant 0 : index
    %c0_22 = arith.constant 0 : index
    %28 = vector.load %arg10[%c0_21, %c0_22] : memref<8x128xf32, #tpu.memory_space<vmem>>, vector<8x128xf32>
    tpu.vector_store %arg10[%c0_21, %c0_22], %27 {strides = array<i32>} : memref<8x128xf32, #tpu.memory_space<vmem>>, vector<8x128xf32>,
    return
  }
  func.func @transform_0(%arg0: i32) -> (i32, i32) {
    %c0_i32 = arith.constant 0 : i32
    %c0_i32_0 = arith.constant 0 : i32
    return %arg0, %c0_i32 : i32, i32
  }
  func.func @transform_1(%arg0: i32) -> (i32, i32) {
    %c0_i32 = arith.constant 0 : i32
    %c0_i32_0 = arith.constant 0 : i32
    %c0_i32_1 = arith.constant 0 : i32
    return %c0_i32, %c0_i32_0 : i32, i32
  }
  func.func @transform_2(%arg0: i32) -> (i32, i32) {
    %c0_i32 = arith.constant 0 : i32
    %c0_i32_0 = arith.constant 0 : i32
    %c0_i32_1 = arith.constant 0 : i32
    return %c0_i32, %c0_i32_0 : i32, i32
  }
  func.func @transform_3(%arg0: i32) -> (i32, i32) {
    %c0_i32 = arith.constant 0 : i32
    %c0_i32_0 = arith.constant 0 : i32
    %c0_i32_1 = arith.constant 0 : i32
    return %c0_i32, %c0_i32_0 : i32, i32
  }
  func.func @transform_4(%arg0: i32) -> (i32, i32) {
    %c0_i32 = arith.constant 0 : i32
    %c0_i32_0 = arith.constant 0 : i32
    %c0_i32_1 = arith.constant 0 : i32
    return %c0_i32, %c0_i32_0 : i32, i32
  }
  func.func @transform_5(%arg0: i32) -> (i32, i32) {
    %c0_i32 = arith.constant 0 : i32
    %c0_i32_0 = arith.constant 0 : i32
    %c0_i32_1 = arith.constant 0 : i32
    return %c0_i32, %c0_i32_0 : i32, i32
  }
  func.func @transform_6(%arg0: i32) -> (i32, i32) {
    %c0_i32 = arith.constant 0 : i32
    %c0_i32_0 = arith.constant 0 : i32
    %c0_i32_1 = arith.constant 0 : i32
    return %c0_i32, %c0_i32_0 : i32, i32
  }
  func.func @transform_7(%arg0: i32) -> (i32, i32) {
    %c0_i32 = arith.constant 0 : i32
    %c0_i32_0 = arith.constant 0 : i32
    %c0_i32_1 = arith.constant 0 : i32
    return %c0_i32, %c0_i32_0 : i32, i32
  }
  func.func @transform_8(%arg0: i32) -> (i32, i32) {
    %c0_i32 = arith.constant 0 : i32
    %c0_i32_0 = arith.constant 0 : i32
    %c0_i32_1 = arith.constant 0 : i32
    return %c0_i32, %c0_i32_0 : i32, i32
  }
  func.func @transform_9(%arg0: i32) -> (i32, i32) {
    %c0_i32 = arith.constant 0 : i32
    %c0_i32_0 = arith.constant 0 : i32
    return %arg0, %c0_i32 : i32, i32
  }
}

</mosaic_0001>

<llo_original>
// kernel: feedforward_net.3
$region0: #{feedforward_net.3}
  #allocation0 [shape = 'u32[]', space=smem, size = 0x4, offset = 0x4, fixed_abs, tag = 'smem constant byte address 0x4 - core index']
  #allocation1 [shape = 'u32[144,128]{1,0:T(1,128)}', space=vmem, size = 0x12000, scoped, tag = 'internal scratch']
  %s0 = inlined_call_operand.vmem [shape: bf16[16,128], index: 0, kind: input, shape index: {}]
  %s1 = inlined_call_operand.vmem [shape: bf16[128,512], index: 1, kind: input, shape index: {}]
  %s2 = inlined_call_operand.vmem [shape: f32[16,512], index: 2, kind: output, shape index: {0}]
  %s3 = inlined_call_operand.vmem [shape: f32[16,512], index: 3, kind: output, shape index: {1}]
  %4 = xla_tuple %s2, %s3
  %s5 = sld [smem:[#allocation0]]
  $region53: #{feedforward_net.3} parent=0
    _
  %s7 = ssub.s32 1, %s5
  %s8 = scalar_select 0, %s7, %s5
  loop: start=0, step=1, limit=4
  $region2: #{feedforward_net.3} parent=0 // loop_pre_header
    _
  $region3: #{feedforward_net.3} parent=0 // loop_header
    %s10 = sphi 0, %s14
    %p11 = scmp.ge.s32.totalorder %s10, 4
    %s17 = sphi 0, %s29
    %s18 = sphi 0, %s25
    %s19 = sphi 0, %s17
    %s20 = sphi 0, %s18
    %s21 = sphi 0, %s19
    %s22 = sphi 0, %s20
    %s34 = sphi 0, %s36
    %s37 = sphi 0, %s34
    %s38 = sphi 0, %s37
    %s54 = sphi 0, %s38
    %s58 = sphi 0, %s58
    %s60 = sphi 0, %s58
    %s61 = sphi 0, %s60
    %s75 = sphi 0, %s61
    %s81 = sphi 0, %s83
    %s84 = sphi 0, %s81
    %s85 = sphi 0, %s84
    %s101 = sphi 0, %s85
    %s107 = sphi 0, %s109
    %s110 = sphi 0, %s107
    %s111 = sphi 0, %s110
    %s127 = sphi 0, %s111
  $region4: #{feedforward_net.3} parent=0 // loop_header_branch
    %13 = sbr.rel (%p11) target = $region8
  $region5: #{feedforward_net.3} parent=0 // loop_body
    %s15 = ssub.s32 %s10, 1
    %s16 = ssub.s32 %s10, 2
    %s23 = sadd.s32 1, %s18
    %p24 = scmp.ge.s32.totalorder %s23, 1
    %s25 = scalar_select %p24, 0, %s23
    %s26 = sadd.s32 1, %s17
    %s27 = scalar_select %p24, %s26, %s17
    %p28 = scmp.ge.s32.totalorder %s27, 2
    %s29 = scalar_select %p28, 0, %s27
    %s30 = sadd.s32 %s17, %s18
    %s31 = sadd.s32 %s29, %s25
    %s32 = ssub.s32 %s30, %s31
    %p33 = scmp.eq.s32.totalorder %s32, 0
    %s35 = sadd.s32 %s34, 1
    %s36 = scalar_select %p33, %s34, %s35
    %p39 = pneg %p33
    %p40 = scmp.eq.s32.totalorder %s10, 1
    %p41 = por %p39, %p40
    %p42 = scmp.ne.s32.totalorder %s34, %s37
    %p43 = scmp.eq.s32.totalorder %s10, 0
    %p44 = por %p42, %p43
    %p45 = scmp.ne.s32.totalorder %s34, %s37
    %p46 = scmp.eq.s32.totalorder %s15, 1
    %p47 = por %p45, %p46
    %p48 = scmp.ne.s32.totalorder %s37, %s38
    %p49 = scmp.eq.s32.totalorder %s15, 0
    %p50 = por %p48, %p49
    %p51 = scmp.ne.s32.totalorder %s37, %s38
    %p52 = scmp.eq.s32.totalorder %s16, 1
    %p53 = por %p51, %p52
    %p55 = scmp.ne.s32.totalorder %s38, %s54
    %p56 = scmp.eq.s32.totalorder %s16, 0
    %p57 = por %p55, %p56
    %s59 = sadd.s32 %s58, 1
    %p62 = scmp.eq.s32.totalorder %s10, 1
    %p63 = scmp.ne.s32.totalorder %s58, %s60
    %p64 = scmp.eq.s32.totalorder %s10, 0
    %p65 = por %p63, %p64
    %p66 = scmp.ne.s32.totalorder %s58, %s60
    %p67 = scmp.eq.s32.totalorder %s15, 1
    %p68 = por %p66, %p67
    %p69 = scmp.ne.s32.totalorder %s60, %s61
    %p70 = scmp.eq.s32.totalorder %s15, 0
    %p71 = por %p69, %p70
    %p72 = scmp.ne.s32.totalorder %s60, %s61
    %p73 = scmp.eq.s32.totalorder %s16, 1
    %p74 = por %p72, %p73
    %p76 = scmp.ne.s32.totalorder %s61, %s75
    %p77 = scmp.eq.s32.totalorder %s16, 0
    %p78 = por %p76, %p77
    %s79 = ssub.s32 %s17, %s29
    %p80 = scmp.eq.s32.totalorder %s79, 0
    %s82 = sadd.s32 %s81, 1
    %s83 = scalar_select %p80, %s81, %s82
    %p86 = pneg %p80
    %p87 = scmp.eq.s32.totalorder %s10, 1
    %p88 = por %p86, %p87
    %p89 = scmp.ne.s32.totalorder %s81, %s84
    %p90 = scmp.eq.s32.totalorder %s10, 0
    %p91 = por %p89, %p90
    %p92 = scmp.ne.s32.totalorder %s81, %s84
    %p93 = scmp.eq.s32.totalorder %s15, 1
    %p94 = por %p92, %p93
    %p95 = scmp.ne.s32.totalorder %s84, %s85
    %p96 = scmp.eq.s32.totalorder %s15, 0
    %p97 = por %p95, %p96
    %p98 = scmp.ne.s32.totalorder %s84, %s85
    %p99 = scmp.eq.s32.totalorder %s16, 1
    %p100 = por %p98, %p99
    %p102 = scmp.ne.s32.totalorder %s85, %s101
    %p103 = scmp.eq.s32.totalorder %s16, 0
    %p104 = por %p102, %p103
    %s105 = ssub.s32 %s17, %s29
    %p106 = scmp.eq.s32.totalorder %s105, 0
    %s108 = sadd.s32 %s107, 1
    %s109 = scalar_select %p106, %s107, %s108
    %p112 = pneg %p106
    %p113 = scmp.eq.s32.totalorder %s10, 1
    %p114 = por %p112, %p113
    %p115 = scmp.ne.s32.totalorder %s107, %s110
    %p116 = scmp.eq.s32.totalorder %s10, 0
    %p117 = por %p115, %p116
    %p118 = scmp.ne.s32.totalorder %s107, %s110
    %p119 = scmp.eq.s32.totalorder %s15, 1
    %p120 = por %p118, %p119
    %p121 = scmp.ne.s32.totalorder %s110, %s111
    %p122 = scmp.eq.s32.totalorder %s15, 0
    %p123 = por %p121, %p122
    %p124 = scmp.ne.s32.totalorder %s110, %s111
    %p125 = scmp.eq.s32.totalorder %s16, 1
    %p126 = por %p124, %p125
    %p128 = scmp.ne.s32.totalorder %s111, %s127
    %p129 = scmp.eq.s32.totalorder %s16, 0
    %p130 = por %p128, %p129
    %p131 = scmp.le.s32.totalorder 1, %s10
    %p132 = scmp.lt.s32.totalorder %s10, 3
    %p133 = pnand %p131, %p132
    %p134 = pneg %p133
    // Predicated region
    $region9: #{feedforward_net.3} parent=5 // pred_check
      _
    $region10: #{feedforward_net.3} parent=5 // pred_check_branch
      %136 = sbr.rel (%p133) target = $region12
    $region11: #{feedforward_net.3} parent=5 // pred_region
      %s137 = ssub.s32 %s10, 1
      // Predicated region
      $region13: #{feedforward_net.3} parent=11 // pred_check
        %p138 = pneg %p71
      $region14: #{feedforward_net.3} parent=11 // pred_check_branch
        %140 = sbr.rel (%p138) target = $region16
      $region15: #{feedforward_net.3} parent=11 // pred_region
        _
      $region16: #{feedforward_net.3} parent=11 // pred_fallthru
        _
    $region12: #{feedforward_net.3} parent=5 // pred_fallthru
      _
    %p141 = scmp.lt.s32.totalorder %s10, 2
    // Predicated region
    $region17: #{feedforward_net.3} parent=5 // pred_check
      %p142 = pneg %p141
    $region18: #{feedforward_net.3} parent=5 // pred_check_branch
      %144 = sbr.rel (%p142) target = $region20
    $region19: #{feedforward_net.3} parent=5 // pred_region
      // Predicated region
      $region21: #{feedforward_net.3} parent=19 // pred_check
        %p145 = pneg %p44
      $region22: #{feedforward_net.3} parent=19 // pred_check_branch
        %147 = sbr.rel (%p145) target = $region24
      $region23: #{feedforward_net.3} parent=19 // pred_region
        %s148 = sadd.s32 %s17, %s18
        %p149 = scmp.lt.s32.totalorder %s148, 1
        %s150 = scalar_select %p149, %s148, 1
        %s151 = smul.addr %s150, 4
        %s152 = scalar_lea.vmem %s0, %s151
        %s153 = sadd.s32 %s17, %s18
      $region24: #{feedforward_net.3} parent=19 // pred_fallthru
        _
    $region20: #{feedforward_net.3} parent=5 // pred_fallthru
      _
    %p154 = scmp.le.s32.totalorder 1, %s10
    %p155 = scmp.lt.s32.totalorder %s10, 3
    %p156 = pnand %p154, %p155
    %p157 = pneg %p156
    // Predicated region
    $region25: #{feedforward_net.3} parent=5 // pred_check
      _
    $region26: #{feedforward_net.3} parent=5 // pred_check_branch
      %159 = sbr.rel (%p156) target = $region28
    $region27: #{feedforward_net.3} parent=5 // pred_region
      %s160 = ssub.s32 %s10, 1
      %s161 = sadd.s32 %s19, %s20
      %p162 = scmp.lt.s32.totalorder %s161, 1
      %s163 = scalar_select %p162, %s161, 1
      %s164 = smul.addr %s163, 4
      %s165 = scalar_lea.vmem %s0, %s164
      %p166 = pneg %p50
      %p167 = pneg %p47
      %p168 = pneg %p71
      %p169 = pneg %p68
      %p170 = pneg %p97
      %p171 = pneg %p94
      %p172 = scmp.lt.s32.totalorder %s19, 1
      %s173 = scalar_select %p172, %s19, 1
      %s174 = smul.addr %s173, 4
      %s175 = smul.addr %s174, 8
      %s176 = scalar_lea.vmem %s2, %s175
      %p177 = pneg %p123
      %p178 = pneg %p120
      %p179 = scmp.lt.s32.totalorder %s19, 1
      %s180 = scalar_select %p179, %s19, 1
      %s181 = smul.addr %s180, 4
      %s182 = smul.addr %s181, 8
      %s183 = scalar_lea.vmem %s3, %s182
      %s184 = sadd.s32 %s19, %s20
      %p185 = scmp.lt.s32.totalorder %s184, 1
      %s186 = scalar_select %p185, %s184, 1
      %s187 = smul.addr %s186, 4
      %s188 = scalar_lea.vmem %s0, %s187
      %s189 = sadd.s32 %s19, %s20
      %p190 = scmp.lt.s32.totalorder %s19, 1
      %s191 = scalar_select %p190, %s19, 1
      %s192 = smul.addr %s191, 4
      %s193 = smul.addr %s192, 8
      %s194 = scalar_lea.vmem %s2, %s193
      %p195 = scmp.lt.s32.totalorder %s19, 1
      %s196 = scalar_select %p195, %s19, 1
      %s197 = smul.addr %s196, 4
      %s198 = smul.addr %s197, 8
      %s199 = scalar_lea.vmem %s3, %s198
      %p201 = scmp.eq.s32.totalorder %s20, 0
      // Predicated region
      $region29: #{feedforward_net.3} parent=27 // pred_check
        %p202 = pneg %p201
      $region30: #{feedforward_net.3} parent=27 // pred_check_branch
        %204 = sbr.rel (%p202) target = $region32
      $region31: #{feedforward_net.3} parent=27 // pred_region
        %205 = vst [vmem:[%s194] sm:$0xff] 0.0
        %206 = vst [vmem:[%s194 + $0x8] sm:$0xff] 0.0
        %207 = vst [vmem:[%s194 + $0x10] sm:$0xff] 0.0
        %208 = vst [vmem:[%s194 + $0x18] sm:$0xff] 0.0
        %209 = vst [vmem:[%s199] sm:$0xff] 0.0
        %210 = vst [vmem:[%s199 + $0x8] sm:$0xff] 0.0
        %211 = vst [vmem:[%s199 + $0x10] sm:$0xff] 0.0
        %212 = vst [vmem:[%s199 + $0x18] sm:$0xff] 0.0
      $region32: #{feedforward_net.3} parent=27 // pred_fallthru
        _
      %v213 = vld [vmem:[%s188] sm:$0xf]
      %v214 = vld [vmem:[%s1] sm:$0xff]
      %v215 = vld [vmem:[%s1 + $0x8] sm:$0xff]
      %v216 = vld [vmem:[%s1 + $0x10] sm:$0xff]
      %v217 = vld [vmem:[%s1 + $0x18] sm:$0xff]
      %v218 = vld [vmem:[%s1 + $0x20] sm:$0xff]
      %v219 = vld [vmem:[%s1 + $0x28] sm:$0xff]
      %v220 = vld [vmem:[%s1 + $0x30] sm:$0xff]
      %v221 = vld [vmem:[%s1 + $0x38] sm:$0xff]
      %v222 = vld [vmem:[%s1 + $0x40] sm:$0xff]
      %v223 = vld [vmem:[%s1 + $0x48] sm:$0xff]
      %v224 = vld [vmem:[%s1 + $0x50] sm:$0xff]
      %v225 = vld [vmem:[%s1 + $0x58] sm:$0xff]
      %v226 = vld [vmem:[%s1 + $0x60] sm:$0xff]
      %v227 = vld [vmem:[%s1 + $0x68] sm:$0xff]
      %v228 = vld [vmem:[%s1 + $0x70] sm:$0xff]
      %v229 = vld [vmem:[%s1 + $0x78] sm:$0xff]
      %v230 = vld [vmem:[%s1 + $0x80] sm:$0xff]
      %v231 = vld [vmem:[%s1 + $0x88] sm:$0xff]
      %v232 = vld [vmem:[%s1 + $0x90] sm:$0xff]
      %v233 = vld [vmem:[%s1 + $0x98] sm:$0xff]
      %v234 = vld [vmem:[%s1 + $0xa0] sm:$0xff]
      %v235 = vld [vmem:[%s1 + $0xa8] sm:$0xff]
      %v236 = vld [vmem:[%s1 + $0xb0] sm:$0xff]
      %v237 = vld [vmem:[%s1 + $0xb8] sm:$0xff]
      %v238 = vld [vmem:[%s1 + $0xc0] sm:$0xff]
      %v239 = vld [vmem:[%s1 + $0xc8] sm:$0xff]
      %v240 = vld [vmem:[%s1 + $0xd0] sm:$0xff]
      %v241 = vld [vmem:[%s1 + $0xd8] sm:$0xff]
      %v242 = vld [vmem:[%s1 + $0xe0] sm:$0xff]
      %v243 = vld [vmem:[%s1 + $0xe8] sm:$0xff]
      %v244 = vld [vmem:[%s1 + $0xf0] sm:$0xff]
      %v245 = vld [vmem:[%s1 + $0xf8] sm:$0xff]
      %v278 = vunpack.c.l.b16 %v214
      %v279 = vunpack.c.h.b16 %v214
      %v280 = vunpack.c.l.b16 %v215
      %v281 = vunpack.c.h.b16 %v215
      %v282 = vunpack.c.l.b16 %v216
      %v283 = vunpack.c.h.b16 %v216
      %v284 = vunpack.c.l.b16 %v217
      %v285 = vunpack.c.h.b16 %v217
      %v286 = vunpack.c.l.b16 %v218
      %v287 = vunpack.c.h.b16 %v218
      %v288 = vunpack.c.l.b16 %v219
      %v289 = vunpack.c.h.b16 %v219
      %v290 = vunpack.c.l.b16 %v220
      %v291 = vunpack.c.h.b16 %v220
      %v292 = vunpack.c.l.b16 %v221
      %v293 = vunpack.c.h.b16 %v221
      %v294 = vunpack.c.l.b16 %v222
      %v295 = vunpack.c.h.b16 %v222
      %v296 = vunpack.c.l.b16 %v223
      %v297 = vunpack.c.h.b16 %v223
      %v298 = vunpack.c.l.b16 %v224
      %v299 = vunpack.c.h.b16 %v224
      %v300 = vunpack.c.l.b16 %v225
      %v301 = vunpack.c.h.b16 %v225
      %v302 = vunpack.c.l.b16 %v226
      %v303 = vunpack.c.h.b16 %v226
      %v304 = vunpack.c.l.b16 %v227
      %v305 = vunpack.c.h.b16 %v227
      %v306 = vunpack.c.l.b16 %v228
      %v307 = vunpack.c.h.b16 %v228
      %v308 = vunpack.c.l.b16 %v229
      %v309 = vunpack.c.h.b16 %v229
      %v310 = vunpack.c.l.b16 %v230
      %v311 = vunpack.c.h.b16 %v230
      %v312 = vunpack.c.l.b16 %v231
      %v313 = vunpack.c.h.b16 %v231
      %v314 = vunpack.c.l.b16 %v232
      %v315 = vunpack.c.h.b16 %v232
      %v316 = vunpack.c.l.b16 %v233
      %v317 = vunpack.c.h.b16 %v233
      %v318 = vunpack.c.l.b16 %v234
      %v319 = vunpack.c.h.b16 %v234
      %v320 = vunpack.c.l.b16 %v235
      %v321 = vunpack.c.h.b16 %v235
      %v322 = vunpack.c.l.b16 %v236
      %v323 = vunpack.c.h.b16 %v236
      %v324 = vunpack.c.l.b16 %v237
      %v325 = vunpack.c.h.b16 %v237
      %v326 = vunpack.c.l.b16 %v238
      %v327 = vunpack.c.h.b16 %v238
      %v328 = vunpack.c.l.b16 %v239
      %v329 = vunpack.c.h.b16 %v239
      %v330 = vunpack.c.l.b16 %v240
      %v331 = vunpack.c.h.b16 %v240
      %v332 = vunpack.c.l.b16 %v241
      %v333 = vunpack.c.h.b16 %v241
      %v334 = vunpack.c.l.b16 %v242
      %v335 = vunpack.c.h.b16 %v242
      %v336 = vunpack.c.l.b16 %v243
      %v337 = vunpack.c.h.b16 %v243
      %v338 = vunpack.c.l.b16 %v244
      %v339 = vunpack.c.h.b16 %v244
      %v340 = vunpack.c.l.b16 %v245
      %v341 = vunpack.c.h.b16 %v245
      %v342 = vpack.c.b16 %v282, %v278
      %v343 = vpack.c.b16 %v283, %v279
      %v344 = vpack.c.b16 %v284, %v280
      %v345 = vpack.c.b16 %v285, %v281
      %v346 = vpack.c.b16 %v290, %v286
      %v347 = vpack.c.b16 %v291, %v287
      %v348 = vpack.c.b16 %v292, %v288
      %v349 = vpack.c.b16 %v293, %v289
      %v350 = vpack.c.b16 %v298, %v294
      %v351 = vpack.c.b16 %v299, %v295
      %v352 = vpack.c.b16 %v300, %v296
      %v353 = vpack.c.b16 %v301, %v297
      %v354 = vpack.c.b16 %v306, %v302
      %v355 = vpack.c.b16 %v307, %v303
      %v356 = vpack.c.b16 %v308, %v304
      %v357 = vpack.c.b16 %v309, %v305
      %v358 = vpack.c.b16 %v314, %v310
      %v359 = vpack.c.b16 %v315, %v311
      %v360 = vpack.c.b16 %v316, %v312
      %v361 = vpack.c.b16 %v317, %v313
      %v362 = vpack.c.b16 %v322, %v318
      %v363 = vpack.c.b16 %v323, %v319
      %v364 = vpack.c.b16 %v324, %v320
      %v365 = vpack.c.b16 %v325, %v321
      %v366 = vpack.c.b16 %v330, %v326
      %v367 = vpack.c.b16 %v331, %v327
      %v368 = vpack.c.b16 %v332, %v328
      %v369 = vpack.c.b16 %v333, %v329
      %v370 = vpack.c.b16 %v338, %v334
      %v371 = vpack.c.b16 %v339, %v335
      %v372 = vpack.c.b16 %v340, %v336
      %v373 = vpack.c.b16 %v341, %v337
      %406 = vmatprep.subr.bf16.mxu0 %v343
      %407 = vmatpush1.bf16.msra.mxu0 %v342
      %408 = vmatprep.subr.bf16.mxu0 %v347
      %409 = vmatpush1.bf16.msra.mxu0 %v346
      %410 = vmatprep.subr.bf16.mxu0 %v351
      %411 = vmatpush1.bf16.msra.mxu0 %v350
      %412 = vmatprep.subr.bf16.mxu0 %v355
      %413 = vmatpush1.bf16.msra.mxu0 %v354
      %414 = vmatprep.subr.bf16.mxu0 %v359
      %415 = vmatpush1.bf16.msra.mxu0 %v358
      %416 = vmatprep.subr.bf16.mxu0 %v363
      %417 = vmatpush1.bf16.msra.mxu0 %v362
      %418 = vmatprep.subr.bf16.mxu0 %v367
      %419 = vmatpush1.bf16.msra.mxu0 %v366
      %420 = vmatprep.subr.bf16.mxu0 %v371
      %421 = vmatpush1.bf16.msra.mxu0 %v370
      %422 = vmatprep.subr.bf16.mxu0 0
      %423 = vmatpush1.bf16.msra.mxu0 0
      %424 = vmatprep.subr.bf16.mxu0 0
      %425 = vmatpush1.bf16.msra.mxu0 0
      %426 = vmatprep.subr.bf16.mxu0 0
      %427 = vmatpush1.bf16.msra.mxu0 0
      %428 = vmatprep.subr.bf16.mxu0 0
      %429 = vmatpush1.bf16.msra.mxu0 0
      %430 = vmatprep.subr.bf16.mxu0 0
      %431 = vmatpush1.bf16.msra.mxu0 0
      %432 = vmatprep.subr.bf16.mxu0 0
      %433 = vmatpush1.bf16.msra.mxu0 0
      %434 = vmatprep.subr.bf16.mxu0 0
      %435 = vmatpush1.bf16.msra.mxu0 0
      %436 = vmatprep.subr.bf16.mxu0 0
      %437 = vmatpush1.bf16.msra.mxu0 0
      %438 = vmatprep.mubr.bf16.mxu0 0
      %439 = vmatmul.mubr.bf16.gmra.mrb[0].mxu0 %v213
      %v440 = vpop.f32.mrb[0].mxu0
      %v441 = vadd.f32 0.0, %v440
      %v442 = vpop.f32.mrb[0].mxu0
      %v443 = vadd.f32 0.0, %v442
      %v444 = vpop.f32.mrb[0].mxu0
      %v445 = vpop.f32.mrb[0].mxu0
      %446 = vdwg.mxu0
      %447 = vmatprep.subr.bf16.mxu0 %v345
      %448 = vmatpush1.bf16.msra.mxu0 %v344
      %449 = vmatprep.subr.bf16.mxu0 %v349
      %450 = vmatpush1.bf16.msra.mxu0 %v348
      %451 = vmatprep.subr.bf16.mxu0 %v353
      %452 = vmatpush1.bf16.msra.mxu0 %v352
      %453 = vmatprep.subr.bf16.mxu0 %v357
      %454 = vmatpush1.bf16.msra.mxu0 %v356
      %455 = vmatprep.subr.bf16.mxu0 %v361
      %456 = vmatpush1.bf16.msra.mxu0 %v360
      %457 = vmatprep.subr.bf16.mxu0 %v365
      %458 = vmatpush1.bf16.msra.mxu0 %v364
      %459 = vmatprep.subr.bf16.mxu0 %v369
      %460 = vmatpush1.bf16.msra.mxu0 %v368
      %461 = vmatprep.subr.bf16.mxu0 %v373
      %462 = vmatpush1.bf16.msra.mxu0 %v372
      %463 = vmatprep.subr.bf16.mxu0 0
      %464 = vmatpush1.bf16.msra.mxu0 0
      %465 = vmatprep.subr.bf16.mxu0 0
      %466 = vmatpush1.bf16.msra.mxu0 0
      %467 = vmatprep.subr.bf16.mxu0 0
      %468 = vmatpush1.bf16.msra.mxu0 0
      %469 = vmatprep.subr.bf16.mxu0 0
      %470 = vmatpush1.bf16.msra.mxu0 0
      %471 = vmatprep.subr.bf16.mxu0 0
      %472 = vmatpush1.bf16.msra.mxu0 0
      %473 = vmatprep.subr.bf16.mxu0 0
      %474 = vmatpush1.bf16.msra.mxu0 0
      %475 = vmatprep.subr.bf16.mxu0 0
      %476 = vmatpush1.bf16.msra.mxu0 0
      %477 = vmatprep.subr.bf16.mxu0 0
      %478 = vmatpush1.bf16.msra.mxu0 0
      %479 = vmatprep.mubr.bf16.mxu0 0
      %480 = vmatmul.mubr.bf16.gmra.mrb[0].mxu0 %v213
      %v481 = vpop.f32.mrb[0].mxu0
      %v482 = vadd.f32 0.0, %v481
      %v483 = vpop.f32.mrb[0].mxu0
      %v484 = vadd.f32 0.0, %v483
      %v485 = vpop.f32.mrb[0].mxu0
      %v486 = vpop.f32.mrb[0].mxu0
      %487 = vdwg.mxu0
      %v488 = vld [vmem:[%s194] ss:$8 sm:$0xf]
      %v489 = vrot.slane %v441, 4
      %v490 = vadd.f32 %v441, %v489
      %v491 = vrot.slane %v490, 2
      %v492 = vadd.f32 %v490, %v491
      %v493 = vrot.slane %v492, 1
      %v494 = vadd.f32 %v492, %v493
      %v495 = vrot.slane %v443, 4
      %v496 = vadd.f32 %v443, %v495
      %v497 = vrot.slane %v496, 2
      %v498 = vadd.f32 %v496, %v497
      %v499 = vrot.slane %v498, 1
      %v500 = vadd.f32 %v498, %v499
      %v501 = vrot.slane %v482, 4
      %v502 = vadd.f32 %v482, %v501
      %v503 = vrot.slane %v502, 2
      %v504 = vadd.f32 %v502, %v503
      %v505 = vrot.slane %v504, 1
      %v506 = vadd.f32 %v504, %v505
      %v507 = vrot.slane %v484, 4
      %v508 = vadd.f32 %v484, %v507
      %v509 = vrot.slane %v508, 2
      %v510 = vadd.f32 %v508, %v509
      %v511 = vrot.slane %v510, 1
      %v512 = vadd.f32 %v510, %v511
      %v517 = vcombine.low %v494, %v500
      %v518 = vcombine.low %v506, %v512
      %v520 = vunpack.c.l.s4 1966171168
      %v521 = vunpack.c.0.s8 %v520
      %v522 = vlaneseq
      %v523 = vshrl.u32 %v522, 7
      %v524 = vsub.s32 %v521, %v523
      %v525 = vrot.slane %v517, %v524
      %v527 = vunpack.c.l.s4 1966171168
      %v528 = vunpack.c.0.s8 %v527
      %v529 = vlaneseq
      %v530 = vshrl.u32 %v529, 7
      %v531 = vsub.s32 %v528, %v530
      %v532 = vrot.slane %v518, %v531
      %v533 = vcombine.low %v525, %v532
      %v535 = vunpack.c.l.s4 1966171168
      %v536 = vunpack.c.0.s8 %v535
      %v537 = vlaneseq
      %v538 = vshrl.u32 %v537, 7
      %v539 = vsub.s32 %v536, %v538
      %v540 = vrot.slane %v533, %v539
      %v542 = vadd.f32 %v488, %v540
      %v543 = vlaneseq
      %vm544 = vcmp.ge.s32.totalorder %v543, 0
      %vm545 = vcmp.lt.s32.totalorder %v543, 512
      %vm546 = vmand %vm544, %vm545
      %547 = vst.msk [vmem:[%s194] ss:$8 sm:$0xf] %vm546, %v542
      %548 = vst.msk [vmem:[%s194] ss:$8 sm:$0x0] %vm546, %v542
      %v549 = vld [vmem:[%s199] ss:$8 sm:$0xf]
      %v550 = vmul.f32 %v441, %v441
      %v551 = vmul.f32 %v443, %v443
      %v552 = vmul.f32 %v482, %v482
      %v553 = vmul.f32 %v484, %v484
      %v554 = vrot.slane %v550, 4
      %v555 = vadd.f32 %v550, %v554
      %v556 = vrot.slane %v555, 2
      %v557 = vadd.f32 %v555, %v556
      %v558 = vrot.slane %v557, 1
      %v559 = vadd.f32 %v557, %v558
      %v560 = vrot.slane %v551, 4
      %v561 = vadd.f32 %v551, %v560
      %v562 = vrot.slane %v561, 2
      %v563 = vadd.f32 %v561, %v562
      %v564 = vrot.slane %v563, 1
      %v565 = vadd.f32 %v563, %v564
      %v566 = vrot.slane %v552, 4
      %v567 = vadd.f32 %v552, %v566
      %v568 = vrot.slane %v567, 2
      %v569 = vadd.f32 %v567, %v568
      %v570 = vrot.slane %v569, 1
      %v571 = vadd.f32 %v569, %v570
      %v572 = vrot.slane %v553, 4
      %v573 = vadd.f32 %v553, %v572
      %v574 = vrot.slane %v573, 2
      %v575 = vadd.f32 %v573, %v574
      %v576 = vrot.slane %v575, 1
      %v577 = vadd.f32 %v575, %v576
      %v582 = vcombine.low %v559, %v565
      %v583 = vcombine.low %v571, %v577
      %v585 = vunpack.c.l.s4 1966171168
      %v586 = vunpack.c.0.s8 %v585
      %v587 = vlaneseq
      %v588 = vshrl.u32 %v587, 7
      %v589 = vsub.s32 %v586, %v588
      %v590 = vrot.slane %v582, %v589
      %v592 = vunpack.c.l.s4 1966171168
      %v593 = vunpack.c.0.s8 %v592
      %v594 = vlaneseq
      %v595 = vshrl.u32 %v594, 7
      %v596 = vsub.s32 %v593, %v595
      %v597 = vrot.slane %v583, %v596
      %v598 = vcombine.low %v590, %v597
      %v600 = vunpack.c.l.s4 1966171168
      %v601 = vunpack.c.0.s8 %v600
      %v602 = vlaneseq
      %v603 = vshrl.u32 %v602, 7
      %v604 = vsub.s32 %v601, %v603
      %v605 = vrot.slane %v598, %v604
      %v607 = vadd.f32 %v549, %v605
      %608 = vst.msk [vmem:[%s199] ss:$8 sm:$0xf] %vm546, %v607
      %609 = vst.msk [vmem:[%s199] ss:$8 sm:$0x0] %vm546, %v607
      %p610 = scmp.lt.s32.totalorder %s19, 1
      %s611 = scalar_select %p610, %s19, 1
      %s612 = smul.addr %s611, 4
      %s613 = smul.addr %s612, 8
      %s614 = scalar_lea.vmem %s2, %s613
      %p615 = scmp.lt.s32.totalorder %s19, 1
      %s616 = scalar_select %p615, %s19, 1
      %s617 = smul.addr %s616, 4
      %s618 = smul.addr %s617, 8
      %s619 = scalar_lea.vmem %s3, %s618
      // Predicated region
      $region33: #{feedforward_net.3} parent=27 // pred_check
        %p620 = pneg %p94
      $region34: #{feedforward_net.3} parent=27 // pred_check_branch
        %622 = sbr.rel (%p620) target = $region36
      $region35: #{feedforward_net.3} parent=27 // pred_region
        _
      $region36: #{feedforward_net.3} parent=27 // pred_fallthru
        _
      // Predicated region
      $region37: #{feedforward_net.3} parent=27 // pred_check
        %p623 = pneg %p120
      $region38: #{feedforward_net.3} parent=27 // pred_check_branch
        %625 = sbr.rel (%p623) target = $region40
      $region39: #{feedforward_net.3} parent=27 // pred_region
        _
      $region40: #{feedforward_net.3} parent=27 // pred_fallthru
        _
    $region28: #{feedforward_net.3} parent=5 // pred_fallthru
      _
    %p626 = scmp.le.s32.totalorder 2, %s10
    // Predicated region
    $region41: #{feedforward_net.3} parent=5 // pred_check
      %p627 = pneg %p626
    $region42: #{feedforward_net.3} parent=5 // pred_check_branch
      %629 = sbr.rel (%p627) target = $region44
    $region43: #{feedforward_net.3} parent=5 // pred_region
      %s630 = ssub.s32 %s10, 2
      // Predicated region
      $region45: #{feedforward_net.3} parent=43 // pred_check
        %p631 = pneg %p100
      $region46: #{feedforward_net.3} parent=43 // pred_check_branch
        %633 = sbr.rel (%p631) target = $region48
      $region47: #{feedforward_net.3} parent=43 // pred_region
        %p634 = scmp.lt.s32.totalorder %s21, 1
        %s635 = scalar_select %p634, %s21, 1
        %s636 = smul.addr %s635, 4
        %s637 = smul.addr %s636, 8
        %s638 = scalar_lea.vmem %s2, %s637
      $region48: #{feedforward_net.3} parent=43 // pred_fallthru
        _
      // Predicated region
      $region49: #{feedforward_net.3} parent=43 // pred_check
        %p639 = pneg %p126
      $region50: #{feedforward_net.3} parent=43 // pred_check_branch
        %641 = sbr.rel (%p639) target = $region52
      $region51: #{feedforward_net.3} parent=43 // pred_region
        %p642 = scmp.lt.s32.totalorder %s21, 1
        %s643 = scalar_select %p642, %s21, 1
        %s644 = smul.addr %s643, 4
        %s645 = smul.addr %s644, 8
        %s646 = scalar_lea.vmem %s3, %s645
      $region52: #{feedforward_net.3} parent=43 // pred_fallthru
        _
    $region44: #{feedforward_net.3} parent=5 // pred_fallthru
      _
  $region6: #{feedforward_net.3} parent=0 // loop_footer
    %s14 = sadd.s32 1, %s10
  $region7: #{feedforward_net.3} parent=0 // loop_footer_branch
    %9 = sbr.rel target = $region3
  $region8: #{feedforward_net.3} parent=0 // loop_exit
    _

// kernel: feedforward_net.4
$region0: #{feedforward_net.4}
  #allocation0 [shape = 'u32[]', space=smem, size = 0x4, offset = 0x4, fixed_abs, tag = 'smem constant byte address 0x4 - core index']
  #allocation1 [shape = 'u32[144,128]{1,0:T(1,128)}', space=vmem, size = 0x12000, scoped, tag = 'internal scratch']
  %s0 = inlined_call_operand.vmem [shape: bf16[16,128], index: 0, kind: input, shape index: {}]
  %s1 = inlined_call_operand.vmem [shape: bf16[128,512], index: 1, kind: input, shape index: {}]
  %s2 = inlined_call_operand.vmem [shape: f32[1,512], index: 2, kind: input, shape index: {}]
  %s3 = inlined_call_operand.vmem [shape: f32[1,512], index: 3, kind: input, shape index: {}]
  %s4 = inlined_call_operand.vmem [shape: bf16[512,256], index: 4, kind: input, shape index: {}]
  %s5 = inlined_call_operand.vmem [shape: f32[16,256], index: 5, kind: output, shape index: {0}]
  %s6 = inlined_call_operand.vmem [shape: f32[16,256], index: 6, kind: output, shape index: {1}]
  %7 = xla_tuple %s5, %s6
  %s8 = sld [smem:[#allocation0]]
  $region73: #{feedforward_net.4} parent=0
    _
  %s10 = ssub.s32 1, %s8
  %s11 = scalar_select 0, %s10, %s8
  loop: start=0, step=1, limit=4
  $region2: #{feedforward_net.4} parent=0 // loop_pre_header
    _
  $region3: #{feedforward_net.4} parent=0 // loop_header
    %s13 = sphi 0, %s17
    %p14 = scmp.ge.s32.totalorder %s13, 4
    %s20 = sphi 0, %s32
    %s21 = sphi 0, %s28
    %s22 = sphi 0, %s20
    %s23 = sphi 0, %s21
    %s24 = sphi 0, %s22
    %s25 = sphi 0, %s23
    %s37 = sphi 0, %s39
    %s40 = sphi 0, %s37
    %s41 = sphi 0, %s40
    %s57 = sphi 0, %s41
    %s61 = sphi 0, %s61
    %s63 = sphi 0, %s61
    %s64 = sphi 0, %s63
    %s78 = sphi 0, %s64
    %s82 = sphi 0, %s82
    %s84 = sphi 0, %s82
    %s85 = sphi 0, %s84
    %s99 = sphi 0, %s85
    %s103 = sphi 0, %s103
    %s105 = sphi 0, %s103
    %s106 = sphi 0, %s105
    %s120 = sphi 0, %s106
    %s124 = sphi 0, %s124
    %s126 = sphi 0, %s124
    %s127 = sphi 0, %s126
    %s141 = sphi 0, %s127
    %s147 = sphi 0, %s149
    %s150 = sphi 0, %s147
    %s151 = sphi 0, %s150
    %s167 = sphi 0, %s151
    %s173 = sphi 0, %s175
    %s176 = sphi 0, %s173
    %s177 = sphi 0, %s176
    %s193 = sphi 0, %s177
  $region4: #{feedforward_net.4} parent=0 // loop_header_branch
    %16 = sbr.rel (%p14) target = $region8
  $region5: #{feedforward_net.4} parent=0 // loop_body
    %s18 = ssub.s32 %s13, 1
    %s19 = ssub.s32 %s13, 2
    %s26 = sadd.s32 1, %s21
    %p27 = scmp.ge.s32.totalorder %s26, 1
    %s28 = scalar_select %p27, 0, %s26
    %s29 = sadd.s32 1, %s20
    %s30 = scalar_select %p27, %s29, %s20
    %p31 = scmp.ge.s32.totalorder %s30, 2
    %s32 = scalar_select %p31, 0, %s30
    %s33 = sadd.s32 %s20, %s21
    %s34 = sadd.s32 %s32, %s28
    %s35 = ssub.s32 %s33, %s34
    %p36 = scmp.eq.s32.totalorder %s35, 0
    %s38 = sadd.s32 %s37, 1
    %s39 = scalar_select %p36, %s37, %s38
    %p42 = pneg %p36
    %p43 = scmp.eq.s32.totalorder %s13, 1
    %p44 = por %p42, %p43
    %p45 = scmp.ne.s32.totalorder %s37, %s40
    %p46 = scmp.eq.s32.totalorder %s13, 0
    %p47 = por %p45, %p46
    %p48 = scmp.ne.s32.totalorder %s37, %s40
    %p49 = scmp.eq.s32.totalorder %s18, 1
    %p50 = por %p48, %p49
    %p51 = scmp.ne.s32.totalorder %s40, %s41
    %p52 = scmp.eq.s32.totalorder %s18, 0
    %p53 = por %p51, %p52
    %p54 = scmp.ne.s32.totalorder %s40, %s41
    %p55 = scmp.eq.s32.totalorder %s19, 1
    %p56 = por %p54, %p55
    %p58 = scmp.ne.s32.totalorder %s41, %s57
    %p59 = scmp.eq.s32.totalorder %s19, 0
    %p60 = por %p58, %p59
    %s62 = sadd.s32 %s61, 1
    %p65 = scmp.eq.s32.totalorder %s13, 1
    %p66 = scmp.ne.s32.totalorder %s61, %s63
    %p67 = scmp.eq.s32.totalorder %s13, 0
    %p68 = por %p66, %p67
    %p69 = scmp.ne.s32.totalorder %s61, %s63
    %p70 = scmp.eq.s32.totalorder %s18, 1
    %p71 = por %p69, %p70
    %p72 = scmp.ne.s32.totalorder %s63, %s64
    %p73 = scmp.eq.s32.totalorder %s18, 0
    %p74 = por %p72, %p73
    %p75 = scmp.ne.s32.totalorder %s63, %s64
    %p76 = scmp.eq.s32.totalorder %s19, 1
    %p77 = por %p75, %p76
    %p79 = scmp.ne.s32.totalorder %s64, %s78
    %p80 = scmp.eq.s32.totalorder %s19, 0
    %p81 = por %p79, %p80
    %s83 = sadd.s32 %s82, 1
    %p86 = scmp.eq.s32.totalorder %s13, 1
    %p87 = scmp.ne.s32.totalorder %s82, %s84
    %p88 = scmp.eq.s32.totalorder %s13, 0
    %p89 = por %p87, %p88
    %p90 = scmp.ne.s32.totalorder %s82, %s84
    %p91 = scmp.eq.s32.totalorder %s18, 1
    %p92 = por %p90, %p91
    %p93 = scmp.ne.s32.totalorder %s84, %s85
    %p94 = scmp.eq.s32.totalorder %s18, 0
    %p95 = por %p93, %p94
    %p96 = scmp.ne.s32.totalorder %s84, %s85
    %p97 = scmp.eq.s32.totalorder %s19, 1
    %p98 = por %p96, %p97
    %p100 = scmp.ne.s32.totalorder %s85, %s99
    %p101 = scmp.eq.s32.totalorder %s19, 0
    %p102 = por %p100, %p101
    %s104 = sadd.s32 %s103, 1
    %p107 = scmp.eq.s32.totalorder %s13, 1
    %p108 = scmp.ne.s32.totalorder %s103, %s105
    %p109 = scmp.eq.s32.totalorder %s13, 0
    %p110 = por %p108, %p109
    %p111 = scmp.ne.s32.totalorder %s103, %s105
    %p112 = scmp.eq.s32.totalorder %s18, 1
    %p113 = por %p111, %p112
    %p114 = scmp.ne.s32.totalorder %s105, %s106
    %p115 = scmp.eq.s32.totalorder %s18, 0
    %p116 = por %p114, %p115
    %p117 = scmp.ne.s32.totalorder %s105, %s106
    %p118 = scmp.eq.s32.totalorder %s19, 1
    %p119 = por %p117, %p118
    %p121 = scmp.ne.s32.totalorder %s106, %s120
    %p122 = scmp.eq.s32.totalorder %s19, 0
    %p123 = por %p121, %p122
    %s125 = sadd.s32 %s124, 1
    %p128 = scmp.eq.s32.totalorder %s13, 1
    %p129 = scmp.ne.s32.totalorder %s124, %s126
    %p130 = scmp.eq.s32.totalorder %s13, 0
    %p131 = por %p129, %p130
    %p132 = scmp.ne.s32.totalorder %s124, %s126
    %p133 = scmp.eq.s32.totalorder %s18, 1
    %p134 = por %p132, %p133
    %p135 = scmp.ne.s32.totalorder %s126, %s127
    %p136 = scmp.eq.s32.totalorder %s18, 0
    %p137 = por %p135, %p136
    %p138 = scmp.ne.s32.totalorder %s126, %s127
    %p139 = scmp.eq.s32.totalorder %s19, 1
    %p140 = por %p138, %p139
    %p142 = scmp.ne.s32.totalorder %s127, %s141
    %p143 = scmp.eq.s32.totalorder %s19, 0
    %p144 = por %p142, %p143
    %s145 = ssub.s32 %s20, %s32
    %p146 = scmp.eq.s32.totalorder %s145, 0
    %s148 = sadd.s32 %s147, 1
    %s149 = scalar_select %p146, %s147, %s148
    %p152 = pneg %p146
    %p153 = scmp.eq.s32.totalorder %s13, 1
    %p154 = por %p152, %p153
    %p155 = scmp.ne.s32.totalorder %s147, %s150
    %p156 = scmp.eq.s32.totalorder %s13, 0
    %p157 = por %p155, %p156
    %p158 = scmp.ne.s32.totalorder %s147, %s150
    %p159 = scmp.eq.s32.totalorder %s18, 1
    %p160 = por %p158, %p159
    %p161 = scmp.ne.s32.totalorder %s150, %s151
    %p162 = scmp.eq.s32.totalorder %s18, 0
    %p163 = por %p161, %p162
    %p164 = scmp.ne.s32.totalorder %s150, %s151
    %p165 = scmp.eq.s32.totalorder %s19, 1
    %p166 = por %p164, %p165
    %p168 = scmp.ne.s32.totalorder %s151, %s167
    %p169 = scmp.eq.s32.totalorder %s19, 0
    %p170 = por %p168, %p169
    %s171 = ssub.s32 %s20, %s32
    %p172 = scmp.eq.s32.totalorder %s171, 0
    %s174 = sadd.s32 %s173, 1
    %s175 = scalar_select %p172, %s173, %s174
    %p178 = pneg %p172
    %p179 = scmp.eq.s32.totalorder %s13, 1
    %p180 = por %p178, %p179
    %p181 = scmp.ne.s32.totalorder %s173, %s176
    %p182 = scmp.eq.s32.totalorder %s13, 0
    %p183 = por %p181, %p182
    %p184 = scmp.ne.s32.totalorder %s173, %s176
    %p185 = scmp.eq.s32.totalorder %s18, 1
    %p186 = por %p184, %p185
    %p187 = scmp.ne.s32.totalorder %s176, %s177
    %p188 = scmp.eq.s32.totalorder %s18, 0
    %p189 = por %p187, %p188
    %p190 = scmp.ne.s32.totalorder %s176, %s177
    %p191 = scmp.eq.s32.totalorder %s19, 1
    %p192 = por %p190, %p191
    %p194 = scmp.ne.s32.totalorder %s177, %s193
    %p195 = scmp.eq.s32.totalorder %s19, 0
    %p196 = por %p194, %p195
    %p197 = scmp.le.s32.totalorder 1, %s13
    %p198 = scmp.lt.s32.totalorder %s13, 3
    %p199 = pnand %p197, %p198
    %p200 = pneg %p199
    // Predicated region
    $region9: #{feedforward_net.4} parent=5 // pred_check
      _
    $region10: #{feedforward_net.4} parent=5 // pred_check_branch
      %202 = sbr.rel (%p199) target = $region12
    $region11: #{feedforward_net.4} parent=5 // pred_region
      %s203 = ssub.s32 %s13, 1
      // Predicated region
      $region13: #{feedforward_net.4} parent=11 // pred_check
        %p204 = pneg %p74
      $region14: #{feedforward_net.4} parent=11 // pred_check_branch
        %206 = sbr.rel (%p204) target = $region16
      $region15: #{feedforward_net.4} parent=11 // pred_region
        _
      $region16: #{feedforward_net.4} parent=11 // pred_fallthru
        _
      // Predicated region
      $region17: #{feedforward_net.4} parent=11 // pred_check
        %p207 = pneg %p95
      $region18: #{feedforward_net.4} parent=11 // pred_check_branch
        %209 = sbr.rel (%p207) target = $region20
      $region19: #{feedforward_net.4} parent=11 // pred_region
        _
      $region20: #{feedforward_net.4} parent=11 // pred_fallthru
        _
      // Predicated region
      $region21: #{feedforward_net.4} parent=11 // pred_check
        %p210 = pneg %p116
      $region22: #{feedforward_net.4} parent=11 // pred_check_branch
        %212 = sbr.rel (%p210) target = $region24
      $region23: #{feedforward_net.4} parent=11 // pred_region
        _
      $region24: #{feedforward_net.4} parent=11 // pred_fallthru
        _
      // Predicated region
      $region25: #{feedforward_net.4} parent=11 // pred_check
        %p213 = pneg %p137
      $region26: #{feedforward_net.4} parent=11 // pred_check_branch
        %215 = sbr.rel (%p213) target = $region28
      $region27: #{feedforward_net.4} parent=11 // pred_region
        _
      $region28: #{feedforward_net.4} parent=11 // pred_fallthru
        _
    $region12: #{feedforward_net.4} parent=5 // pred_fallthru
      _
    %p216 = scmp.lt.s32.totalorder %s13, 2
    // Predicated region
    $region29: #{feedforward_net.4} parent=5 // pred_check
      %p217 = pneg %p216
    $region30: #{feedforward_net.4} parent=5 // pred_check_branch
      %219 = sbr.rel (%p217) target = $region32
    $region31: #{feedforward_net.4} parent=5 // pred_region
      // Predicated region
      $region33: #{feedforward_net.4} parent=31 // pred_check
        %p220 = pneg %p47
      $region34: #{feedforward_net.4} parent=31 // pred_check_branch
        %222 = sbr.rel (%p220) target = $region36
      $region35: #{feedforward_net.4} parent=31 // pred_region
        %s223 = sadd.s32 %s20, %s21
        %p224 = scmp.lt.s32.totalorder %s223, 1
        %s225 = scalar_select %p224, %s223, 1
        %s226 = smul.addr %s225, 4
        %s227 = scalar_lea.vmem %s0, %s226
        %s228 = sadd.s32 %s20, %s21
      $region36: #{feedforward_net.4} parent=31 // pred_fallthru
        _
    $region32: #{feedforward_net.4} parent=5 // pred_fallthru
      _
    %p229 = scmp.le.s32.totalorder 1, %s13
    %p230 = scmp.lt.s32.totalorder %s13, 3
    %p231 = pnand %p229, %p230
    %p232 = pneg %p231
    // Predicated region
    $region37: #{feedforward_net.4} parent=5 // pred_check
      _
    $region38: #{feedforward_net.4} parent=5 // pred_check_branch
      %234 = sbr.rel (%p231) target = $region40
    $region39: #{feedforward_net.4} parent=5 // pred_region
      %s235 = ssub.s32 %s13, 1
      %s236 = sadd.s32 %s22, %s23
      %p237 = scmp.lt.s32.totalorder %s236, 1
      %s238 = scalar_select %p237, %s236, 1
      %s239 = smul.addr %s238, 4
      %s240 = scalar_lea.vmem %s0, %s239
      %p241 = pneg %p53
      %p242 = pneg %p50
      %p243 = pneg %p74
      %p244 = pneg %p71
      %p245 = pneg %p95
      %p246 = pneg %p92
      %p247 = pneg %p116
      %p248 = pneg %p113
      %p249 = pneg %p137
      %p250 = pneg %p134
      %p251 = pneg %p163
      %p252 = pneg %p160
      %p253 = scmp.lt.s32.totalorder %s22, 1
      %s254 = scalar_select %p253, %s22, 1
      %s255 = smul.addr %s254, 2
      %s256 = smul.addr %s255, 8
      %s257 = scalar_lea.vmem %s5, %s256
      %p258 = pneg %p189
      %p259 = pneg %p186
      %p260 = scmp.lt.s32.totalorder %s22, 1
      %s261 = scalar_select %p260, %s22, 1
      %s262 = smul.addr %s261, 2
      %s263 = smul.addr %s262, 8
      %s264 = scalar_lea.vmem %s6, %s263
      %s265 = sadd.s32 %s22, %s23
      %p266 = scmp.lt.s32.totalorder %s265, 1
      %s267 = scalar_select %p266, %s265, 1
      %s268 = smul.addr %s267, 4
      %s269 = scalar_lea.vmem %s0, %s268
      %s270 = sadd.s32 %s22, %s23
      %p271 = scmp.lt.s32.totalorder %s22, 1
      %s272 = scalar_select %p271, %s22, 1
      %s273 = smul.addr %s272, 2
      %s274 = smul.addr %s273, 8
      %s275 = scalar_lea.vmem %s5, %s274
      %p276 = scmp.lt.s32.totalorder %s22, 1
      %s277 = scalar_select %p276, %s22, 1
      %s278 = smul.addr %s277, 2
      %s279 = smul.addr %s278, 8
      %s280 = scalar_lea.vmem %s6, %s279
      %s282 = sadd.s32 %s22, %s23
      %p283 = scmp.eq.s32.totalorder %s23, 0
      // Predicated region
      $region41: #{feedforward_net.4} parent=39 // pred_check
        %p284 = pneg %p283
      $region42: #{feedforward_net.4} parent=39 // pred_check_branch
        %286 = sbr.rel (%p284) target = $region44
      $region43: #{feedforward_net.4} parent=39 // pred_region
        %287 = vst [vmem:[%s275] sm:$0xff] 0.0
        %288 = vst [vmem:[%s275 + $0x8] sm:$0xff] 0.0
        %289 = vst [vmem:[%s280] sm:$0xff] 0.0
        %290 = vst [vmem:[%s280 + $0x8] sm:$0xff] 0.0
      $region44: #{feedforward_net.4} parent=39 // pred_fallthru
        _
      %v291 = vld [vmem:[%s269] sm:$0xf]
      %v292 = vld [vmem:[%s1] sm:$0xff]
      %v293 = vld [vmem:[%s1 + $0x8] sm:$0xff]
      %v294 = vld [vmem:[%s1 + $0x10] sm:$0xff]
      %v295 = vld [vmem:[%s1 + $0x18] sm:$0xff]
      %v296 = vld [vmem:[%s1 + $0x20] sm:$0xff]
      %v297 = vld [vmem:[%s1 + $0x28] sm:$0xff]
      %v298 = vld [vmem:[%s1 + $0x30] sm:$0xff]
      %v299 = vld [vmem:[%s1 + $0x38] sm:$0xff]
      %v300 = vld [vmem:[%s1 + $0x40] sm:$0xff]
      %v301 = vld [vmem:[%s1 + $0x48] sm:$0xff]
      %v302 = vld [vmem:[%s1 + $0x50] sm:$0xff]
      %v303 = vld [vmem:[%s1 + $0x58] sm:$0xff]
      %v304 = vld [vmem:[%s1 + $0x60] sm:$0xff]
      %v305 = vld [vmem:[%s1 + $0x68] sm:$0xff]
      %v306 = vld [vmem:[%s1 + $0x70] sm:$0xff]
      %v307 = vld [vmem:[%s1 + $0x78] sm:$0xff]
      %v308 = vld [vmem:[%s1 + $0x80] sm:$0xff]
      %v309 = vld [vmem:[%s1 + $0x88] sm:$0xff]
      %v310 = vld [vmem:[%s1 + $0x90] sm:$0xff]
      %v311 = vld [vmem:[%s1 + $0x98] sm:$0xff]
      %v312 = vld [vmem:[%s1 + $0xa0] sm:$0xff]
      %v313 = vld [vmem:[%s1 + $0xa8] sm:$0xff]
      %v314 = vld [vmem:[%s1 + $0xb0] sm:$0xff]
      %v315 = vld [vmem:[%s1 + $0xb8] sm:$0xff]
      %v316 = vld [vmem:[%s1 + $0xc0] sm:$0xff]
      %v317 = vld [vmem:[%s1 + $0xc8] sm:$0xff]
      %v318 = vld [vmem:[%s1 + $0xd0] sm:$0xff]
      %v319 = vld [vmem:[%s1 + $0xd8] sm:$0xff]
      %v320 = vld [vmem:[%s1 + $0xe0] sm:$0xff]
      %v321 = vld [vmem:[%s1 + $0xe8] sm:$0xff]
      %v322 = vld [vmem:[%s1 + $0xf0] sm:$0xff]
      %v323 = vld [vmem:[%s1 + $0xf8] sm:$0xff]
      %v356 = vunpack.c.l.b16 %v292
      %v357 = vunpack.c.h.b16 %v292
      %v358 = vunpack.c.l.b16 %v293
      %v359 = vunpack.c.h.b16 %v293
      %v360 = vunpack.c.l.b16 %v294
      %v361 = vunpack.c.h.b16 %v294
      %v362 = vunpack.c.l.b16 %v295
      %v363 = vunpack.c.h.b16 %v295
      %v364 = vunpack.c.l.b16 %v296
      %v365 = vunpack.c.h.b16 %v296
      %v366 = vunpack.c.l.b16 %v297
      %v367 = vunpack.c.h.b16 %v297
      %v368 = vunpack.c.l.b16 %v298
      %v369 = vunpack.c.h.b16 %v298
      %v370 = vunpack.c.l.b16 %v299
      %v371 = vunpack.c.h.b16 %v299
      %v372 = vunpack.c.l.b16 %v300
      %v373 = vunpack.c.h.b16 %v300
      %v374 = vunpack.c.l.b16 %v301
      %v375 = vunpack.c.h.b16 %v301
      %v376 = vunpack.c.l.b16 %v302
      %v377 = vunpack.c.h.b16 %v302
      %v378 = vunpack.c.l.b16 %v303
      %v379 = vunpack.c.h.b16 %v303
      %v380 = vunpack.c.l.b16 %v304
      %v381 = vunpack.c.h.b16 %v304
      %v382 = vunpack.c.l.b16 %v305
      %v383 = vunpack.c.h.b16 %v305
      %v384 = vunpack.c.l.b16 %v306
      %v385 = vunpack.c.h.b16 %v306
      %v386 = vunpack.c.l.b16 %v307
      %v387 = vunpack.c.h.b16 %v307
      %v388 = vunpack.c.l.b16 %v308
      %v389 = vunpack.c.h.b16 %v308
      %v390 = vunpack.c.l.b16 %v309
      %v391 = vunpack.c.h.b16 %v309
      %v392 = vunpack.c.l.b16 %v310
      %v393 = vunpack.c.h.b16 %v310
      %v394 = vunpack.c.l.b16 %v311
      %v395 = vunpack.c.h.b16 %v311
      %v396 = vunpack.c.l.b16 %v312
      %v397 = vunpack.c.h.b16 %v312
      %v398 = vunpack.c.l.b16 %v313
      %v399 = vunpack.c.h.b16 %v313
      %v400 = vunpack.c.l.b16 %v314
      %v401 = vunpack.c.h.b16 %v314
      %v402 = vunpack.c.l.b16 %v315
      %v403 = vunpack.c.h.b16 %v315
      %v404 = vunpack.c.l.b16 %v316
      %v405 = vunpack.c.h.b16 %v316
      %v406 = vunpack.c.l.b16 %v317
      %v407 = vunpack.c.h.b16 %v317
      %v408 = vunpack.c.l.b16 %v318
      %v409 = vunpack.c.h.b16 %v318
      %v410 = vunpack.c.l.b16 %v319
      %v411 = vunpack.c.h.b16 %v319
      %v412 = vunpack.c.l.b16 %v320
      %v413 = vunpack.c.h.b16 %v320
      %v414 = vunpack.c.l.b16 %v321
      %v415 = vunpack.c.h.b16 %v321
      %v416 = vunpack.c.l.b16 %v322
      %v417 = vunpack.c.h.b16 %v322
      %v418 = vunpack.c.l.b16 %v323
      %v419 = vunpack.c.h.b16 %v323
      %v420 = vpack.c.b16 %v360, %v356
      %v421 = vpack.c.b16 %v361, %v357
      %v422 = vpack.c.b16 %v362, %v358
      %v423 = vpack.c.b16 %v363, %v359
      %v424 = vpack.c.b16 %v368, %v364
      %v425 = vpack.c.b16 %v369, %v365
      %v426 = vpack.c.b16 %v370, %v366
      %v427 = vpack.c.b16 %v371, %v367
      %v428 = vpack.c.b16 %v376, %v372
      %v429 = vpack.c.b16 %v377, %v373
      %v430 = vpack.c.b16 %v378, %v374
      %v431 = vpack.c.b16 %v379, %v375
      %v432 = vpack.c.b16 %v384, %v380
      %v433 = vpack.c.b16 %v385, %v381
      %v434 = vpack.c.b16 %v386, %v382
      %v435 = vpack.c.b16 %v387, %v383
      %v436 = vpack.c.b16 %v392, %v388
      %v437 = vpack.c.b16 %v393, %v389
      %v438 = vpack.c.b16 %v394, %v390
      %v439 = vpack.c.b16 %v395, %v391
      %v440 = vpack.c.b16 %v400, %v396
      %v441 = vpack.c.b16 %v401, %v397
      %v442 = vpack.c.b16 %v402, %v398
      %v443 = vpack.c.b16 %v403, %v399
      %v444 = vpack.c.b16 %v408, %v404
      %v445 = vpack.c.b16 %v409, %v405
      %v446 = vpack.c.b16 %v410, %v406
      %v447 = vpack.c.b16 %v411, %v407
      %v448 = vpack.c.b16 %v416, %v412
      %v449 = vpack.c.b16 %v417, %v413
      %v450 = vpack.c.b16 %v418, %v414
      %v451 = vpack.c.b16 %v419, %v415
      %484 = vmatprep.subr.bf16.mxu0 %v421
      %485 = vmatpush1.bf16.msra.mxu0 %v420
      %486 = vmatprep.subr.bf16.mxu0 %v425
      %487 = vmatpush1.bf16.msra.mxu0 %v424
      %488 = vmatprep.subr.bf16.mxu0 %v429
      %489 = vmatpush1.bf16.msra.mxu0 %v428
      %490 = vmatprep.subr.bf16.mxu0 %v433
      %491 = vmatpush1.bf16.msra.mxu0 %v432
      %492 = vmatprep.subr.bf16.mxu0 %v437
      %493 = vmatpush1.bf16.msra.mxu0 %v436
      %494 = vmatprep.subr.bf16.mxu0 %v441
      %495 = vmatpush1.bf16.msra.mxu0 %v440
      %496 = vmatprep.subr.bf16.mxu0 %v445
      %497 = vmatpush1.bf16.msra.mxu0 %v444
      %498 = vmatprep.subr.bf16.mxu0 %v449
      %499 = vmatpush1.bf16.msra.mxu0 %v448
      %500 = vmatprep.subr.bf16.mxu0 0
      %501 = vmatpush1.bf16.msra.mxu0 0
      %502 = vmatprep.subr.bf16.mxu0 0
      %503 = vmatpush1.bf16.msra.mxu0 0
      %504 = vmatprep.subr.bf16.mxu0 0
      %505 = vmatpush1.bf16.msra.mxu0 0
      %506 = vmatprep.subr.bf16.mxu0 0
      %507 = vmatpush1.bf16.msra.mxu0 0
      %508 = vmatprep.subr.bf16.mxu0 0
      %509 = vmatpush1.bf16.msra.mxu0 0
      %510 = vmatprep.subr.bf16.mxu0 0
      %511 = vmatpush1.bf16.msra.mxu0 0
      %512 = vmatprep.subr.bf16.mxu0 0
      %513 = vmatpush1.bf16.msra.mxu0 0
      %514 = vmatprep.subr.bf16.mxu0 0
      %515 = vmatpush1.bf16.msra.mxu0 0
      %516 = vmatprep.mubr.bf16.mxu0 0
      %517 = vmatmul.mubr.bf16.gmra.mrb[0].mxu0 %v291
      %v518 = vpop.f32.mrb[0].mxu0
      %v519 = vadd.f32 0.0, %v518
      %v520 = vpop.f32.mrb[0].mxu0
      %v521 = vadd.f32 0.0, %v520
      %v522 = vpop.f32.mrb[0].mxu0
      %v523 = vpop.f32.mrb[0].mxu0
      %524 = vdwg.mxu0
      %525 = vmatprep.subr.bf16.mxu0 %v423
      %526 = vmatpush1.bf16.msra.mxu0 %v422
      %527 = vmatprep.subr.bf16.mxu0 %v427
      %528 = vmatpush1.bf16.msra.mxu0 %v426
      %529 = vmatprep.subr.bf16.mxu0 %v431
      %530 = vmatpush1.bf16.msra.mxu0 %v430
      %531 = vmatprep.subr.bf16.mxu0 %v435
      %532 = vmatpush1.bf16.msra.mxu0 %v434
      %533 = vmatprep.subr.bf16.mxu0 %v439
      %534 = vmatpush1.bf16.msra.mxu0 %v438
      %535 = vmatprep.subr.bf16.mxu0 %v443
      %536 = vmatpush1.bf16.msra.mxu0 %v442
      %537 = vmatprep.subr.bf16.mxu0 %v447
      %538 = vmatpush1.bf16.msra.mxu0 %v446
      %539 = vmatprep.subr.bf16.mxu0 %v451
      %540 = vmatpush1.bf16.msra.mxu0 %v450
      %541 = vmatprep.subr.bf16.mxu0 0
      %542 = vmatpush1.bf16.msra.mxu0 0
      %543 = vmatprep.subr.bf16.mxu0 0
      %544 = vmatpush1.bf16.msra.mxu0 0
      %545 = vmatprep.subr.bf16.mxu0 0
      %546 = vmatpush1.bf16.msra.mxu0 0
      %547 = vmatprep.subr.bf16.mxu0 0
      %548 = vmatpush1.bf16.msra.mxu0 0
      %549 = vmatprep.subr.bf16.mxu0 0
      %550 = vmatpush1.bf16.msra.mxu0 0
      %551 = vmatprep.subr.bf16.mxu0 0
      %552 = vmatpush1.bf16.msra.mxu0 0
      %553 = vmatprep.subr.bf16.mxu0 0
      %554 = vmatpush1.bf16.msra.mxu0 0
      %555 = vmatprep.subr.bf16.mxu0 0
      %556 = vmatpush1.bf16.msra.mxu0 0
      %557 = vmatprep.mubr.bf16.mxu0 0
      %558 = vmatmul.mubr.bf16.gmra.mrb[0].mxu0 %v291
      %v559 = vpop.f32.mrb[0].mxu0
      %v560 = vadd.f32 0.0, %v559
      %v561 = vpop.f32.mrb[0].mxu0
      %v562 = vadd.f32 0.0, %v561
      %v563 = vpop.f32.mrb[0].mxu0
      %v564 = vpop.f32.mrb[0].mxu0
      %565 = vdwg.mxu0
      %v566 = vld [vmem:[%s2] sm:$0xf]
      %v568 = vlaneseq
      %v569 = vshrl.u32 %v568, 7
      %v570 = vsub.s32 0, %v569
      %v571 = vrot.slane %v566, %v570
      %v572 = vlaneseq
      %v573 = vshrl.u32 %v572, 7
      %v574 = vsub.s32 1, %v573
      %v575 = vrot.slane %v566, %v574
      %v576 = vlaneseq
      %v577 = vshrl.u32 %v576, 7
      %v578 = vsub.s32 2, %v577
      %v579 = vrot.slane %v566, %v578
      %v580 = vlaneseq
      %v581 = vshrl.u32 %v580, 7
      %v582 = vsub.s32 3, %v581
      %v583 = vrot.slane %v566, %v582
      %v588 = vmul.f32 %v519, %v571
      %v589 = vmul.f32 %v521, %v575
      %v590 = vmul.f32 %v560, %v579
      %v591 = vmul.f32 %v562, %v583
      %v592 = vld [vmem:[%s3] sm:$0xf]
      %v594 = vlaneseq
      %v595 = vshrl.u32 %v594, 7
      %v596 = vsub.s32 0, %v595
      %v597 = vrot.slane %v592, %v596
      %v598 = vlaneseq
      %v599 = vshrl.u32 %v598, 7
      %v600 = vsub.s32 1, %v599
      %v601 = vrot.slane %v592, %v600
      %v602 = vlaneseq
      %v603 = vshrl.u32 %v602, 7
      %v604 = vsub.s32 2, %v603
      %v605 = vrot.slane %v592, %v604
      %v606 = vlaneseq
      %v607 = vshrl.u32 %v606, 7
      %v608 = vsub.s32 3, %v607
      %v609 = vrot.slane %v592, %v608
      %v614 = vadd.f32 %v588, %v597
      %v615 = vadd.f32 %v589, %v601
      %v616 = vadd.f32 %v590, %v605
      %v617 = vadd.f32 %v591, %v609
      %v618 = vmax.f32 %v614, 0.0
      %v619 = vmax.f32 %v615, 0.0
      %v620 = vmax.f32 %v616, 0.0
      %v621 = vmax.f32 %v617, 0.0
      %v622 = vpack.c.bf16 %v618, %v618
      %v623 = vpack.c.bf16 %v619, %v619
      %v624 = vpack.c.bf16 %v620, %v620
      %v625 = vpack.c.bf16 %v621, %v621
      %v626 = vld [vmem:[%s4] sm:$0xff]
      %v627 = vld [vmem:[%s4 + $0x8] sm:$0xff]
      %v628 = vld [vmem:[%s4 + $0x10] sm:$0xff]
      %v629 = vld [vmem:[%s4 + $0x18] sm:$0xff]
      %v630 = vld [vmem:[%s4 + $0x20] sm:$0xff]
      %v631 = vld [vmem:[%s4 + $0x28] sm:$0xff]
      %v632 = vld [vmem:[%s4 + $0x30] sm:$0xff]
      %v633 = vld [vmem:[%s4 + $0x38] sm:$0xff]
      %v634 = vld [vmem:[%s4 + $0x40] sm:$0xff]
      %v635 = vld [vmem:[%s4 + $0x48] sm:$0xff]
      %v636 = vld [vmem:[%s4 + $0x50] sm:$0xff]
      %v637 = vld [vmem:[%s4 + $0x58] sm:$0xff]
      %v638 = vld [vmem:[%s4 + $0x60] sm:$0xff]
      %v639 = vld [vmem:[%s4 + $0x68] sm:$0xff]
      %v640 = vld [vmem:[%s4 + $0x70] sm:$0xff]
      %v641 = vld [vmem:[%s4 + $0x78] sm:$0xff]
      %v642 = vld [vmem:[%s4 + $0x80] sm:$0xff]
      %v643 = vld [vmem:[%s4 + $0x88] sm:$0xff]
      %v644 = vld [vmem:[%s4 + $0x90] sm:$0xff]
      %v645 = vld [vmem:[%s4 + $0x98] sm:$0xff]
      %v646 = vld [vmem:[%s4 + $0xa0] sm:$0xff]
      %v647 = vld [vmem:[%s4 + $0xa8] sm:$0xff]
      %v648 = vld [vmem:[%s4 + $0xb0] sm:$0xff]
      %v649 = vld [vmem:[%s4 + $0xb8] sm:$0xff]
      %v650 = vld [vmem:[%s4 + $0xc0] sm:$0xff]
      %v651 = vld [vmem:[%s4 + $0xc8] sm:$0xff]
      %v652 = vld [vmem:[%s4 + $0xd0] sm:$0xff]
      %v653 = vld [vmem:[%s4 + $0xd8] sm:$0xff]
      %v654 = vld [vmem:[%s4 + $0xe0] sm:$0xff]
      %v655 = vld [vmem:[%s4 + $0xe8] sm:$0xff]
      %v656 = vld [vmem:[%s4 + $0xf0] sm:$0xff]
      %v657 = vld [vmem:[%s4 + $0xf8] sm:$0xff]
      %v658 = vld [vmem:[%s4 + $0x100] sm:$0xff]
      %v659 = vld [vmem:[%s4 + $0x108] sm:$0xff]
      %v660 = vld [vmem:[%s4 + $0x110] sm:$0xff]
      %v661 = vld [vmem:[%s4 + $0x118] sm:$0xff]
      %v662 = vld [vmem:[%s4 + $0x120] sm:$0xff]
      %v663 = vld [vmem:[%s4 + $0x128] sm:$0xff]
      %v664 = vld [vmem:[%s4 + $0x130] sm:$0xff]
      %v665 = vld [vmem:[%s4 + $0x138] sm:$0xff]
      %v666 = vld [vmem:[%s4 + $0x140] sm:$0xff]
      %v667 = vld [vmem:[%s4 + $0x148] sm:$0xff]
      %v668 = vld [vmem:[%s4 + $0x150] sm:$0xff]
      %v669 = vld [vmem:[%s4 + $0x158] sm:$0xff]
      %v670 = vld [vmem:[%s4 + $0x160] sm:$0xff]
      %v671 = vld [vmem:[%s4 + $0x168] sm:$0xff]
      %v672 = vld [vmem:[%s4 + $0x170] sm:$0xff]
      %v673 = vld [vmem:[%s4 + $0x178] sm:$0xff]
      %v674 = vld [vmem:[%s4 + $0x180] sm:$0xff]
      %v675 = vld [vmem:[%s4 + $0x188] sm:$0xff]
      %v676 = vld [vmem:[%s4 + $0x190] sm:$0xff]
      %v677 = vld [vmem:[%s4 + $0x198] sm:$0xff]
      %v678 = vld [vmem:[%s4 + $0x1a0] sm:$0xff]
      %v679 = vld [vmem:[%s4 + $0x1a8] sm:$0xff]
      %v680 = vld [vmem:[%s4 + $0x1b0] sm:$0xff]
      %v681 = vld [vmem:[%s4 + $0x1b8] sm:$0xff]
      %v682 = vld [vmem:[%s4 + $0x1c0] sm:$0xff]
      %v683 = vld [vmem:[%s4 + $0x1c8] sm:$0xff]
      %v684 = vld [vmem:[%s4 + $0x1d0] sm:$0xff]
      %v685 = vld [vmem:[%s4 + $0x1d8] sm:$0xff]
      %v686 = vld [vmem:[%s4 + $0x1e0] sm:$0xff]
      %v687 = vld [vmem:[%s4 + $0x1e8] sm:$0xff]
      %v688 = vld [vmem:[%s4 + $0x1f0] sm:$0xff]
      %v689 = vld [vmem:[%s4 + $0x1f8] sm:$0xff]
      %v754 = vunpack.c.l.b16 %v626
      %v755 = vunpack.c.h.b16 %v626
      %v756 = vunpack.c.l.b16 %v627
      %v757 = vunpack.c.h.b16 %v627
      %v758 = vunpack.c.l.b16 %v628
      %v759 = vunpack.c.h.b16 %v628
      %v760 = vunpack.c.l.b16 %v629
      %v761 = vunpack.c.h.b16 %v629
      %v762 = vunpack.c.l.b16 %v630
      %v763 = vunpack.c.h.b16 %v630
      %v764 = vunpack.c.l.b16 %v631
      %v765 = vunpack.c.h.b16 %v631
      %v766 = vunpack.c.l.b16 %v632
      %v767 = vunpack.c.h.b16 %v632
      %v768 = vunpack.c.l.b16 %v633
      %v769 = vunpack.c.h.b16 %v633
      %v770 = vunpack.c.l.b16 %v634
      %v771 = vunpack.c.h.b16 %v634
      %v772 = vunpack.c.l.b16 %v635
      %v773 = vunpack.c.h.b16 %v635
      %v774 = vunpack.c.l.b16 %v636
      %v775 = vunpack.c.h.b16 %v636
      %v776 = vunpack.c.l.b16 %v637
      %v777 = vunpack.c.h.b16 %v637
      %v778 = vunpack.c.l.b16 %v638
      %v779 = vunpack.c.h.b16 %v638
      %v780 = vunpack.c.l.b16 %v639
      %v781 = vunpack.c.h.b16 %v639
      %v782 = vunpack.c.l.b16 %v640
      %v783 = vunpack.c.h.b16 %v640
      %v784 = vunpack.c.l.b16 %v641
      %v785 = vunpack.c.h.b16 %v641
      %v786 = vunpack.c.l.b16 %v642
      %v787 = vunpack.c.h.b16 %v642
      %v788 = vunpack.c.l.b16 %v643
      %v789 = vunpack.c.h.b16 %v643
      %v790 = vunpack.c.l.b16 %v644
      %v791 = vunpack.c.h.b16 %v644
      %v792 = vunpack.c.l.b16 %v645
      %v793 = vunpack.c.h.b16 %v645
      %v794 = vunpack.c.l.b16 %v646
      %v795 = vunpack.c.h.b16 %v646
      %v796 = vunpack.c.l.b16 %v647
      %v797 = vunpack.c.h.b16 %v647
      %v798 = vunpack.c.l.b16 %v648
      %v799 = vunpack.c.h.b16 %v648
      %v800 = vunpack.c.l.b16 %v649
      %v801 = vunpack.c.h.b16 %v649
      %v802 = vunpack.c.l.b16 %v650
      %v803 = vunpack.c.h.b16 %v650
      %v804 = vunpack.c.l.b16 %v651
      %v805 = vunpack.c.h.b16 %v651
      %v806 = vunpack.c.l.b16 %v652
      %v807 = vunpack.c.h.b16 %v652
      %v808 = vunpack.c.l.b16 %v653
      %v809 = vunpack.c.h.b16 %v653
      %v810 = vunpack.c.l.b16 %v654
      %v811 = vunpack.c.h.b16 %v654
      %v812 = vunpack.c.l.b16 %v655
      %v813 = vunpack.c.h.b16 %v655
      %v814 = vunpack.c.l.b16 %v656
      %v815 = vunpack.c.h.b16 %v656
      %v816 = vunpack.c.l.b16 %v657
      %v817 = vunpack.c.h.b16 %v657
      %v818 = vunpack.c.l.b16 %v658
      %v819 = vunpack.c.h.b16 %v658
      %v820 = vunpack.c.l.b16 %v659
      %v821 = vunpack.c.h.b16 %v659
      %v822 = vunpack.c.l.b16 %v660
      %v823 = vunpack.c.h.b16 %v660
      %v824 = vunpack.c.l.b16 %v661
      %v825 = vunpack.c.h.b16 %v661
      %v826 = vunpack.c.l.b16 %v662
      %v827 = vunpack.c.h.b16 %v662
      %v828 = vunpack.c.l.b16 %v663
      %v829 = vunpack.c.h.b16 %v663
      %v830 = vunpack.c.l.b16 %v664
      %v831 = vunpack.c.h.b16 %v664
      %v832 = vunpack.c.l.b16 %v665
      %v833 = vunpack.c.h.b16 %v665
      %v834 = vunpack.c.l.b16 %v666
      %v835 = vunpack.c.h.b16 %v666
      %v836 = vunpack.c.l.b16 %v667
      %v837 = vunpack.c.h.b16 %v667
      %v838 = vunpack.c.l.b16 %v668
      %v839 = vunpack.c.h.b16 %v668
      %v840 = vunpack.c.l.b16 %v669
      %v841 = vunpack.c.h.b16 %v669
      %v842 = vunpack.c.l.b16 %v670
      %v843 = vunpack.c.h.b16 %v670
      %v844 = vunpack.c.l.b16 %v671
      %v845 = vunpack.c.h.b16 %v671
      %v846 = vunpack.c.l.b16 %v672
      %v847 = vunpack.c.h.b16 %v672
      %v848 = vunpack.c.l.b16 %v673
      %v849 = vunpack.c.h.b16 %v673
      %v850 = vunpack.c.l.b16 %v674
      %v851 = vunpack.c.h.b16 %v674
      %v852 = vunpack.c.l.b16 %v675
      %v853 = vunpack.c.h.b16 %v675
      %v854 = vunpack.c.l.b16 %v676
      %v855 = vunpack.c.h.b16 %v676
      %v856 = vunpack.c.l.b16 %v677
      %v857 = vunpack.c.h.b16 %v677
      %v858 = vunpack.c.l.b16 %v678
      %v859 = vunpack.c.h.b16 %v678
      %v860 = vunpack.c.l.b16 %v679
      %v861 = vunpack.c.h.b16 %v679
      %v862 = vunpack.c.l.b16 %v680
      %v863 = vunpack.c.h.b16 %v680
      %v864 = vunpack.c.l.b16 %v681
      %v865 = vunpack.c.h.b16 %v681
      %v866 = vunpack.c.l.b16 %v682
      %v867 = vunpack.c.h.b16 %v682
      %v868 = vunpack.c.l.b16 %v683
      %v869 = vunpack.c.h.b16 %v683
      %v870 = vunpack.c.l.b16 %v684
      %v871 = vunpack.c.h.b16 %v684
      %v872 = vunpack.c.l.b16 %v685
      %v873 = vunpack.c.h.b16 %v685
      %v874 = vunpack.c.l.b16 %v686
      %v875 = vunpack.c.h.b16 %v686
      %v876 = vunpack.c.l.b16 %v687
      %v877 = vunpack.c.h.b16 %v687
      %v878 = vunpack.c.l.b16 %v688
      %v879 = vunpack.c.h.b16 %v688
      %v880 = vunpack.c.l.b16 %v689
      %v881 = vunpack.c.h.b16 %v689
      %v882 = vpack.c.b16 %v756, %v754
      %v883 = vpack.c.b16 %v757, %v755
      %v884 = vpack.c.b16 %v760, %v758
      %v885 = vpack.c.b16 %v761, %v759
      %v886 = vpack.c.b16 %v764, %v762
      %v887 = vpack.c.b16 %v765, %v763
      %v888 = vpack.c.b16 %v768, %v766
      %v889 = vpack.c.b16 %v769, %v767
      %v890 = vpack.c.b16 %v772, %v770
      %v891 = vpack.c.b16 %v773, %v771
      %v892 = vpack.c.b16 %v776, %v774
      %v893 = vpack.c.b16 %v777, %v775
      %v894 = vpack.c.b16 %v780, %v778
      %v895 = vpack.c.b16 %v781, %v779
      %v896 = vpack.c.b16 %v784, %v782
      %v897 = vpack.c.b16 %v785, %v783
      %v898 = vpack.c.b16 %v788, %v786
      %v899 = vpack.c.b16 %v789, %v787
      %v900 = vpack.c.b16 %v792, %v790
      %v901 = vpack.c.b16 %v793, %v791
      %v902 = vpack.c.b16 %v796, %v794
      %v903 = vpack.c.b16 %v797, %v795
      %v904 = vpack.c.b16 %v800, %v798
      %v905 = vpack.c.b16 %v801, %v799
      %v906 = vpack.c.b16 %v804, %v802
      %v907 = vpack.c.b16 %v805, %v803
      %v908 = vpack.c.b16 %v808, %v806
      %v909 = vpack.c.b16 %v809, %v807
      %v910 = vpack.c.b16 %v812, %v810
      %v911 = vpack.c.b16 %v813, %v811
      %v912 = vpack.c.b16 %v816, %v814
      %v913 = vpack.c.b16 %v817, %v815
      %v914 = vpack.c.b16 %v820, %v818
      %v915 = vpack.c.b16 %v821, %v819
      %v916 = vpack.c.b16 %v824, %v822
      %v917 = vpack.c.b16 %v825, %v823
      %v918 = vpack.c.b16 %v828, %v826
      %v919 = vpack.c.b16 %v829, %v827
      %v920 = vpack.c.b16 %v832, %v830
      %v921 = vpack.c.b16 %v833, %v831
      %v922 = vpack.c.b16 %v836, %v834
      %v923 = vpack.c.b16 %v837, %v835
      %v924 = vpack.c.b16 %v840, %v838
      %v925 = vpack.c.b16 %v841, %v839
      %v926 = vpack.c.b16 %v844, %v842
      %v927 = vpack.c.b16 %v845, %v843
      %v928 = vpack.c.b16 %v848, %v846
      %v929 = vpack.c.b16 %v849, %v847
      %v930 = vpack.c.b16 %v852, %v850
      %v931 = vpack.c.b16 %v853, %v851
      %v932 = vpack.c.b16 %v856, %v854
      %v933 = vpack.c.b16 %v857, %v855
      %v934 = vpack.c.b16 %v860, %v858
      %v935 = vpack.c.b16 %v861, %v859
      %v936 = vpack.c.b16 %v864, %v862
      %v937 = vpack.c.b16 %v865, %v863
      %v938 = vpack.c.b16 %v868, %v866
      %v939 = vpack.c.b16 %v869, %v867
      %v940 = vpack.c.b16 %v872, %v870
      %v941 = vpack.c.b16 %v873, %v871
      %v942 = vpack.c.b16 %v876, %v874
      %v943 = vpack.c.b16 %v877, %v875
      %v944 = vpack.c.b16 %v880, %v878
      %v945 = vpack.c.b16 %v881, %v879
      %1010 = vmatprep.subr.bf16.mxu0 %v883
      %1011 = vmatpush1.bf16.msra.mxu0 %v882
      %1012 = vmatprep.subr.bf16.mxu0 %v885
      %1013 = vmatpush1.bf16.msra.mxu0 %v884
      %1014 = vmatprep.subr.bf16.mxu0 %v887
      %1015 = vmatpush1.bf16.msra.mxu0 %v886
      %1016 = vmatprep.subr.bf16.mxu0 %v889
      %1017 = vmatpush1.bf16.msra.mxu0 %v888
      %1018 = vmatprep.subr.bf16.mxu0 %v891
      %1019 = vmatpush1.bf16.msra.mxu0 %v890
      %1020 = vmatprep.subr.bf16.mxu0 %v893
      %1021 = vmatpush1.bf16.msra.mxu0 %v892
      %1022 = vmatprep.subr.bf16.mxu0 %v895
      %1023 = vmatpush1.bf16.msra.mxu0 %v894
      %1024 = vmatprep.subr.bf16.mxu0 %v897
      %1025 = vmatpush1.bf16.msra.mxu0 %v896
      %1026 = vmatprep.subr.bf16.mxu0 %v899
      %1027 = vmatpush1.bf16.msra.mxu0 %v898
      %1028 = vmatprep.subr.bf16.mxu0 %v901
      %1029 = vmatpush1.bf16.msra.mxu0 %v900
      %1030 = vmatprep.subr.bf16.mxu0 %v903
      %1031 = vmatpush1.bf16.msra.mxu0 %v902
      %1032 = vmatprep.subr.bf16.mxu0 %v905
      %1033 = vmatpush1.bf16.msra.mxu0 %v904
      %1034 = vmatprep.subr.bf16.mxu0 %v907
      %1035 = vmatpush1.bf16.msra.mxu0 %v906
      %1036 = vmatprep.subr.bf16.mxu0 %v909
      %1037 = vmatpush1.bf16.msra.mxu0 %v908
      %1038 = vmatprep.subr.bf16.mxu0 %v911
      %1039 = vmatpush1.bf16.msra.mxu0 %v910
      %1040 = vmatprep.subr.bf16.mxu0 %v913
      %1041 = vmatpush1.bf16.msra.mxu0 %v912
      %1042 = vmatprep.mubr.bf16.mxu0 %v623
      %1043 = vmatmul.mubr.bf16.gmra.mrb[0].mxu0 %v622
      %v1044 = vpop.f32.mrb[0].mxu0
      %v1045 = vadd.f32 0.0, %v1044
      %v1046 = vpop.f32.mrb[0].mxu0
      %v1047 = vadd.f32 0.0, %v1046
      %v1048 = vpop.f32.mrb[0].mxu0
      %v1049 = vpop.f32.mrb[0].mxu0
      %1050 = vdwg.mxu0
      %1051 = vmatprep.subr.bf16.mxu0 %v915
      %1052 = vmatpush1.bf16.msra.mxu0 %v914
      %1053 = vmatprep.subr.bf16.mxu0 %v917
      %1054 = vmatpush1.bf16.msra.mxu0 %v916
      %1055 = vmatprep.subr.bf16.mxu0 %v919
      %1056 = vmatpush1.bf16.msra.mxu0 %v918
      %1057 = vmatprep.subr.bf16.mxu0 %v921
      %1058 = vmatpush1.bf16.msra.mxu0 %v920
      %1059 = vmatprep.subr.bf16.mxu0 %v923
      %1060 = vmatpush1.bf16.msra.mxu0 %v922
      %1061 = vmatprep.subr.bf16.mxu0 %v925
      %1062 = vmatpush1.bf16.msra.mxu0 %v924
      %1063 = vmatprep.subr.bf16.mxu0 %v927
      %1064 = vmatpush1.bf16.msra.mxu0 %v926
      %1065 = vmatprep.subr.bf16.mxu0 %v929
      %1066 = vmatpush1.bf16.msra.mxu0 %v928
      %1067 = vmatprep.subr.bf16.mxu0 %v931
      %1068 = vmatpush1.bf16.msra.mxu0 %v930
      %1069 = vmatprep.subr.bf16.mxu0 %v933
      %1070 = vmatpush1.bf16.msra.mxu0 %v932
      %1071 = vmatprep.subr.bf16.mxu0 %v935
      %1072 = vmatpush1.bf16.msra.mxu0 %v934
      %1073 = vmatprep.subr.bf16.mxu0 %v937
      %1074 = vmatpush1.bf16.msra.mxu0 %v936
      %1075 = vmatprep.subr.bf16.mxu0 %v939
      %1076 = vmatpush1.bf16.msra.mxu0 %v938
      %1077 = vmatprep.subr.bf16.mxu0 %v941
      %1078 = vmatpush1.bf16.msra.mxu0 %v940
      %1079 = vmatprep.subr.bf16.mxu0 %v943
      %1080 = vmatpush1.bf16.msra.mxu0 %v942
      %1081 = vmatprep.subr.bf16.mxu0 %v945
      %1082 = vmatpush1.bf16.msra.mxu0 %v944
      %1083 = vmatprep.mubr.bf16.mxu0 %v625
      %1084 = vmatmul.mubr.bf16.gmra.mrb[0].mxu0 %v624
      %v1085 = vpop.f32.mrb[0].mxu0
      %v1086 = vadd.f32 %v1045, %v1085
      %v1087 = vpop.f32.mrb[0].mxu0
      %v1088 = vadd.f32 %v1047, %v1087
      %v1089 = vpop.f32.mrb[0].mxu0
      %v1090 = vpop.f32.mrb[0].mxu0
      %1091 = vdwg.mxu0
      %s1092 = sadd.s32 %s282, 1
      %s1093 = smul.u32 %s1092, 8
      %p1094 = scmp.gt.s32.totalorder %s1093, 8
      // Predicated region
      $region45: #{feedforward_net.4} parent=39 // pred_check
        %p1095 = pneg %p1094
      $region46: #{feedforward_net.4} parent=39 // pred_check_branch
        %1097 = sbr.rel (%p1095) target = $region48
      $region47: #{feedforward_net.4} parent=39 // pred_region
        %v1098 = vlaneseq
        %v1099 = vshrl.u32 %v1098, 7
        %s1100 = smul.u32 %s282, 8
        %v1101 = vstv %s1100
        %v1102 = vadd.s32 %v1099, %v1101
        %vm1103 = vcmp.lt.s32.totalorder %v1102, 8
        %v1104 = vsel %vm1103, %v1086, 0.0
        %v1105 = vsel %vm1103, %v1088, 0.0
        %v1106 = vld [vmem:[%s275] ss:$8 sm:$0x3]
        %v1107 = vrot.slane %v1104, 4
        %v1108 = vadd.f32 %v1104, %v1107
        %v1109 = vrot.slane %v1108, 2
        %v1110 = vadd.f32 %v1108, %v1109
        %v1111 = vrot.slane %v1110, 1
        %v1112 = vadd.f32 %v1110, %v1111
        %v1113 = vrot.slane %v1105, 4
        %v1114 = vadd.f32 %v1105, %v1113
        %v1115 = vrot.slane %v1114, 2
        %v1116 = vadd.f32 %v1114, %v1115
        %v1117 = vrot.slane %v1116, 1
        %v1118 = vadd.f32 %v1116, %v1117
        %v1121 = vcombine.low %v1112, %v1118
        %v1123 = vunpack.c.l.s4 1966171168
        %v1124 = vunpack.c.0.s8 %v1123
        %v1125 = vlaneseq
        %v1126 = vshrl.u32 %v1125, 7
        %v1127 = vsub.s32 %v1124, %v1126
        %v1128 = vrot.slane %v1121, %v1127
        %v1130 = vunpack.c.l.s4 1966171168
        %v1131 = vunpack.c.0.s8 %v1130
        %v1132 = vlaneseq
        %v1133 = vshrl.u32 %v1132, 7
        %v1134 = vsub.s32 %v1131, %v1133
        %v1135 = vrot.slane %v1128, %v1134
        %v1137 = vadd.f32 %v1106, %v1135
        %v1138 = vlaneseq
        %vm1139 = vcmp.ge.s32.totalorder %v1138, 0
        %vm1140 = vcmp.lt.s32.totalorder %v1138, 256
        %vm1141 = vmand %vm1139, %vm1140
        %1142 = vst.msk [vmem:[%s275] ss:$8 sm:$0x3] %vm1141, %v1137
        %1143 = vst.msk [vmem:[%s275] ss:$8 sm:$0x0] %vm1141, %v1137
        %v1144 = vld [vmem:[%s280] ss:$8 sm:$0x3]
        %v1145 = vmul.f32 %v1104, %v1104
        %v1146 = vmul.f32 %v1105, %v1105
        %v1147 = vrot.slane %v1145, 4
        %v1148 = vadd.f32 %v1145, %v1147
        %v1149 = vrot.slane %v1148, 2
        %v1150 = vadd.f32 %v1148, %v1149
        %v1151 = vrot.slane %v1150, 1
        %v1152 = vadd.f32 %v1150, %v1151
        %v1153 = vrot.slane %v1146, 4
        %v1154 = vadd.f32 %v1146, %v1153
        %v1155 = vrot.slane %v1154, 2
        %v1156 = vadd.f32 %v1154, %v1155
        %v1157 = vrot.slane %v1156, 1
        %v1158 = vadd.f32 %v1156, %v1157
        %v1161 = vcombine.low %v1152, %v1158
        %v1163 = vunpack.c.l.s4 1966171168
        %v1164 = vunpack.c.0.s8 %v1163
        %v1165 = vlaneseq
        %v1166 = vshrl.u32 %v1165, 7
        %v1167 = vsub.s32 %v1164, %v1166
        %v1168 = vrot.slane %v1161, %v1167
        %v1170 = vunpack.c.l.s4 1966171168
        %v1171 = vunpack.c.0.s8 %v1170
        %v1172 = vlaneseq
        %v1173 = vshrl.u32 %v1172, 7
        %v1174 = vsub.s32 %v1171, %v1173
        %v1175 = vrot.slane %v1168, %v1174
        %v1177 = vadd.f32 %v1144, %v1175
        %1178 = vst.msk [vmem:[%s280] ss:$8 sm:$0x3] %vm1141, %v1177
        %1179 = vst.msk [vmem:[%s280] ss:$8 sm:$0x0] %vm1141, %v1177
      $region48: #{feedforward_net.4} parent=39 // pred_fallthru
        _
      %p1180 = scmp.le.s32.totalorder %s1093, 8
      // Predicated region
      $region49: #{feedforward_net.4} parent=39 // pred_check
        %p1181 = pneg %p1180
      $region50: #{feedforward_net.4} parent=39 // pred_check_branch
        %1183 = sbr.rel (%p1181) target = $region52
      $region51: #{feedforward_net.4} parent=39 // pred_region
        %v1184 = vld [vmem:[%s275] ss:$8 sm:$0x3]
        %v1185 = vrot.slane %v1086, 4
        %v1186 = vadd.f32 %v1086, %v1185
        %v1187 = vrot.slane %v1186, 2
        %v1188 = vadd.f32 %v1186, %v1187
        %v1189 = vrot.slane %v1188, 1
        %v1190 = vadd.f32 %v1188, %v1189
        %v1191 = vrot.slane %v1088, 4
        %v1192 = vadd.f32 %v1088, %v1191
        %v1193 = vrot.slane %v1192, 2
        %v1194 = vadd.f32 %v1192, %v1193
        %v1195 = vrot.slane %v1194, 1
        %v1196 = vadd.f32 %v1194, %v1195
        %v1199 = vcombine.low %v1190, %v1196
        %v1201 = vunpack.c.l.s4 1966171168
        %v1202 = vunpack.c.0.s8 %v1201
        %v1203 = vlaneseq
        %v1204 = vshrl.u32 %v1203, 7
        %v1205 = vsub.s32 %v1202, %v1204
        %v1206 = vrot.slane %v1199, %v1205
        %v1208 = vunpack.c.l.s4 1966171168
        %v1209 = vunpack.c.0.s8 %v1208
        %v1210 = vlaneseq
        %v1211 = vshrl.u32 %v1210, 7
        %v1212 = vsub.s32 %v1209, %v1211
        %v1213 = vrot.slane %v1206, %v1212
        %v1215 = vadd.f32 %v1184, %v1213
        %v1216 = vlaneseq
        %vm1217 = vcmp.ge.s32.totalorder %v1216, 0
        %vm1218 = vcmp.lt.s32.totalorder %v1216, 256
        %vm1219 = vmand %vm1217, %vm1218
        %1220 = vst.msk [vmem:[%s275] ss:$8 sm:$0x3] %vm1219, %v1215
        %1221 = vst.msk [vmem:[%s275] ss:$8 sm:$0x0] %vm1219, %v1215
        %v1222 = vld [vmem:[%s280] ss:$8 sm:$0x3]
        %v1223 = vmul.f32 %v1086, %v1086
        %v1224 = vmul.f32 %v1088, %v1088
        %v1225 = vrot.slane %v1223, 4
        %v1226 = vadd.f32 %v1223, %v1225
        %v1227 = vrot.slane %v1226, 2
        %v1228 = vadd.f32 %v1226, %v1227
        %v1229 = vrot.slane %v1228, 1
        %v1230 = vadd.f32 %v1228, %v1229
        %v1231 = vrot.slane %v1224, 4
        %v1232 = vadd.f32 %v1224, %v1231
        %v1233 = vrot.slane %v1232, 2
        %v1234 = vadd.f32 %v1232, %v1233
        %v1235 = vrot.slane %v1234, 1
        %v1236 = vadd.f32 %v1234, %v1235
        %v1239 = vcombine.low %v1230, %v1236
        %v1241 = vunpack.c.l.s4 1966171168
        %v1242 = vunpack.c.0.s8 %v1241
        %v1243 = vlaneseq
        %v1244 = vshrl.u32 %v1243, 7
        %v1245 = vsub.s32 %v1242, %v1244
        %v1246 = vrot.slane %v1239, %v1245
        %v1248 = vunpack.c.l.s4 1966171168
        %v1249 = vunpack.c.0.s8 %v1248
        %v1250 = vlaneseq
        %v1251 = vshrl.u32 %v1250, 7
        %v1252 = vsub.s32 %v1249, %v1251
        %v1253 = vrot.slane %v1246, %v1252
        %v1255 = vadd.f32 %v1222, %v1253
        %1256 = vst.msk [vmem:[%s280] ss:$8 sm:$0x3] %vm1219, %v1255
        %1257 = vst.msk [vmem:[%s280] ss:$8 sm:$0x0] %vm1219, %v1255
      $region52: #{feedforward_net.4} parent=39 // pred_fallthru
        _
      %p1258 = scmp.lt.s32.totalorder %s22, 1
      %s1259 = scalar_select %p1258, %s22, 1
      %s1260 = smul.addr %s1259, 2
      %s1261 = smul.addr %s1260, 8
      %s1262 = scalar_lea.vmem %s5, %s1261
      %p1263 = scmp.lt.s32.totalorder %s22, 1
      %s1264 = scalar_select %p1263, %s22, 1
      %s1265 = smul.addr %s1264, 2
      %s1266 = smul.addr %s1265, 8
      %s1267 = scalar_lea.vmem %s6, %s1266
      // Predicated region
      $region53: #{feedforward_net.4} parent=39 // pred_check
        %p1268 = pneg %p160
      $region54: #{feedforward_net.4} parent=39 // pred_check_branch
        %1270 = sbr.rel (%p1268) target = $region56
      $region55: #{feedforward_net.4} parent=39 // pred_region
        _
      $region56: #{feedforward_net.4} parent=39 // pred_fallthru
        _
      // Predicated region
      $region57: #{feedforward_net.4} parent=39 // pred_check
        %p1271 = pneg %p186
      $region58: #{feedforward_net.4} parent=39 // pred_check_branch
        %1273 = sbr.rel (%p1271) target = $region60
      $region59: #{feedforward_net.4} parent=39 // pred_region
        _
      $region60: #{feedforward_net.4} parent=39 // pred_fallthru
        _
    $region40: #{feedforward_net.4} parent=5 // pred_fallthru
      _
    %p1274 = scmp.le.s32.totalorder 2, %s13
    // Predicated region
    $region61: #{feedforward_net.4} parent=5 // pred_check
      %p1275 = pneg %p1274
    $region62: #{feedforward_net.4} parent=5 // pred_check_branch
      %1277 = sbr.rel (%p1275) target = $region64
    $region63: #{feedforward_net.4} parent=5 // pred_region
      %s1278 = ssub.s32 %s13, 2
      // Predicated region
      $region65: #{feedforward_net.4} parent=63 // pred_check
        %p1279 = pneg %p166
      $region66: #{feedforward_net.4} parent=63 // pred_check_branch
        %1281 = sbr.rel (%p1279) target = $region68
      $region67: #{feedforward_net.4} parent=63 // pred_region
        %p1282 = scmp.lt.s32.totalorder %s24, 1
        %s1283 = scalar_select %p1282, %s24, 1
        %s1284 = smul.addr %s1283, 2
        %s1285 = smul.addr %s1284, 8
        %s1286 = scalar_lea.vmem %s5, %s1285
      $region68: #{feedforward_net.4} parent=63 // pred_fallthru
        _
      // Predicated region
      $region69: #{feedforward_net.4} parent=63 // pred_check
        %p1287 = pneg %p192
      $region70: #{feedforward_net.4} parent=63 // pred_check_branch
        %1289 = sbr.rel (%p1287) target = $region72
      $region71: #{feedforward_net.4} parent=63 // pred_region
        %p1290 = scmp.lt.s32.totalorder %s24, 1
        %s1291 = scalar_select %p1290, %s24, 1
        %s1292 = smul.addr %s1291, 2
        %s1293 = smul.addr %s1292, 8
        %s1294 = scalar_lea.vmem %s6, %s1293
      $region72: #{feedforward_net.4} parent=63 // pred_fallthru
        _
    $region64: #{feedforward_net.4} parent=5 // pred_fallthru
      _
  $region6: #{feedforward_net.4} parent=0 // loop_footer
    %s17 = sadd.s32 1, %s13
  $region7: #{feedforward_net.4} parent=0 // loop_footer_branch
    %12 = sbr.rel target = $region3
  $region8: #{feedforward_net.4} parent=0 // loop_exit
    _

// kernel: feedforward_net.5
$region0: #{feedforward_net.5}
  #allocation0 [shape = 'u32[]', space=smem, size = 0x4, offset = 0x4, fixed_abs, tag = 'smem constant byte address 0x4 - core index']
  #allocation1 [shape = 'u32[144,128]{1,0:T(1,128)}', space=vmem, size = 0x12000, scoped, tag = 'internal scratch']
  %s0 = inlined_call_operand.vmem [shape: bf16[16,128], index: 0, kind: input, shape index: {}]
  %s1 = inlined_call_operand.vmem [shape: bf16[128,512], index: 1, kind: input, shape index: {}]
  %s2 = inlined_call_operand.vmem [shape: f32[1,512], index: 2, kind: input, shape index: {}]
  %s3 = inlined_call_operand.vmem [shape: f32[1,512], index: 3, kind: input, shape index: {}]
  %s4 = inlined_call_operand.vmem [shape: bf16[512,256], index: 4, kind: input, shape index: {}]
  %s5 = inlined_call_operand.vmem [shape: f32[1,256], index: 5, kind: input, shape index: {}]
  %s6 = inlined_call_operand.vmem [shape: f32[1,256], index: 6, kind: input, shape index: {}]
  %s7 = inlined_call_operand.vmem [shape: bf16[256,128], index: 7, kind: input, shape index: {}]
  %s8 = inlined_call_operand.vmem [shape: f32[1,128], index: 8, kind: input, shape index: {}]
  %s9 = inlined_call_operand.vmem [shape: f32[16,128], index: 9, kind: output, shape index: {}]
  %s10 = sld [smem:[#allocation0]]
  $region69: #{feedforward_net.5} parent=0
    _
  %s12 = ssub.s32 1, %s10
  %s13 = scalar_select 0, %s12, %s10
  loop: start=0, step=1, limit=4
  $region2: #{feedforward_net.5} parent=0 // loop_pre_header
    _
  $region3: #{feedforward_net.5} parent=0 // loop_header
    %s15 = sphi 0, %s19
    %p16 = scmp.ge.s32.totalorder %s15, 4
    %s25 = sphi 0, %s27
    %s28 = sphi 0, %s25
    %s29 = sphi 0, %s28
    %s45 = sphi 0, %s29
    %s49 = sphi 0, %s49
    %s51 = sphi 0, %s49
    %s52 = sphi 0, %s51
    %s66 = sphi 0, %s52
    %s70 = sphi 0, %s70
    %s72 = sphi 0, %s70
    %s73 = sphi 0, %s72
    %s87 = sphi 0, %s73
    %s91 = sphi 0, %s91
    %s93 = sphi 0, %s91
    %s94 = sphi 0, %s93
    %s108 = sphi 0, %s94
    %s112 = sphi 0, %s112
    %s114 = sphi 0, %s112
    %s115 = sphi 0, %s114
    %s129 = sphi 0, %s115
    %s133 = sphi 0, %s133
    %s135 = sphi 0, %s133
    %s136 = sphi 0, %s135
    %s150 = sphi 0, %s136
    %s154 = sphi 0, %s154
    %s156 = sphi 0, %s154
    %s157 = sphi 0, %s156
    %s171 = sphi 0, %s157
    %s175 = sphi 0, %s175
    %s177 = sphi 0, %s175
    %s178 = sphi 0, %s177
    %s192 = sphi 0, %s178
    %s196 = sphi 0, %s196
    %s198 = sphi 0, %s196
    %s199 = sphi 0, %s198
    %s213 = sphi 0, %s199
    %s219 = sphi 0, %s221
    %s222 = sphi 0, %s219
    %s223 = sphi 0, %s222
    %s239 = sphi 0, %s223
  $region4: #{feedforward_net.5} parent=0 // loop_header_branch
    %18 = sbr.rel (%p16) target = $region8
  $region5: #{feedforward_net.5} parent=0 // loop_body
    %s20 = ssub.s32 %s15, 1
    %s21 = ssub.s32 %s15, 2
    %s22 = sadd.s32 %s15, 1
    %s23 = ssub.s32 %s15, %s22
    %p24 = scmp.eq.s32.totalorder %s23, 0
    %s26 = sadd.s32 %s25, 1
    %s27 = scalar_select %p24, %s25, %s26
    %p30 = pneg %p24
    %p31 = scmp.eq.s32.totalorder %s15, 1
    %p32 = por %p30, %p31
    %p33 = scmp.ne.s32.totalorder %s25, %s28
    %p34 = scmp.eq.s32.totalorder %s15, 0
    %p35 = por %p33, %p34
    %p36 = scmp.ne.s32.totalorder %s25, %s28
    %p37 = scmp.eq.s32.totalorder %s20, 1
    %p38 = por %p36, %p37
    %p39 = scmp.ne.s32.totalorder %s28, %s29
    %p40 = scmp.eq.s32.totalorder %s20, 0
    %p41 = por %p39, %p40
    %p42 = scmp.ne.s32.totalorder %s28, %s29
    %p43 = scmp.eq.s32.totalorder %s21, 1
    %p44 = por %p42, %p43
    %p46 = scmp.ne.s32.totalorder %s29, %s45
    %p47 = scmp.eq.s32.totalorder %s21, 0
    %p48 = por %p46, %p47
    %s50 = sadd.s32 %s49, 1
    %p53 = scmp.eq.s32.totalorder %s15, 1
    %p54 = scmp.ne.s32.totalorder %s49, %s51
    %p55 = scmp.eq.s32.totalorder %s15, 0
    %p56 = por %p54, %p55
    %p57 = scmp.ne.s32.totalorder %s49, %s51
    %p58 = scmp.eq.s32.totalorder %s20, 1
    %p59 = por %p57, %p58
    %p60 = scmp.ne.s32.totalorder %s51, %s52
    %p61 = scmp.eq.s32.totalorder %s20, 0
    %p62 = por %p60, %p61
    %p63 = scmp.ne.s32.totalorder %s51, %s52
    %p64 = scmp.eq.s32.totalorder %s21, 1
    %p65 = por %p63, %p64
    %p67 = scmp.ne.s32.totalorder %s52, %s66
    %p68 = scmp.eq.s32.totalorder %s21, 0
    %p69 = por %p67, %p68
    %s71 = sadd.s32 %s70, 1
    %p74 = scmp.eq.s32.totalorder %s15, 1
    %p75 = scmp.ne.s32.totalorder %s70, %s72
    %p76 = scmp.eq.s32.totalorder %s15, 0
    %p77 = por %p75, %p76
    %p78 = scmp.ne.s32.totalorder %s70, %s72
    %p79 = scmp.eq.s32.totalorder %s20, 1
    %p80 = por %p78, %p79
    %p81 = scmp.ne.s32.totalorder %s72, %s73
    %p82 = scmp.eq.s32.totalorder %s20, 0
    %p83 = por %p81, %p82
    %p84 = scmp.ne.s32.totalorder %s72, %s73
    %p85 = scmp.eq.s32.totalorder %s21, 1
    %p86 = por %p84, %p85
    %p88 = scmp.ne.s32.totalorder %s73, %s87
    %p89 = scmp.eq.s32.totalorder %s21, 0
    %p90 = por %p88, %p89
    %s92 = sadd.s32 %s91, 1
    %p95 = scmp.eq.s32.totalorder %s15, 1
    %p96 = scmp.ne.s32.totalorder %s91, %s93
    %p97 = scmp.eq.s32.totalorder %s15, 0
    %p98 = por %p96, %p97
    %p99 = scmp.ne.s32.totalorder %s91, %s93
    %p100 = scmp.eq.s32.totalorder %s20, 1
    %p101 = por %p99, %p100
    %p102 = scmp.ne.s32.totalorder %s93, %s94
    %p103 = scmp.eq.s32.totalorder %s20, 0
    %p104 = por %p102, %p103
    %p105 = scmp.ne.s32.totalorder %s93, %s94
    %p106 = scmp.eq.s32.totalorder %s21, 1
    %p107 = por %p105, %p106
    %p109 = scmp.ne.s32.totalorder %s94, %s108
    %p110 = scmp.eq.s32.totalorder %s21, 0
    %p111 = por %p109, %p110
    %s113 = sadd.s32 %s112, 1
    %p116 = scmp.eq.s32.totalorder %s15, 1
    %p117 = scmp.ne.s32.totalorder %s112, %s114
    %p118 = scmp.eq.s32.totalorder %s15, 0
    %p119 = por %p117, %p118
    %p120 = scmp.ne.s32.totalorder %s112, %s114
    %p121 = scmp.eq.s32.totalorder %s20, 1
    %p122 = por %p120, %p121
    %p123 = scmp.ne.s32.totalorder %s114, %s115
    %p124 = scmp.eq.s32.totalorder %s20, 0
    %p125 = por %p123, %p124
    %p126 = scmp.ne.s32.totalorder %s114, %s115
    %p127 = scmp.eq.s32.totalorder %s21, 1
    %p128 = por %p126, %p127
    %p130 = scmp.ne.s32.totalorder %s115, %s129
    %p131 = scmp.eq.s32.totalorder %s21, 0
    %p132 = por %p130, %p131
    %s134 = sadd.s32 %s133, 1
    %p137 = scmp.eq.s32.totalorder %s15, 1
    %p138 = scmp.ne.s32.totalorder %s133, %s135
    %p139 = scmp.eq.s32.totalorder %s15, 0
    %p140 = por %p138, %p139
    %p141 = scmp.ne.s32.totalorder %s133, %s135
    %p142 = scmp.eq.s32.totalorder %s20, 1
    %p143 = por %p141, %p142
    %p144 = scmp.ne.s32.totalorder %s135, %s136
    %p145 = scmp.eq.s32.totalorder %s20, 0
    %p146 = por %p144, %p145
    %p147 = scmp.ne.s32.totalorder %s135, %s136
    %p148 = scmp.eq.s32.totalorder %s21, 1
    %p149 = por %p147, %p148
    %p151 = scmp.ne.s32.totalorder %s136, %s150
    %p152 = scmp.eq.s32.totalorder %s21, 0
    %p153 = por %p151, %p152
    %s155 = sadd.s32 %s154, 1
    %p158 = scmp.eq.s32.totalorder %s15, 1
    %p159 = scmp.ne.s32.totalorder %s154, %s156
    %p160 = scmp.eq.s32.totalorder %s15, 0
    %p161 = por %p159, %p160
    %p162 = scmp.ne.s32.totalorder %s154, %s156
    %p163 = scmp.eq.s32.totalorder %s20, 1
    %p164 = por %p162, %p163
    %p165 = scmp.ne.s32.totalorder %s156, %s157
    %p166 = scmp.eq.s32.totalorder %s20, 0
    %p167 = por %p165, %p166
    %p168 = scmp.ne.s32.totalorder %s156, %s157
    %p169 = scmp.eq.s32.totalorder %s21, 1
    %p170 = por %p168, %p169
    %p172 = scmp.ne.s32.totalorder %s157, %s171
    %p173 = scmp.eq.s32.totalorder %s21, 0
    %p174 = por %p172, %p173
    %s176 = sadd.s32 %s175, 1
    %p179 = scmp.eq.s32.totalorder %s15, 1
    %p180 = scmp.ne.s32.totalorder %s175, %s177
    %p181 = scmp.eq.s32.totalorder %s15, 0
    %p182 = por %p180, %p181
    %p183 = scmp.ne.s32.totalorder %s175, %s177
    %p184 = scmp.eq.s32.totalorder %s20, 1
    %p185 = por %p183, %p184
    %p186 = scmp.ne.s32.totalorder %s177, %s178
    %p187 = scmp.eq.s32.totalorder %s20, 0
    %p188 = por %p186, %p187
    %p189 = scmp.ne.s32.totalorder %s177, %s178
    %p190 = scmp.eq.s32.totalorder %s21, 1
    %p191 = por %p189, %p190
    %p193 = scmp.ne.s32.totalorder %s178, %s192
    %p194 = scmp.eq.s32.totalorder %s21, 0
    %p195 = por %p193, %p194
    %s197 = sadd.s32 %s196, 1
    %p200 = scmp.eq.s32.totalorder %s15, 1
    %p201 = scmp.ne.s32.totalorder %s196, %s198
    %p202 = scmp.eq.s32.totalorder %s15, 0
    %p203 = por %p201, %p202
    %p204 = scmp.ne.s32.totalorder %s196, %s198
    %p205 = scmp.eq.s32.totalorder %s20, 1
    %p206 = por %p204, %p205
    %p207 = scmp.ne.s32.totalorder %s198, %s199
    %p208 = scmp.eq.s32.totalorder %s20, 0
    %p209 = por %p207, %p208
    %p210 = scmp.ne.s32.totalorder %s198, %s199
    %p211 = scmp.eq.s32.totalorder %s21, 1
    %p212 = por %p210, %p211
    %p214 = scmp.ne.s32.totalorder %s199, %s213
    %p215 = scmp.eq.s32.totalorder %s21, 0
    %p216 = por %p214, %p215
    %s217 = ssub.s32 %s15, %s22
    %p218 = scmp.eq.s32.totalorder %s217, 0
    %s220 = sadd.s32 %s219, 1
    %s221 = scalar_select %p218, %s219, %s220
    %p224 = pneg %p218
    %p225 = scmp.eq.s32.totalorder %s15, 1
    %p226 = por %p224, %p225
    %p227 = scmp.ne.s32.totalorder %s219, %s222
    %p228 = scmp.eq.s32.totalorder %s15, 0
    %p229 = por %p227, %p228
    %p230 = scmp.ne.s32.totalorder %s219, %s222
    %p231 = scmp.eq.s32.totalorder %s20, 1
    %p232 = por %p230, %p231
    %p233 = scmp.ne.s32.totalorder %s222, %s223
    %p234 = scmp.eq.s32.totalorder %s20, 0
    %p235 = por %p233, %p234
    %p236 = scmp.ne.s32.totalorder %s222, %s223
    %p237 = scmp.eq.s32.totalorder %s21, 1
    %p238 = por %p236, %p237
    %p240 = scmp.ne.s32.totalorder %s223, %s239
    %p241 = scmp.eq.s32.totalorder %s21, 0
    %p242 = por %p240, %p241
    %p243 = scmp.le.s32.totalorder 1, %s15
    %p244 = scmp.lt.s32.totalorder %s15, 3
    %p245 = pnand %p243, %p244
    %p246 = pneg %p245
    // Predicated region
    $region9: #{feedforward_net.5} parent=5 // pred_check
      _
    $region10: #{feedforward_net.5} parent=5 // pred_check_branch
      %248 = sbr.rel (%p245) target = $region12
    $region11: #{feedforward_net.5} parent=5 // pred_region
      %s249 = ssub.s32 %s15, 1
      // Predicated region
      $region13: #{feedforward_net.5} parent=11 // pred_check
        %p250 = pneg %p62
      $region14: #{feedforward_net.5} parent=11 // pred_check_branch
        %252 = sbr.rel (%p250) target = $region16
      $region15: #{feedforward_net.5} parent=11 // pred_region
        _
      $region16: #{feedforward_net.5} parent=11 // pred_fallthru
        _
      // Predicated region
      $region17: #{feedforward_net.5} parent=11 // pred_check
        %p253 = pneg %p83
      $region18: #{feedforward_net.5} parent=11 // pred_check_branch
        %255 = sbr.rel (%p253) target = $region20
      $region19: #{feedforward_net.5} parent=11 // pred_region
        _
      $region20: #{feedforward_net.5} parent=11 // pred_fallthru
        _
      // Predicated region
      $region21: #{feedforward_net.5} parent=11 // pred_check
        %p256 = pneg %p104
      $region22: #{feedforward_net.5} parent=11 // pred_check_branch
        %258 = sbr.rel (%p256) target = $region24
      $region23: #{feedforward_net.5} parent=11 // pred_region
        _
      $region24: #{feedforward_net.5} parent=11 // pred_fallthru
        _
      // Predicated region
      $region25: #{feedforward_net.5} parent=11 // pred_check
        %p259 = pneg %p125
      $region26: #{feedforward_net.5} parent=11 // pred_check_branch
        %261 = sbr.rel (%p259) target = $region28
      $region27: #{feedforward_net.5} parent=11 // pred_region
        _
      $region28: #{feedforward_net.5} parent=11 // pred_fallthru
        _
      // Predicated region
      $region29: #{feedforward_net.5} parent=11 // pred_check
        %p262 = pneg %p146
      $region30: #{feedforward_net.5} parent=11 // pred_check_branch
        %264 = sbr.rel (%p262) target = $region32
      $region31: #{feedforward_net.5} parent=11 // pred_region
        _
      $region32: #{feedforward_net.5} parent=11 // pred_fallthru
        _
      // Predicated region
      $region33: #{feedforward_net.5} parent=11 // pred_check
        %p265 = pneg %p167
      $region34: #{feedforward_net.5} parent=11 // pred_check_branch
        %267 = sbr.rel (%p265) target = $region36
      $region35: #{feedforward_net.5} parent=11 // pred_region
        _
      $region36: #{feedforward_net.5} parent=11 // pred_fallthru
        _
      // Predicated region
      $region37: #{feedforward_net.5} parent=11 // pred_check
        %p268 = pneg %p188
      $region38: #{feedforward_net.5} parent=11 // pred_check_branch
        %270 = sbr.rel (%p268) target = $region40
      $region39: #{feedforward_net.5} parent=11 // pred_region
        _
      $region40: #{feedforward_net.5} parent=11 // pred_fallthru
        _
      // Predicated region
      $region41: #{feedforward_net.5} parent=11 // pred_check
        %p271 = pneg %p209
      $region42: #{feedforward_net.5} parent=11 // pred_check_branch
        %273 = sbr.rel (%p271) target = $region44
      $region43: #{feedforward_net.5} parent=11 // pred_region
        _
      $region44: #{feedforward_net.5} parent=11 // pred_fallthru
        _
    $region12: #{feedforward_net.5} parent=5 // pred_fallthru
      _
    %p274 = scmp.lt.s32.totalorder %s15, 2
    // Predicated region
    $region45: #{feedforward_net.5} parent=5 // pred_check
      %p275 = pneg %p274
    $region46: #{feedforward_net.5} parent=5 // pred_check_branch
      %277 = sbr.rel (%p275) target = $region48
    $region47: #{feedforward_net.5} parent=5 // pred_region
      // Predicated region
      $region49: #{feedforward_net.5} parent=47 // pred_check
        %p278 = pneg %p35
      $region50: #{feedforward_net.5} parent=47 // pred_check_branch
        %280 = sbr.rel (%p278) target = $region52
      $region51: #{feedforward_net.5} parent=47 // pred_region
        %p281 = scmp.lt.s32.totalorder %s15, 1
        %s282 = scalar_select %p281, %s15, 1
        %s283 = smul.addr %s282, 4
        %s284 = scalar_lea.vmem %s0, %s283
      $region52: #{feedforward_net.5} parent=47 // pred_fallthru
        _
    $region48: #{feedforward_net.5} parent=5 // pred_fallthru
      _
    %p285 = scmp.le.s32.totalorder 1, %s15
    %p286 = scmp.lt.s32.totalorder %s15, 3
    %p287 = pnand %p285, %p286
    %p288 = pneg %p287
    // Predicated region
    $region53: #{feedforward_net.5} parent=5 // pred_check
      _
    $region54: #{feedforward_net.5} parent=5 // pred_check_branch
      %290 = sbr.rel (%p287) target = $region56
    $region55: #{feedforward_net.5} parent=5 // pred_region
      %s291 = ssub.s32 %s15, 1
      %p292 = scmp.lt.s32.totalorder %s20, 1
      %s293 = scalar_select %p292, %s20, 1
      %s294 = smul.addr %s293, 4
      %s295 = scalar_lea.vmem %s0, %s294
      %p296 = pneg %p41
      %p297 = pneg %p38
      %p298 = pneg %p62
      %p299 = pneg %p59
      %p300 = pneg %p83
      %p301 = pneg %p80
      %p302 = pneg %p104
      %p303 = pneg %p101
      %p304 = pneg %p125
      %p305 = pneg %p122
      %p306 = pneg %p146
      %p307 = pneg %p143
      %p308 = pneg %p167
      %p309 = pneg %p164
      %p310 = pneg %p188
      %p311 = pneg %p185
      %p312 = pneg %p209
      %p313 = pneg %p206
      %p314 = pneg %p235
      %p315 = pneg %p232
      %p316 = scmp.lt.s32.totalorder %s20, 1
      %s317 = scalar_select %p316, %s20, 1
      %s318 = smul.addr %s317, 8
      %s319 = scalar_lea.vmem %s9, %s318
      %p320 = scmp.lt.s32.totalorder %s20, 1
      %s321 = scalar_select %p320, %s20, 1
      %s322 = smul.addr %s321, 4
      %s323 = scalar_lea.vmem %s0, %s322
      %p324 = scmp.lt.s32.totalorder %s20, 1
      %s325 = scalar_select %p324, %s20, 1
      %s326 = smul.addr %s325, 8
      %s327 = scalar_lea.vmem %s9, %s326
      %v329 = vld [vmem:[%s323] sm:$0xf]
      %v330 = vld [vmem:[%s1] sm:$0xff]
      %v331 = vld [vmem:[%s1 + $0x8] sm:$0xff]
      %v332 = vld [vmem:[%s1 + $0x10] sm:$0xff]
      %v333 = vld [vmem:[%s1 + $0x18] sm:$0xff]
      %v334 = vld [vmem:[%s1 + $0x20] sm:$0xff]
      %v335 = vld [vmem:[%s1 + $0x28] sm:$0xff]
      %v336 = vld [vmem:[%s1 + $0x30] sm:$0xff]
      %v337 = vld [vmem:[%s1 + $0x38] sm:$0xff]
      %v338 = vld [vmem:[%s1 + $0x40] sm:$0xff]
      %v339 = vld [vmem:[%s1 + $0x48] sm:$0xff]
      %v340 = vld [vmem:[%s1 + $0x50] sm:$0xff]
      %v341 = vld [vmem:[%s1 + $0x58] sm:$0xff]
      %v342 = vld [vmem:[%s1 + $0x60] sm:$0xff]
      %v343 = vld [vmem:[%s1 + $0x68] sm:$0xff]
      %v344 = vld [vmem:[%s1 + $0x70] sm:$0xff]
      %v345 = vld [vmem:[%s1 + $0x78] sm:$0xff]
      %v346 = vld [vmem:[%s1 + $0x80] sm:$0xff]
      %v347 = vld [vmem:[%s1 + $0x88] sm:$0xff]
      %v348 = vld [vmem:[%s1 + $0x90] sm:$0xff]
      %v349 = vld [vmem:[%s1 + $0x98] sm:$0xff]
      %v350 = vld [vmem:[%s1 + $0xa0] sm:$0xff]
      %v351 = vld [vmem:[%s1 + $0xa8] sm:$0xff]
      %v352 = vld [vmem:[%s1 + $0xb0] sm:$0xff]
      %v353 = vld [vmem:[%s1 + $0xb8] sm:$0xff]
      %v354 = vld [vmem:[%s1 + $0xc0] sm:$0xff]
      %v355 = vld [vmem:[%s1 + $0xc8] sm:$0xff]
      %v356 = vld [vmem:[%s1 + $0xd0] sm:$0xff]
      %v357 = vld [vmem:[%s1 + $0xd8] sm:$0xff]
      %v358 = vld [vmem:[%s1 + $0xe0] sm:$0xff]
      %v359 = vld [vmem:[%s1 + $0xe8] sm:$0xff]
      %v360 = vld [vmem:[%s1 + $0xf0] sm:$0xff]
      %v361 = vld [vmem:[%s1 + $0xf8] sm:$0xff]
      %v394 = vunpack.c.l.b16 %v330
      %v395 = vunpack.c.h.b16 %v330
      %v396 = vunpack.c.l.b16 %v331
      %v397 = vunpack.c.h.b16 %v331
      %v398 = vunpack.c.l.b16 %v332
      %v399 = vunpack.c.h.b16 %v332
      %v400 = vunpack.c.l.b16 %v333
      %v401 = vunpack.c.h.b16 %v333
      %v402 = vunpack.c.l.b16 %v334
      %v403 = vunpack.c.h.b16 %v334
      %v404 = vunpack.c.l.b16 %v335
      %v405 = vunpack.c.h.b16 %v335
      %v406 = vunpack.c.l.b16 %v336
      %v407 = vunpack.c.h.b16 %v336
      %v408 = vunpack.c.l.b16 %v337
      %v409 = vunpack.c.h.b16 %v337
      %v410 = vunpack.c.l.b16 %v338
      %v411 = vunpack.c.h.b16 %v338
      %v412 = vunpack.c.l.b16 %v339
      %v413 = vunpack.c.h.b16 %v339
      %v414 = vunpack.c.l.b16 %v340
      %v415 = vunpack.c.h.b16 %v340
      %v416 = vunpack.c.l.b16 %v341
      %v417 = vunpack.c.h.b16 %v341
      %v418 = vunpack.c.l.b16 %v342
      %v419 = vunpack.c.h.b16 %v342
      %v420 = vunpack.c.l.b16 %v343
      %v421 = vunpack.c.h.b16 %v343
      %v422 = vunpack.c.l.b16 %v344
      %v423 = vunpack.c.h.b16 %v344
      %v424 = vunpack.c.l.b16 %v345
      %v425 = vunpack.c.h.b16 %v345
      %v426 = vunpack.c.l.b16 %v346
      %v427 = vunpack.c.h.b16 %v346
      %v428 = vunpack.c.l.b16 %v347
      %v429 = vunpack.c.h.b16 %v347
      %v430 = vunpack.c.l.b16 %v348
      %v431 = vunpack.c.h.b16 %v348
      %v432 = vunpack.c.l.b16 %v349
      %v433 = vunpack.c.h.b16 %v349
      %v434 = vunpack.c.l.b16 %v350
      %v435 = vunpack.c.h.b16 %v350
      %v436 = vunpack.c.l.b16 %v351
      %v437 = vunpack.c.h.b16 %v351
      %v438 = vunpack.c.l.b16 %v352
      %v439 = vunpack.c.h.b16 %v352
      %v440 = vunpack.c.l.b16 %v353
      %v441 = vunpack.c.h.b16 %v353
      %v442 = vunpack.c.l.b16 %v354
      %v443 = vunpack.c.h.b16 %v354
      %v444 = vunpack.c.l.b16 %v355
      %v445 = vunpack.c.h.b16 %v355
      %v446 = vunpack.c.l.b16 %v356
      %v447 = vunpack.c.h.b16 %v356
      %v448 = vunpack.c.l.b16 %v357
      %v449 = vunpack.c.h.b16 %v357
      %v450 = vunpack.c.l.b16 %v358
      %v451 = vunpack.c.h.b16 %v358
      %v452 = vunpack.c.l.b16 %v359
      %v453 = vunpack.c.h.b16 %v359
      %v454 = vunpack.c.l.b16 %v360
      %v455 = vunpack.c.h.b16 %v360
      %v456 = vunpack.c.l.b16 %v361
      %v457 = vunpack.c.h.b16 %v361
      %v458 = vpack.c.b16 %v398, %v394
      %v459 = vpack.c.b16 %v399, %v395
      %v460 = vpack.c.b16 %v400, %v396
      %v461 = vpack.c.b16 %v401, %v397
      %v462 = vpack.c.b16 %v406, %v402
      %v463 = vpack.c.b16 %v407, %v403
      %v464 = vpack.c.b16 %v408, %v404
      %v465 = vpack.c.b16 %v409, %v405
      %v466 = vpack.c.b16 %v414, %v410
      %v467 = vpack.c.b16 %v415, %v411
      %v468 = vpack.c.b16 %v416, %v412
      %v469 = vpack.c.b16 %v417, %v413
      %v470 = vpack.c.b16 %v422, %v418
      %v471 = vpack.c.b16 %v423, %v419
      %v472 = vpack.c.b16 %v424, %v420
      %v473 = vpack.c.b16 %v425, %v421
      %v474 = vpack.c.b16 %v430, %v426
      %v475 = vpack.c.b16 %v431, %v427
      %v476 = vpack.c.b16 %v432, %v428
      %v477 = vpack.c.b16 %v433, %v429
      %v478 = vpack.c.b16 %v438, %v434
      %v479 = vpack.c.b16 %v439, %v435
      %v480 = vpack.c.b16 %v440, %v436
      %v481 = vpack.c.b16 %v441, %v437
      %v482 = vpack.c.b16 %v446, %v442
      %v483 = vpack.c.b16 %v447, %v443
      %v484 = vpack.c.b16 %v448, %v444
      %v485 = vpack.c.b16 %v449, %v445
      %v486 = vpack.c.b16 %v454, %v450
      %v487 = vpack.c.b16 %v455, %v451
      %v488 = vpack.c.b16 %v456, %v452
      %v489 = vpack.c.b16 %v457, %v453
      %522 = vmatprep.subr.bf16.mxu0 %v459
      %523 = vmatpush1.bf16.msra.mxu0 %v458
      %524 = vmatprep.subr.bf16.mxu0 %v463
      %525 = vmatpush1.bf16.msra.mxu0 %v462
      %526 = vmatprep.subr.bf16.mxu0 %v467
      %527 = vmatpush1.bf16.msra.mxu0 %v466
      %528 = vmatprep.subr.bf16.mxu0 %v471
      %529 = vmatpush1.bf16.msra.mxu0 %v470
      %530 = vmatprep.subr.bf16.mxu0 %v475
      %531 = vmatpush1.bf16.msra.mxu0 %v474
      %532 = vmatprep.subr.bf16.mxu0 %v479
      %533 = vmatpush1.bf16.msra.mxu0 %v478
      %534 = vmatprep.subr.bf16.mxu0 %v483
      %535 = vmatpush1.bf16.msra.mxu0 %v482
      %536 = vmatprep.subr.bf16.mxu0 %v487
      %537 = vmatpush1.bf16.msra.mxu0 %v486
      %538 = vmatprep.subr.bf16.mxu0 0
      %539 = vmatpush1.bf16.msra.mxu0 0
      %540 = vmatprep.subr.bf16.mxu0 0
      %541 = vmatpush1.bf16.msra.mxu0 0
      %542 = vmatprep.subr.bf16.mxu0 0
      %543 = vmatpush1.bf16.msra.mxu0 0
      %544 = vmatprep.subr.bf16.mxu0 0
      %545 = vmatpush1.bf16.msra.mxu0 0
      %546 = vmatprep.subr.bf16.mxu0 0
      %547 = vmatpush1.bf16.msra.mxu0 0
      %548 = vmatprep.subr.bf16.mxu0 0
      %549 = vmatpush1.bf16.msra.mxu0 0
      %550 = vmatprep.subr.bf16.mxu0 0
      %551 = vmatpush1.bf16.msra.mxu0 0
      %552 = vmatprep.subr.bf16.mxu0 0
      %553 = vmatpush1.bf16.msra.mxu0 0
      %554 = vmatprep.mubr.bf16.mxu0 0
      %555 = vmatmul.mubr.bf16.gmra.mrb[0].mxu0 %v329
      %v556 = vpop.f32.mrb[0].mxu0
      %v557 = vadd.f32 0.0, %v556
      %v558 = vpop.f32.mrb[0].mxu0
      %v559 = vadd.f32 0.0, %v558
      %v560 = vpop.f32.mrb[0].mxu0
      %v561 = vpop.f32.mrb[0].mxu0
      %562 = vdwg.mxu0
      %563 = vmatprep.subr.bf16.mxu0 %v461
      %564 = vmatpush1.bf16.msra.mxu0 %v460
      %565 = vmatprep.subr.bf16.mxu0 %v465
      %566 = vmatpush1.bf16.msra.mxu0 %v464
      %567 = vmatprep.subr.bf16.mxu0 %v469
      %568 = vmatpush1.bf16.msra.mxu0 %v468
      %569 = vmatprep.subr.bf16.mxu0 %v473
      %570 = vmatpush1.bf16.msra.mxu0 %v472
      %571 = vmatprep.subr.bf16.mxu0 %v477
      %572 = vmatpush1.bf16.msra.mxu0 %v476
      %573 = vmatprep.subr.bf16.mxu0 %v481
      %574 = vmatpush1.bf16.msra.mxu0 %v480
      %575 = vmatprep.subr.bf16.mxu0 %v485
      %576 = vmatpush1.bf16.msra.mxu0 %v484
      %577 = vmatprep.subr.bf16.mxu0 %v489
      %578 = vmatpush1.bf16.msra.mxu0 %v488
      %579 = vmatprep.subr.bf16.mxu0 0
      %580 = vmatpush1.bf16.msra.mxu0 0
      %581 = vmatprep.subr.bf16.mxu0 0
      %582 = vmatpush1.bf16.msra.mxu0 0
      %583 = vmatprep.subr.bf16.mxu0 0
      %584 = vmatpush1.bf16.msra.mxu0 0
      %585 = vmatprep.subr.bf16.mxu0 0
      %586 = vmatpush1.bf16.msra.mxu0 0
      %587 = vmatprep.subr.bf16.mxu0 0
      %588 = vmatpush1.bf16.msra.mxu0 0
      %589 = vmatprep.subr.bf16.mxu0 0
      %590 = vmatpush1.bf16.msra.mxu0 0
      %591 = vmatprep.subr.bf16.mxu0 0
      %592 = vmatpush1.bf16.msra.mxu0 0
      %593 = vmatprep.subr.bf16.mxu0 0
      %594 = vmatpush1.bf16.msra.mxu0 0
      %595 = vmatprep.mubr.bf16.mxu0 0
      %596 = vmatmul.mubr.bf16.gmra.mrb[0].mxu0 %v329
      %v597 = vpop.f32.mrb[0].mxu0
      %v598 = vadd.f32 0.0, %v597
      %v599 = vpop.f32.mrb[0].mxu0
      %v600 = vadd.f32 0.0, %v599
      %v601 = vpop.f32.mrb[0].mxu0
      %v602 = vpop.f32.mrb[0].mxu0
      %603 = vdwg.mxu0
      %v604 = vld [vmem:[%s2] sm:$0xf]
      %v606 = vlaneseq
      %v607 = vshrl.u32 %v606, 7
      %v608 = vsub.s32 0, %v607
      %v609 = vrot.slane %v604, %v608
      %v610 = vlaneseq
      %v611 = vshrl.u32 %v610, 7
      %v612 = vsub.s32 1, %v611
      %v613 = vrot.slane %v604, %v612
      %v614 = vlaneseq
      %v615 = vshrl.u32 %v614, 7
      %v616 = vsub.s32 2, %v615
      %v617 = vrot.slane %v604, %v616
      %v618 = vlaneseq
      %v619 = vshrl.u32 %v618, 7
      %v620 = vsub.s32 3, %v619
      %v621 = vrot.slane %v604, %v620
      %v626 = vmul.f32 %v557, %v609
      %v627 = vmul.f32 %v559, %v613
      %v628 = vmul.f32 %v598, %v617
      %v629 = vmul.f32 %v600, %v621
      %v630 = vld [vmem:[%s3] sm:$0xf]
      %v632 = vlaneseq
      %v633 = vshrl.u32 %v632, 7
      %v634 = vsub.s32 0, %v633
      %v635 = vrot.slane %v630, %v634
      %v636 = vlaneseq
      %v637 = vshrl.u32 %v636, 7
      %v638 = vsub.s32 1, %v637
      %v639 = vrot.slane %v630, %v638
      %v640 = vlaneseq
      %v641 = vshrl.u32 %v640, 7
      %v642 = vsub.s32 2, %v641
      %v643 = vrot.slane %v630, %v642
      %v644 = vlaneseq
      %v645 = vshrl.u32 %v644, 7
      %v646 = vsub.s32 3, %v645
      %v647 = vrot.slane %v630, %v646
      %v652 = vadd.f32 %v626, %v635
      %v653 = vadd.f32 %v627, %v639
      %v654 = vadd.f32 %v628, %v643
      %v655 = vadd.f32 %v629, %v647
      %v656 = vmax.f32 %v652, 0.0
      %v657 = vmax.f32 %v653, 0.0
      %v658 = vmax.f32 %v654, 0.0
      %v659 = vmax.f32 %v655, 0.0
      %v660 = vpack.c.bf16 %v656, %v656
      %v661 = vpack.c.bf16 %v657, %v657
      %v662 = vpack.c.bf16 %v658, %v658
      %v663 = vpack.c.bf16 %v659, %v659
      %v664 = vld [vmem:[%s4] sm:$0xff]
      %v665 = vld [vmem:[%s4 + $0x8] sm:$0xff]
      %v666 = vld [vmem:[%s4 + $0x10] sm:$0xff]
      %v667 = vld [vmem:[%s4 + $0x18] sm:$0xff]
      %v668 = vld [vmem:[%s4 + $0x20] sm:$0xff]
      %v669 = vld [vmem:[%s4 + $0x28] sm:$0xff]
      %v670 = vld [vmem:[%s4 + $0x30] sm:$0xff]
      %v671 = vld [vmem:[%s4 + $0x38] sm:$0xff]
      %v672 = vld [vmem:[%s4 + $0x40] sm:$0xff]
      %v673 = vld [vmem:[%s4 + $0x48] sm:$0xff]
      %v674 = vld [vmem:[%s4 + $0x50] sm:$0xff]
      %v675 = vld [vmem:[%s4 + $0x58] sm:$0xff]
      %v676 = vld [vmem:[%s4 + $0x60] sm:$0xff]
      %v677 = vld [vmem:[%s4 + $0x68] sm:$0xff]
      %v678 = vld [vmem:[%s4 + $0x70] sm:$0xff]
      %v679 = vld [vmem:[%s4 + $0x78] sm:$0xff]
      %v680 = vld [vmem:[%s4 + $0x80] sm:$0xff]
      %v681 = vld [vmem:[%s4 + $0x88] sm:$0xff]
      %v682 = vld [vmem:[%s4 + $0x90] sm:$0xff]
      %v683 = vld [vmem:[%s4 + $0x98] sm:$0xff]
      %v684 = vld [vmem:[%s4 + $0xa0] sm:$0xff]
      %v685 = vld [vmem:[%s4 + $0xa8] sm:$0xff]
      %v686 = vld [vmem:[%s4 + $0xb0] sm:$0xff]
      %v687 = vld [vmem:[%s4 + $0xb8] sm:$0xff]
      %v688 = vld [vmem:[%s4 + $0xc0] sm:$0xff]
      %v689 = vld [vmem:[%s4 + $0xc8] sm:$0xff]
      %v690 = vld [vmem:[%s4 + $0xd0] sm:$0xff]
      %v691 = vld [vmem:[%s4 + $0xd8] sm:$0xff]
      %v692 = vld [vmem:[%s4 + $0xe0] sm:$0xff]
      %v693 = vld [vmem:[%s4 + $0xe8] sm:$0xff]
      %v694 = vld [vmem:[%s4 + $0xf0] sm:$0xff]
      %v695 = vld [vmem:[%s4 + $0xf8] sm:$0xff]
      %v696 = vld [vmem:[%s4 + $0x100] sm:$0xff]
      %v697 = vld [vmem:[%s4 + $0x108] sm:$0xff]
      %v698 = vld [vmem:[%s4 + $0x110] sm:$0xff]
      %v699 = vld [vmem:[%s4 + $0x118] sm:$0xff]
      %v700 = vld [vmem:[%s4 + $0x120] sm:$0xff]
      %v701 = vld [vmem:[%s4 + $0x128] sm:$0xff]
      %v702 = vld [vmem:[%s4 + $0x130] sm:$0xff]
      %v703 = vld [vmem:[%s4 + $0x138] sm:$0xff]
      %v704 = vld [vmem:[%s4 + $0x140] sm:$0xff]
      %v705 = vld [vmem:[%s4 + $0x148] sm:$0xff]
      %v706 = vld [vmem:[%s4 + $0x150] sm:$0xff]
      %v707 = vld [vmem:[%s4 + $0x158] sm:$0xff]
      %v708 = vld [vmem:[%s4 + $0x160] sm:$0xff]
      %v709 = vld [vmem:[%s4 + $0x168] sm:$0xff]
      %v710 = vld [vmem:[%s4 + $0x170] sm:$0xff]
      %v711 = vld [vmem:[%s4 + $0x178] sm:$0xff]
      %v712 = vld [vmem:[%s4 + $0x180] sm:$0xff]
      %v713 = vld [vmem:[%s4 + $0x188] sm:$0xff]
      %v714 = vld [vmem:[%s4 + $0x190] sm:$0xff]
      %v715 = vld [vmem:[%s4 + $0x198] sm:$0xff]
      %v716 = vld [vmem:[%s4 + $0x1a0] sm:$0xff]
      %v717 = vld [vmem:[%s4 + $0x1a8] sm:$0xff]
      %v718 = vld [vmem:[%s4 + $0x1b0] sm:$0xff]
      %v719 = vld [vmem:[%s4 + $0x1b8] sm:$0xff]
      %v720 = vld [vmem:[%s4 + $0x1c0] sm:$0xff]
      %v721 = vld [vmem:[%s4 + $0x1c8] sm:$0xff]
      %v722 = vld [vmem:[%s4 + $0x1d0] sm:$0xff]
      %v723 = vld [vmem:[%s4 + $0x1d8] sm:$0xff]
      %v724 = vld [vmem:[%s4 + $0x1e0] sm:$0xff]
      %v725 = vld [vmem:[%s4 + $0x1e8] sm:$0xff]
      %v726 = vld [vmem:[%s4 + $0x1f0] sm:$0xff]
      %v727 = vld [vmem:[%s4 + $0x1f8] sm:$0xff]
      %v792 = vunpack.c.l.b16 %v664
      %v793 = vunpack.c.h.b16 %v664
      %v794 = vunpack.c.l.b16 %v665
      %v795 = vunpack.c.h.b16 %v665
      %v796 = vunpack.c.l.b16 %v666
      %v797 = vunpack.c.h.b16 %v666
      %v798 = vunpack.c.l.b16 %v667
      %v799 = vunpack.c.h.b16 %v667
      %v800 = vunpack.c.l.b16 %v668
      %v801 = vunpack.c.h.b16 %v668
      %v802 = vunpack.c.l.b16 %v669
      %v803 = vunpack.c.h.b16 %v669
      %v804 = vunpack.c.l.b16 %v670
      %v805 = vunpack.c.h.b16 %v670
      %v806 = vunpack.c.l.b16 %v671
      %v807 = vunpack.c.h.b16 %v671
      %v808 = vunpack.c.l.b16 %v672
      %v809 = vunpack.c.h.b16 %v672
      %v810 = vunpack.c.l.b16 %v673
      %v811 = vunpack.c.h.b16 %v673
      %v812 = vunpack.c.l.b16 %v674
      %v813 = vunpack.c.h.b16 %v674
      %v814 = vunpack.c.l.b16 %v675
      %v815 = vunpack.c.h.b16 %v675
      %v816 = vunpack.c.l.b16 %v676
      %v817 = vunpack.c.h.b16 %v676
      %v818 = vunpack.c.l.b16 %v677
      %v819 = vunpack.c.h.b16 %v677
      %v820 = vunpack.c.l.b16 %v678
      %v821 = vunpack.c.h.b16 %v678
      %v822 = vunpack.c.l.b16 %v679
      %v823 = vunpack.c.h.b16 %v679
      %v824 = vunpack.c.l.b16 %v680
      %v825 = vunpack.c.h.b16 %v680
      %v826 = vunpack.c.l.b16 %v681
      %v827 = vunpack.c.h.b16 %v681
      %v828 = vunpack.c.l.b16 %v682
      %v829 = vunpack.c.h.b16 %v682
      %v830 = vunpack.c.l.b16 %v683
      %v831 = vunpack.c.h.b16 %v683
      %v832 = vunpack.c.l.b16 %v684
      %v833 = vunpack.c.h.b16 %v684
      %v834 = vunpack.c.l.b16 %v685
      %v835 = vunpack.c.h.b16 %v685
      %v836 = vunpack.c.l.b16 %v686
      %v837 = vunpack.c.h.b16 %v686
      %v838 = vunpack.c.l.b16 %v687
      %v839 = vunpack.c.h.b16 %v687
      %v840 = vunpack.c.l.b16 %v688
      %v841 = vunpack.c.h.b16 %v688
      %v842 = vunpack.c.l.b16 %v689
      %v843 = vunpack.c.h.b16 %v689
      %v844 = vunpack.c.l.b16 %v690
      %v845 = vunpack.c.h.b16 %v690
      %v846 = vunpack.c.l.b16 %v691
      %v847 = vunpack.c.h.b16 %v691
      %v848 = vunpack.c.l.b16 %v692
      %v849 = vunpack.c.h.b16 %v692
      %v850 = vunpack.c.l.b16 %v693
      %v851 = vunpack.c.h.b16 %v693
      %v852 = vunpack.c.l.b16 %v694
      %v853 = vunpack.c.h.b16 %v694
      %v854 = vunpack.c.l.b16 %v695
      %v855 = vunpack.c.h.b16 %v695
      %v856 = vunpack.c.l.b16 %v696
      %v857 = vunpack.c.h.b16 %v696
      %v858 = vunpack.c.l.b16 %v697
      %v859 = vunpack.c.h.b16 %v697
      %v860 = vunpack.c.l.b16 %v698
      %v861 = vunpack.c.h.b16 %v698
      %v862 = vunpack.c.l.b16 %v699
      %v863 = vunpack.c.h.b16 %v699
      %v864 = vunpack.c.l.b16 %v700
      %v865 = vunpack.c.h.b16 %v700
      %v866 = vunpack.c.l.b16 %v701
      %v867 = vunpack.c.h.b16 %v701
      %v868 = vunpack.c.l.b16 %v702
      %v869 = vunpack.c.h.b16 %v702
      %v870 = vunpack.c.l.b16 %v703
      %v871 = vunpack.c.h.b16 %v703
      %v872 = vunpack.c.l.b16 %v704
      %v873 = vunpack.c.h.b16 %v704
      %v874 = vunpack.c.l.b16 %v705
      %v875 = vunpack.c.h.b16 %v705
      %v876 = vunpack.c.l.b16 %v706
      %v877 = vunpack.c.h.b16 %v706
      %v878 = vunpack.c.l.b16 %v707
      %v879 = vunpack.c.h.b16 %v707
      %v880 = vunpack.c.l.b16 %v708
      %v881 = vunpack.c.h.b16 %v708
      %v882 = vunpack.c.l.b16 %v709
      %v883 = vunpack.c.h.b16 %v709
      %v884 = vunpack.c.l.b16 %v710
      %v885 = vunpack.c.h.b16 %v710
      %v886 = vunpack.c.l.b16 %v711
      %v887 = vunpack.c.h.b16 %v711
      %v888 = vunpack.c.l.b16 %v712
      %v889 = vunpack.c.h.b16 %v712
      %v890 = vunpack.c.l.b16 %v713
      %v891 = vunpack.c.h.b16 %v713
      %v892 = vunpack.c.l.b16 %v714
      %v893 = vunpack.c.h.b16 %v714
      %v894 = vunpack.c.l.b16 %v715
      %v895 = vunpack.c.h.b16 %v715
      %v896 = vunpack.c.l.b16 %v716
      %v897 = vunpack.c.h.b16 %v716
      %v898 = vunpack.c.l.b16 %v717
      %v899 = vunpack.c.h.b16 %v717
      %v900 = vunpack.c.l.b16 %v718
      %v901 = vunpack.c.h.b16 %v718
      %v902 = vunpack.c.l.b16 %v719
      %v903 = vunpack.c.h.b16 %v719
      %v904 = vunpack.c.l.b16 %v720
      %v905 = vunpack.c.h.b16 %v720
      %v906 = vunpack.c.l.b16 %v721
      %v907 = vunpack.c.h.b16 %v721
      %v908 = vunpack.c.l.b16 %v722
      %v909 = vunpack.c.h.b16 %v722
      %v910 = vunpack.c.l.b16 %v723
      %v911 = vunpack.c.h.b16 %v723
      %v912 = vunpack.c.l.b16 %v724
      %v913 = vunpack.c.h.b16 %v724
      %v914 = vunpack.c.l.b16 %v725
      %v915 = vunpack.c.h.b16 %v725
      %v916 = vunpack.c.l.b16 %v726
      %v917 = vunpack.c.h.b16 %v726
      %v918 = vunpack.c.l.b16 %v727
      %v919 = vunpack.c.h.b16 %v727
      %v920 = vpack.c.b16 %v794, %v792
      %v921 = vpack.c.b16 %v795, %v793
      %v922 = vpack.c.b16 %v798, %v796
      %v923 = vpack.c.b16 %v799, %v797
      %v924 = vpack.c.b16 %v802, %v800
      %v925 = vpack.c.b16 %v803, %v801
      %v926 = vpack.c.b16 %v806, %v804
      %v927 = vpack.c.b16 %v807, %v805
      %v928 = vpack.c.b16 %v810, %v808
      %v929 = vpack.c.b16 %v811, %v809
      %v930 = vpack.c.b16 %v814, %v812
      %v931 = vpack.c.b16 %v815, %v813
      %v932 = vpack.c.b16 %v818, %v816
      %v933 = vpack.c.b16 %v819, %v817
      %v934 = vpack.c.b16 %v822, %v820
      %v935 = vpack.c.b16 %v823, %v821
      %v936 = vpack.c.b16 %v826, %v824
      %v937 = vpack.c.b16 %v827, %v825
      %v938 = vpack.c.b16 %v830, %v828
      %v939 = vpack.c.b16 %v831, %v829
      %v940 = vpack.c.b16 %v834, %v832
      %v941 = vpack.c.b16 %v835, %v833
      %v942 = vpack.c.b16 %v838, %v836
      %v943 = vpack.c.b16 %v839, %v837
      %v944 = vpack.c.b16 %v842, %v840
      %v945 = vpack.c.b16 %v843, %v841
      %v946 = vpack.c.b16 %v846, %v844
      %v947 = vpack.c.b16 %v847, %v845
      %v948 = vpack.c.b16 %v850, %v848
      %v949 = vpack.c.b16 %v851, %v849
      %v950 = vpack.c.b16 %v854, %v852
      %v951 = vpack.c.b16 %v855, %v853
      %v952 = vpack.c.b16 %v858, %v856
      %v953 = vpack.c.b16 %v859, %v857
      %v954 = vpack.c.b16 %v862, %v860
      %v955 = vpack.c.b16 %v863, %v861
      %v956 = vpack.c.b16 %v866, %v864
      %v957 = vpack.c.b16 %v867, %v865
      %v958 = vpack.c.b16 %v870, %v868
      %v959 = vpack.c.b16 %v871, %v869
      %v960 = vpack.c.b16 %v874, %v872
      %v961 = vpack.c.b16 %v875, %v873
      %v962 = vpack.c.b16 %v878, %v876
      %v963 = vpack.c.b16 %v879, %v877
      %v964 = vpack.c.b16 %v882, %v880
      %v965 = vpack.c.b16 %v883, %v881
      %v966 = vpack.c.b16 %v886, %v884
      %v967 = vpack.c.b16 %v887, %v885
      %v968 = vpack.c.b16 %v890, %v888
      %v969 = vpack.c.b16 %v891, %v889
      %v970 = vpack.c.b16 %v894, %v892
      %v971 = vpack.c.b16 %v895, %v893
      %v972 = vpack.c.b16 %v898, %v896
      %v973 = vpack.c.b16 %v899, %v897
      %v974 = vpack.c.b16 %v902, %v900
      %v975 = vpack.c.b16 %v903, %v901
      %v976 = vpack.c.b16 %v906, %v904
      %v977 = vpack.c.b16 %v907, %v905
      %v978 = vpack.c.b16 %v910, %v908
      %v979 = vpack.c.b16 %v911, %v909
      %v980 = vpack.c.b16 %v914, %v912
      %v981 = vpack.c.b16 %v915, %v913
      %v982 = vpack.c.b16 %v918, %v916
      %v983 = vpack.c.b16 %v919, %v917
      %1048 = vmatprep.subr.bf16.mxu0 %v921
      %1049 = vmatpush1.bf16.msra.mxu0 %v920
      %1050 = vmatprep.subr.bf16.mxu0 %v923
      %1051 = vmatpush1.bf16.msra.mxu0 %v922
      %1052 = vmatprep.subr.bf16.mxu0 %v925
      %1053 = vmatpush1.bf16.msra.mxu0 %v924
      %1054 = vmatprep.subr.bf16.mxu0 %v927
      %1055 = vmatpush1.bf16.msra.mxu0 %v926
      %1056 = vmatprep.subr.bf16.mxu0 %v929
      %1057 = vmatpush1.bf16.msra.mxu0 %v928
      %1058 = vmatprep.subr.bf16.mxu0 %v931
      %1059 = vmatpush1.bf16.msra.mxu0 %v930
      %1060 = vmatprep.subr.bf16.mxu0 %v933
      %1061 = vmatpush1.bf16.msra.mxu0 %v932
      %1062 = vmatprep.subr.bf16.mxu0 %v935
      %1063 = vmatpush1.bf16.msra.mxu0 %v934
      %1064 = vmatprep.subr.bf16.mxu0 %v937
      %1065 = vmatpush1.bf16.msra.mxu0 %v936
      %1066 = vmatprep.subr.bf16.mxu0 %v939
      %1067 = vmatpush1.bf16.msra.mxu0 %v938
      %1068 = vmatprep.subr.bf16.mxu0 %v941
      %1069 = vmatpush1.bf16.msra.mxu0 %v940
      %1070 = vmatprep.subr.bf16.mxu0 %v943
      %1071 = vmatpush1.bf16.msra.mxu0 %v942
      %1072 = vmatprep.subr.bf16.mxu0 %v945
      %1073 = vmatpush1.bf16.msra.mxu0 %v944
      %1074 = vmatprep.subr.bf16.mxu0 %v947
      %1075 = vmatpush1.bf16.msra.mxu0 %v946
      %1076 = vmatprep.subr.bf16.mxu0 %v949
      %1077 = vmatpush1.bf16.msra.mxu0 %v948
      %1078 = vmatprep.subr.bf16.mxu0 %v951
      %1079 = vmatpush1.bf16.msra.mxu0 %v950
      %1080 = vmatprep.mubr.bf16.mxu0 %v661
      %1081 = vmatmul.mubr.bf16.gmra.mrb[0].mxu0 %v660
      %v1082 = vpop.f32.mrb[0].mxu0
      %v1083 = vadd.f32 0.0, %v1082
      %v1084 = vpop.f32.mrb[0].mxu0
      %v1085 = vadd.f32 0.0, %v1084
      %v1086 = vpop.f32.mrb[0].mxu0
      %v1087 = vpop.f32.mrb[0].mxu0
      %1088 = vdwg.mxu0
      %1089 = vmatprep.subr.bf16.mxu0 %v953
      %1090 = vmatpush1.bf16.msra.mxu0 %v952
      %1091 = vmatprep.subr.bf16.mxu0 %v955
      %1092 = vmatpush1.bf16.msra.mxu0 %v954
      %1093 = vmatprep.subr.bf16.mxu0 %v957
      %1094 = vmatpush1.bf16.msra.mxu0 %v956
      %1095 = vmatprep.subr.bf16.mxu0 %v959
      %1096 = vmatpush1.bf16.msra.mxu0 %v958
      %1097 = vmatprep.subr.bf16.mxu0 %v961
      %1098 = vmatpush1.bf16.msra.mxu0 %v960
      %1099 = vmatprep.subr.bf16.mxu0 %v963
      %1100 = vmatpush1.bf16.msra.mxu0 %v962
      %1101 = vmatprep.subr.bf16.mxu0 %v965
      %1102 = vmatpush1.bf16.msra.mxu0 %v964
      %1103 = vmatprep.subr.bf16.mxu0 %v967
      %1104 = vmatpush1.bf16.msra.mxu0 %v966
      %1105 = vmatprep.subr.bf16.mxu0 %v969
      %1106 = vmatpush1.bf16.msra.mxu0 %v968
      %1107 = vmatprep.subr.bf16.mxu0 %v971
      %1108 = vmatpush1.bf16.msra.mxu0 %v970
      %1109 = vmatprep.subr.bf16.mxu0 %v973
      %1110 = vmatpush1.bf16.msra.mxu0 %v972
      %1111 = vmatprep.subr.bf16.mxu0 %v975
      %1112 = vmatpush1.bf16.msra.mxu0 %v974
      %1113 = vmatprep.subr.bf16.mxu0 %v977
      %1114 = vmatpush1.bf16.msra.mxu0 %v976
      %1115 = vmatprep.subr.bf16.mxu0 %v979
      %1116 = vmatpush1.bf16.msra.mxu0 %v978
      %1117 = vmatprep.subr.bf16.mxu0 %v981
      %1118 = vmatpush1.bf16.msra.mxu0 %v980
      %1119 = vmatprep.subr.bf16.mxu0 %v983
      %1120 = vmatpush1.bf16.msra.mxu0 %v982
      %1121 = vmatprep.mubr.bf16.mxu0 %v663
      %1122 = vmatmul.mubr.bf16.gmra.mrb[0].mxu0 %v662
      %v1123 = vpop.f32.mrb[0].mxu0
      %v1124 = vadd.f32 %v1083, %v1123
      %v1125 = vpop.f32.mrb[0].mxu0
      %v1126 = vadd.f32 %v1085, %v1125
      %v1127 = vpop.f32.mrb[0].mxu0
      %v1128 = vpop.f32.mrb[0].mxu0
      %1129 = vdwg.mxu0
      %v1130 = vld [vmem:[%s5] sm:$0x3]
      %v1132 = vlaneseq
      %v1133 = vshrl.u32 %v1132, 7
      %v1134 = vsub.s32 0, %v1133
      %v1135 = vrot.slane %v1130, %v1134
      %v1136 = vlaneseq
      %v1137 = vshrl.u32 %v1136, 7
      %v1138 = vsub.s32 1, %v1137
      %v1139 = vrot.slane %v1130, %v1138
      %v1142 = vmul.f32 %v1124, %v1135
      %v1143 = vmul.f32 %v1126, %v1139
      %v1144 = vld [vmem:[%s6] sm:$0x3]
      %v1146 = vlaneseq
      %v1147 = vshrl.u32 %v1146, 7
      %v1148 = vsub.s32 0, %v1147
      %v1149 = vrot.slane %v1144, %v1148
      %v1150 = vlaneseq
      %v1151 = vshrl.u32 %v1150, 7
      %v1152 = vsub.s32 1, %v1151
      %v1153 = vrot.slane %v1144, %v1152
      %v1156 = vadd.f32 %v1142, %v1149
      %v1157 = vadd.f32 %v1143, %v1153
      %v1158 = vmax.f32 %v1156, 0.0
      %v1159 = vmax.f32 %v1157, 0.0
      %v1160 = vpack.c.bf16 %v1158, %v1158
      %v1161 = vpack.c.bf16 %v1159, %v1159
      %v1162 = vld [vmem:[%s7] sm:$0xf]
      %v1163 = vld [vmem:[%s7 + $0x4] sm:$0xf]
      %v1164 = vld [vmem:[%s7 + $0x8] sm:$0xf]
      %v1165 = vld [vmem:[%s7 + $0xc] sm:$0xf]
      %v1166 = vld [vmem:[%s7 + $0x10] sm:$0xf]
      %v1167 = vld [vmem:[%s7 + $0x14] sm:$0xf]
      %v1168 = vld [vmem:[%s7 + $0x18] sm:$0xf]
      %v1169 = vld [vmem:[%s7 + $0x1c] sm:$0xf]
      %v1170 = vld [vmem:[%s7 + $0x20] sm:$0xf]
      %v1171 = vld [vmem:[%s7 + $0x24] sm:$0xf]
      %v1172 = vld [vmem:[%s7 + $0x28] sm:$0xf]
      %v1173 = vld [vmem:[%s7 + $0x2c] sm:$0xf]
      %v1174 = vld [vmem:[%s7 + $0x30] sm:$0xf]
      %v1175 = vld [vmem:[%s7 + $0x34] sm:$0xf]
      %v1176 = vld [vmem:[%s7 + $0x38] sm:$0xf]
      %v1177 = vld [vmem:[%s7 + $0x3c] sm:$0xf]
      %v1178 = vld [vmem:[%s7 + $0x40] sm:$0xf]
      %v1179 = vld [vmem:[%s7 + $0x44] sm:$0xf]
      %v1180 = vld [vmem:[%s7 + $0x48] sm:$0xf]
      %v1181 = vld [vmem:[%s7 + $0x4c] sm:$0xf]
      %v1182 = vld [vmem:[%s7 + $0x50] sm:$0xf]
      %v1183 = vld [vmem:[%s7 + $0x54] sm:$0xf]
      %v1184 = vld [vmem:[%s7 + $0x58] sm:$0xf]
      %v1185 = vld [vmem:[%s7 + $0x5c] sm:$0xf]
      %v1186 = vld [vmem:[%s7 + $0x60] sm:$0xf]
      %v1187 = vld [vmem:[%s7 + $0x64] sm:$0xf]
      %v1188 = vld [vmem:[%s7 + $0x68] sm:$0xf]
      %v1189 = vld [vmem:[%s7 + $0x6c] sm:$0xf]
      %v1190 = vld [vmem:[%s7 + $0x70] sm:$0xf]
      %v1191 = vld [vmem:[%s7 + $0x74] sm:$0xf]
      %v1192 = vld [vmem:[%s7 + $0x78] sm:$0xf]
      %v1193 = vld [vmem:[%s7 + $0x7c] sm:$0xf]
      %v1194 = vld [vmem:[%s8] sm:$0x1]
      %v1196 = vlaneseq
      %v1197 = vshrl.u32 %v1196, 7
      %v1198 = vsub.s32 0, %v1197
      %v1199 = vrot.slane %v1194, %v1198
      %v1233 = vunpack.c.l.b16 %v1162
      %v1234 = vunpack.c.l.b16 %v1163
      %v1235 = vunpack.c.l.b16 %v1164
      %v1236 = vunpack.c.l.b16 %v1165
      %v1237 = vunpack.c.l.b16 %v1166
      %v1238 = vunpack.c.l.b16 %v1167
      %v1239 = vunpack.c.l.b16 %v1168
      %v1240 = vunpack.c.l.b16 %v1169
      %v1241 = vunpack.c.l.b16 %v1170
      %v1242 = vunpack.c.l.b16 %v1171
      %v1243 = vunpack.c.l.b16 %v1172
      %v1244 = vunpack.c.l.b16 %v1173
      %v1245 = vunpack.c.l.b16 %v1174
      %v1246 = vunpack.c.l.b16 %v1175
      %v1247 = vunpack.c.l.b16 %v1176
      %v1248 = vunpack.c.l.b16 %v1177
      %v1249 = vunpack.c.l.b16 %v1178
      %v1250 = vunpack.c.l.b16 %v1179
      %v1251 = vunpack.c.l.b16 %v1180
      %v1252 = vunpack.c.l.b16 %v1181
      %v1253 = vunpack.c.l.b16 %v1182
      %v1254 = vunpack.c.l.b16 %v1183
      %v1255 = vunpack.c.l.b16 %v1184
      %v1256 = vunpack.c.l.b16 %v1185
      %v1257 = vunpack.c.l.b16 %v1186
      %v1258 = vunpack.c.l.b16 %v1187
      %v1259 = vunpack.c.l.b16 %v1188
      %v1260 = vunpack.c.l.b16 %v1189
      %v1261 = vunpack.c.l.b16 %v1190
      %v1262 = vunpack.c.l.b16 %v1191
      %v1263 = vunpack.c.l.b16 %v1192
      %v1264 = vunpack.c.l.b16 %v1193
      %v1265 = vpack.c.b16 %v1234, %v1233
      %v1266 = vpack.c.b16 %v1236, %v1235
      %v1267 = vpack.c.b16 %v1238, %v1237
      %v1268 = vpack.c.b16 %v1240, %v1239
      %v1269 = vpack.c.b16 %v1242, %v1241
      %v1270 = vpack.c.b16 %v1244, %v1243
      %v1271 = vpack.c.b16 %v1246, %v1245
      %v1272 = vpack.c.b16 %v1248, %v1247
      %v1273 = vpack.c.b16 %v1250, %v1249
      %v1274 = vpack.c.b16 %v1252, %v1251
      %v1275 = vpack.c.b16 %v1254, %v1253
      %v1276 = vpack.c.b16 %v1256, %v1255
      %v1277 = vpack.c.b16 %v1258, %v1257
      %v1278 = vpack.c.b16 %v1260, %v1259
      %v1279 = vpack.c.b16 %v1262, %v1261
      %v1280 = vpack.c.b16 %v1264, %v1263
      %1297 = vmatprep.subr.bf16.mxu0 0
      %1298 = vmatpush1.bf16.msra.mxu0 %v1265
      %1299 = vmatprep.subr.bf16.mxu0 0
      %1300 = vmatpush1.bf16.msra.mxu0 %v1266
      %1301 = vmatprep.subr.bf16.mxu0 0
      %1302 = vmatpush1.bf16.msra.mxu0 %v1267
      %1303 = vmatprep.subr.bf16.mxu0 0
      %1304 = vmatpush1.bf16.msra.mxu0 %v1268
      %1305 = vmatprep.subr.bf16.mxu0 0
      %1306 = vmatpush1.bf16.msra.mxu0 %v1269
      %1307 = vmatprep.subr.bf16.mxu0 0
      %1308 = vmatpush1.bf16.msra.mxu0 %v1270
      %1309 = vmatprep.subr.bf16.mxu0 0
      %1310 = vmatpush1.bf16.msra.mxu0 %v1271
      %1311 = vmatprep.subr.bf16.mxu0 0
      %1312 = vmatpush1.bf16.msra.mxu0 %v1272
      %1313 = vmatprep.subr.bf16.mxu0 0
      %1314 = vmatpush1.bf16.msra.mxu0 %v1273
      %1315 = vmatprep.subr.bf16.mxu0 0
      %1316 = vmatpush1.bf16.msra.mxu0 %v1274
      %1317 = vmatprep.subr.bf16.mxu0 0
      %1318 = vmatpush1.bf16.msra.mxu0 %v1275
      %1319 = vmatprep.subr.bf16.mxu0 0
      %1320 = vmatpush1.bf16.msra.mxu0 %v1276
      %1321 = vmatprep.subr.bf16.mxu0 0
      %1322 = vmatpush1.bf16.msra.mxu0 %v1277
      %1323 = vmatprep.subr.bf16.mxu0 0
      %1324 = vmatpush1.bf16.msra.mxu0 %v1278
      %1325 = vmatprep.subr.bf16.mxu0 0
      %1326 = vmatpush1.bf16.msra.mxu0 %v1279
      %1327 = vmatprep.subr.bf16.mxu0 0
      %1328 = vmatpush1.bf16.msra.mxu0 %v1280
      %1329 = vmatprep.mubr.bf16.mxu0 %v1161
      %1330 = vmatmul.mubr.bf16.gmra.mrb[0].mxu0 %v1160
      %v1331 = vpop.f32.mrb[0].mxu0
      %v1332 = vadd.f32 %v1199, %v1331
      %v1333 = vpop.f32.mrb[0].mxu0
      %v1334 = vpop.f32.mrb[0].mxu0
      %v1335 = vpop.f32.mrb[0].mxu0
      %1336 = vdwg.mxu0
      %1337 = vst [vmem:[%s327] sm:$0xff] %v1332
      %p1338 = scmp.lt.s32.totalorder %s20, 1
      %s1339 = scalar_select %p1338, %s20, 1
      %s1340 = smul.addr %s1339, 8
      %s1341 = scalar_lea.vmem %s9, %s1340
      // Predicated region
      $region57: #{feedforward_net.5} parent=55 // pred_check
        %p1342 = pneg %p232
      $region58: #{feedforward_net.5} parent=55 // pred_check_branch
        %1344 = sbr.rel (%p1342) target = $region60
      $region59: #{feedforward_net.5} parent=55 // pred_region
        _
      $region60: #{feedforward_net.5} parent=55 // pred_fallthru
        _
    $region56: #{feedforward_net.5} parent=5 // pred_fallthru
      _
    %p1345 = scmp.le.s32.totalorder 2, %s15
    // Predicated region
    $region61: #{feedforward_net.5} parent=5 // pred_check
      %p1346 = pneg %p1345
    $region62: #{feedforward_net.5} parent=5 // pred_check_branch
      %1348 = sbr.rel (%p1346) target = $region64
    $region63: #{feedforward_net.5} parent=5 // pred_region
      %s1349 = ssub.s32 %s15, 2
      // Predicated region
      $region65: #{feedforward_net.5} parent=63 // pred_check
        %p1350 = pneg %p238
      $region66: #{feedforward_net.5} parent=63 // pred_check_branch
        %1352 = sbr.rel (%p1350) target = $region68
      $region67: #{feedforward_net.5} parent=63 // pred_region
        %p1353 = scmp.lt.s32.totalorder %s21, 1
        %s1354 = scalar_select %p1353, %s21, 1
        %s1355 = smul.addr %s1354, 8
        %s1356 = scalar_lea.vmem %s9, %s1355
      $region68: #{feedforward_net.5} parent=63 // pred_fallthru
        _
    $region64: #{feedforward_net.5} parent=5 // pred_fallthru
      _
  $region6: #{feedforward_net.5} parent=0 // loop_footer
    %s19 = sadd.s32 1, %s15
  $region7: #{feedforward_net.5} parent=0 // loop_footer_branch
    %14 = sbr.rel target = $region3
  $region8: #{feedforward_net.5} parent=0 // loop_exit
    _

</llo_original>
